<compile_context>
chip_gen: v6e
topology: v6e:2x2x1
jax: 0.10.0
libtpu: 0.0.40
codegen_flags: <defaults>
</compile_context>

<pallas_src>
import jax
import jax.numpy as jnp
from jax.experimental import pallas as pl
from jax.experimental.pallas import tpu as pltpu


# ----------------------------------------------------------------------------
# helpers
# ----------------------------------------------------------------------------
def _round_up(v, m):
    return (v + m - 1) // m * m


def _pad_to(a, shape):
    pads = [(0, t - s) for s, t in zip(a.shape, shape)]
    return jnp.pad(a, pads)


def _pick_bt(B, M):
    """Fold as many batch elements per grid step as keeps bt*M <= 256 rows."""
    target = max(1, 256 // max(M, 1))
    bt = 1
    for d in range(1, B + 1):
        if B % d == 0 and d <= target:
            bt = d
    return bt


# ----------------------------------------------------------------------------
# Fused kernel: [pos-embed + attention + MLP] x 2 blocks + head + mask-zeroing
# One grid step processes bt batch elements; the residual stream lives in
# vregs/VMEM for the whole step.
# ----------------------------------------------------------------------------
def _make_aux_gpt_kernel(D, num_layers=2):
    inv_d = 1.0 / float(D)           # LayerNorm statistics over the REAL D
    scale = 1.0 / (float(D) ** 0.5)  # attention scale over the REAL D

    def kernel(cp_ref, x_ref, padq_ref, padk_ref, neigh_ref,
               wp1_ref, vecs_ref, wp2_ref, wqkv_ref, bqkv_ref,
               wo_ref, wm1_ref, bm1_ref, wm2_ref, wh_ref, bh_ref,
               pred_ref, gt_ref):
        bt, M, Dp = x_ref.shape
        N = bt * M
        GCp = pred_ref.shape[-1]
        bf16 = jnp.bfloat16

        cp = cp_ref[...]                          # (bt, M, 3) f32
        h = x_ref[...].reshape(N, Dp)             # residual stream, f32
        padk = padk_ref[...]                      # (bt, 1, M), 1.0 = padded key
        keep = 1.0 - padq_ref[...]                # (bt, M, 1), 0.0 on padded tok

        # causal + key-padding mask built in-kernel (no (B,M,M) HBM bias).
        # NOTE: fully-masked (padded) query rows degenerate to a uniform
        # average; their output is zeroed by `keep` at the head, matching the
        # original module's post-hoc masking.
        row = jax.lax.broadcasted_iota(jnp.int32, (M, M), 0)
        col = jax.lax.broadcasted_iota(jnp.int32, (M, M), 1)
        allowed = (col <= row)[None, :, :] & (padk < 0.5)      # (bt, M, M)

        def layer_norm(v, g, b):
            # padded channels of v are exactly zero -> moments over real D only
            s1 = jnp.sum(v, axis=-1, keepdims=True)
            s2 = jnp.sum(v * v, axis=-1, keepdims=True)
            mu = s1 * inv_d
            var = s2 * inv_d - mu * mu
            return (v - mu) * jax.lax.rsqrt(var + 1e-5) * g + b

        for l in range(num_layers):               # encoder block, decoder block
            wp1 = wp1_ref[l]                       # (3, Dp)  f32
            vecs = vecs_ref[l]                     # (8, Dp)  f32
            bp1, bp2, g1, be1 = vecs[0], vecs[1], vecs[2], vecs[3]
            bo, g2, be2, bm2 = vecs[4], vecs[5], vecs[6], vecs[7]

            # positional embedding MLP; the K=3 contraction stays on the VPU
            p = (cp[:, :, 0:1] * wp1[0] + cp[:, :, 1:2] * wp1[1]
                 + cp[:, :, 2:3] * wp1[2] + bp1)
            p = jax.nn.gelu(p).reshape(N, Dp)
            p = jnp.dot(p.astype(bf16), wp2_ref[l],
                        preferred_element_type=jnp.float32) + bp2
            h = h + p

            # ---- single-head causal attention
            # TODO(synk): multi-head split not implemented (reference head count unknown)
            hn = layer_norm(h, g1, be1)
            qkv = jnp.dot(hn.astype(bf16), wqkv_ref[l],
                          preferred_element_type=jnp.float32) + bqkv_ref[l]
            q = qkv[:, :Dp].reshape(bt, M, Dp)
            k = qkv[:, Dp:2 * Dp].reshape(bt, M, Dp)
            v = qkv[:, 2 * Dp:].reshape(bt, M, Dp)
            s = jnp.einsum('bqd,bkd->bqk', q.astype(bf16), k.astype(bf16),
                           preferred_element_type=jnp.float32) * scale
            s = jnp.where(allowed, s, -1e9)        # mask in f32 after bf16 QK^T
            s = s - jnp.max(s, axis=-1, keepdims=True)
            e = jnp.exp(s)
            attn = e * pl.reciprocal(jnp.sum(e, axis=-1, keepdims=True),
                                     approx=True)
            av = jnp.einsum('bqk,bkd->bqd', attn.astype(bf16), v.astype(bf16),
                            preferred_element_type=jnp.float32).reshape(N, Dp)
            o = jnp.dot(av.astype(bf16), wo_ref[l],
                        preferred_element_type=jnp.float32) + bo
            h = h + o

            # ---- MLP
            hn2 = layer_norm(h, g2, be2)
            m = jnp.dot(hn2.astype(bf16), wm1_ref[l],
                        preferred_element_type=jnp.float32) + bm1_ref[l]
            m = jax.nn.gelu(m)
            m = jnp.dot(m.astype(bf16), wm2_ref[l],
                        preferred_element_type=jnp.float32) + bm2
            h = h + m

        # ---- prediction head + padding-mask zeroing (lane-dense GCp output)
        pred = jnp.dot(h.astype(bf16), wh_ref[...],
                       preferred_element_type=jnp.float32) + bh_ref[0]
        pred = pred.reshape(bt, M, GCp) * keep
        pred_ref[...] = pred.astype(pred_ref.dtype)
        gt_ref[...] = (neigh_ref[...] * keep).astype(gt_ref.dtype)

    return kernel


# ----------------------------------------------------------------------------
# Parameter init (deterministic, synthetic, "real"-sized f32) + packing
# ----------------------------------------------------------------------------
def init_block_params(key, D):
    ks = jax.random.split(key, 6)
    s = 0.02
    wp1 = jax.random.normal(ks[0], (3, D), jnp.float32) * s
    bp1 = jnp.zeros((1, D), jnp.float32)
    wp2 = jax.random.normal(ks[1], (D, D), jnp.float32) * s
    bp2 = jnp.zeros((1, D), jnp.float32)
    g1 = jnp.ones((1, D), jnp.float32)
    be1 = jnp.zeros((1, D), jnp.float32)
    wqkv = jax.random.normal(ks[2], (D, 3 * D), jnp.float32) * s
    bqkv = jnp.zeros((1, 3 * D), jnp.float32)
    wo = jax.random.normal(ks[3], (D, D), jnp.float32) * s
    bo = jnp.zeros((1, D), jnp.float32)
    g2 = jnp.ones((1, D), jnp.float32)
    be2 = jnp.zeros((1, D), jnp.float32)
    wm1 = jax.random.normal(ks[4], (D, 4 * D), jnp.float32) * s
    bm1 = jnp.zeros((1, 4 * D), jnp.float32)
    wm2 = jax.random.normal(ks[5], (4 * D, D), jnp.float32) * s
    bm2 = jnp.zeros((1, D), jnp.float32)
    return (wp1, bp1, wp2, bp2, g1, be1, wqkv, bqkv, wo, bo,
            g2, be2, wm1, bm1, wm2, bm2)


def _prep_block(p, D, Dp, Hp):
    """Pad to lane-dense shapes, cast matmul weights to bf16, pack vectors."""
    (wp1, bp1, wp2, bp2, g1, be1, wqkv, bqkv, wo, bo,
     g2, be2, wm1, bm1, wm2, bm2) = p
    f32, bf16 = jnp.float32, jnp.bfloat16
    vec = lambda v: _pad_to(v.reshape(-1), (Dp,)).astype(f32)

    wp1_p = _pad_to(wp1, (3, Dp)).astype(f32)                       # VPU FMA weights
    vecs = jnp.stack([vec(bp1), vec(bp2), vec(g1), vec(be1),
                      vec(bo), vec(g2), vec(be2), vec(bm2)], axis=0)  # (8, Dp)
    wp2_p = _pad_to(wp2, (Dp, Dp)).astype(bf16)
    wq, wk, wv = wqkv[:, :D], wqkv[:, D:2 * D], wqkv[:, 2 * D:]
    wqkv_p = jnp.concatenate([_pad_to(w, (Dp, Dp)) for w in (wq, wk, wv)],
                             axis=1).astype(bf16)                   # (Dp, 3Dp)
    bq, bk, bv = bqkv[0, :D], bqkv[0, D:2 * D], bqkv[0, 2 * D:]
    bqkv_p = jnp.concatenate([_pad_to(b, (Dp,)) for b in (bq, bk, bv)],
                             axis=0).astype(f32)                    # (3Dp,)
    wo_p = _pad_to(wo, (Dp, Dp)).astype(bf16)
    wm1_p = _pad_to(wm1, (Dp, Hp)).astype(bf16)
    bm1_p = _pad_to(bm1.reshape(-1), (Hp,)).astype(f32)
    wm2_p = _pad_to(wm2, (Hp, Dp)).astype(bf16)
    return (wp1_p, vecs, wp2_p, wqkv_p, bqkv_p, wo_p, wm1_p, bm1_p, wm2_p)


def prepare_params(enc_params, dec_params, head_params, D, Dp, Hp, GCp):
    enc = _prep_block(enc_params, D, Dp, Hp)
    dec = _prep_block(dec_params, D, Dp, Hp)
    stacked = tuple(jnp.stack([e, d], axis=0) for e, d in zip(enc, dec))
    wh, bh = head_params
    wh_p = _pad_to(wh, (Dp, GCp)).astype(jnp.bfloat16)
    bh_p = _pad_to(bh, (1, GCp)).astype(jnp.float32)
    return stacked + (wh_p, bh_p)


# ----------------------------------------------------------------------------
# Full AuxGPT forward
# ----------------------------------------------------------------------------
def aux_gpt_forward(x, neighborhoods, center_points,
                    enc_params, dec_params, head_params):
    B, M, D = x.shape
    G, C = neighborhoods.shape[-2], neighborhoods.shape[-1]
    GC = G * C
    Dp = _round_up(D, 128)
    Hp = _round_up(4 * D, 128)
    GCp = _round_up(GC, 128)

    # glue: padding mask (token padded iff its center point is all zeros)
    pad_f = jnp.all(center_points == 0.0, axis=-1).astype(jnp.float32)  # (B, M)
    padq = pad_f[:, :, None]          # (B, M, 1) query/token mask
    padk = pad_f[:, None, :]          # (B, 1, M) key mask

    # glue: lane-pad activations / targets once (channels-last -> 128 lanes)
    x_p = _pad_to(x, (B, M, Dp))
    neigh_p = _pad_to(neighborhoods.reshape(B, M, GC), (B, M, GCp))

    packed = prepare_params(enc_params, dec_params, head_params, D, Dp, Hp, GCp)

    bt = _pick_bt(B, M)
    grid = (B // bt,)
    kernel = _make_aux_gpt_kernel(D, num_layers=2)

    tok3 = lambda b: (b, 0, 0)
    c3 = lambda b: (0, 0, 0)
    c2 = lambda b: (0, 0)
    in_specs = [
        pl.BlockSpec((bt, M, 3), tok3),            # center points
        pl.BlockSpec((bt, M, Dp), tok3),           # tokens (lane-padded)
        pl.BlockSpec((bt, M, 1), tok3),            # padding mask (per token)
        pl.BlockSpec((bt, 1, M), tok3),            # padding mask (per key)
        pl.BlockSpec((bt, M, GCp), tok3),          # neighborhoods (lane-padded)
        pl.BlockSpec((2, 3, Dp), c3),              # wp1  (both blocks stacked)
        pl.BlockSpec((2, 8, Dp), c3),              # packed (1,D) vectors
        pl.BlockSpec((2, Dp, Dp), c3),             # wp2
        pl.BlockSpec((2, Dp, 3 * Dp), c3),         # wqkv
        pl.BlockSpec((2, 3 * Dp), c2),             # bqkv
        pl.BlockSpec((2, Dp, Dp), c3),             # wo
        pl.BlockSpec((2, Dp, Hp), c3),             # wm1
        pl.BlockSpec((2, Hp), c2),                 # bm1
        pl.BlockSpec((2, Hp, Dp), c3),             # wm2
        pl.BlockSpec((Dp, GCp), c2),               # head weight
        pl.BlockSpec((1, GCp), c2),                # head bias
    ]
    out_specs = (pl.BlockSpec((bt, M, GCp), tok3),
                 pl.BlockSpec((bt, M, GCp), tok3))

    pred_p, gt_p = pl.pallas_call(
        kernel,
        out_shape=(jax.ShapeDtypeStruct((B, M, GCp), jnp.float32),
                   jax.ShapeDtypeStruct((B, M, GCp), jnp.float32)),
        grid=grid,
        in_specs=in_specs,
        out_specs=out_specs,
        compiler_params=pltpu.CompilerParams(
            dimension_semantics=("parallel",)),    # batch-parallel (v7x 2 TCs)
    )(center_points, x_p, padq, padk, neigh_p, *packed)

    prediction = pred_p[:, :, :GC].reshape(B, M, G, C)
    ground_truth = gt_p[:, :, :GC].reshape(B, M, G, C)
    return prediction, ground_truth


if __name__ == "__main__":
    B, M, D, G, C = 2, 8, 32, 4, 3
    key = jax.random.PRNGKey(0)
    k_x, k_n, k_c, k_e, k_d, k_h = jax.random.split(key, 6)

    x = jax.random.normal(k_x, (B, M, D), jnp.float32)
    neighborhoods = jax.random.normal(k_n, (B, M, G, C), jnp.float32)
    center_points = jax.random.normal(k_c, (B, M, C), jnp.float32)
    # mark the last token of every batch element as padded (all-zero center)
    center_points = center_points.at[:, -1, :].set(0.0)

    enc_params = init_block_params(k_e, D)
    dec_params = init_block_params(k_d, D)
    wh = jax.random.normal(k_h, (D, G * C), jnp.float32) * 0.02
    bh = jnp.zeros((1, G * C), jnp.float32)
    head_params = (wh, bh)

    fwd = jax.jit(aux_gpt_forward)
    prediction, ground_truth = fwd(x, neighborhoods, center_points,
                                   enc_params, dec_params, head_params)
    jax.block_until_ready((prediction, ground_truth))

    assert prediction.shape == (B, M, G, C)
    assert ground_truth.shape == (B, M, G, C)
    print("KERNEL_OK")
</pallas_src>

<mosaic_0001>
module attributes {stable_mosaic.version = 11 : i64} {
  func.func @kernel(%arg0: i32, %arg1: memref<2x8x3xf32, #tpu.memory_space<vmem>>, %arg2: memref<2x8x128xf32, #tpu.memory_space<vmem>>, %arg3: memref<2x8x1xf32, #tpu.memory_space<vmem>>, %arg4: memref<2x1x8xf32, #tpu.memory_space<vmem>>, %arg5: memref<2x8x128xf32, #tpu.memory_space<vmem>>, %arg6: memref<2x3x128xf32, #tpu.memory_space<vmem>>, %arg7: memref<2x8x128xf32, #tpu.memory_space<vmem>>, %arg8: memref<2x128x128xbf16, #tpu.memory_space<vmem>>, %arg9: memref<2x128x384xbf16, #tpu.memory_space<vmem>>, %arg10: memref<2x384xf32, #tpu.memory_space<vmem>>, %arg11: memref<2x128x128xbf16, #tpu.memory_space<vmem>>, %arg12: memref<2x128x128xbf16, #tpu.memory_space<vmem>>, %arg13: memref<2x128xf32, #tpu.memory_space<vmem>>, %arg14: memref<2x128x128xbf16, #tpu.memory_space<vmem>>, %arg15: memref<128x128xbf16, #tpu.memory_space<vmem>>, %arg16: memref<1x128xf32, #tpu.memory_space<vmem>>, %arg17: memref<2x8x128xf32, #tpu.memory_space<vmem>>, %arg18: memref<2x8x128xf32, #tpu.memory_space<vmem>>) attributes {dimension_semantics = [#tpu.dimension_semantics<parallel>], iteration_bounds = array<i64: 1>, scalar_prefetch = 0 : i64, scratch_operands = 0 : i64, tpu.core_type = #tpu.core_type<tc>, window_params = [{transform_indices = @transform_0, window_bounds = array<i64: 2, 8, 3>}, {transform_indices = @transform_1, window_bounds = array<i64: 2, 8, 128>}, {transform_indices = @transform_2, window_bounds = array<i64: 2, 8, 1>}, {transform_indices = @transform_3, window_bounds = array<i64: 2, 1, 8>}, {transform_indices = @transform_4, window_bounds = array<i64: 2, 8, 128>}, {pipeline_mode = #tpu.pipeline_mode<synchronous>, transform_indices = @transform_5, window_bounds = array<i64: 2, 3, 128>}, {pipeline_mode = #tpu.pipeline_mode<synchronous>, transform_indices = @transform_6, window_bounds = array<i64: 2, 8, 128>}, {pipeline_mode = #tpu.pipeline_mode<synchronous>, transform_indices = @transform_7, window_bounds = array<i64: 2, 128, 128>}, {pipeline_mode = #tpu.pipeline_mode<synchronous>, transform_indices = @transform_8, window_bounds = array<i64: 2, 128, 384>}, {pipeline_mode = #tpu.pipeline_mode<synchronous>, transform_indices = @transform_9, window_bounds = array<i64: 2, 384>}, {pipeline_mode = #tpu.pipeline_mode<synchronous>, transform_indices = @transform_10, window_bounds = array<i64: 2, 128, 128>}, {pipeline_mode = #tpu.pipeline_mode<synchronous>, transform_indices = @transform_11, window_bounds = array<i64: 2, 128, 128>}, {pipeline_mode = #tpu.pipeline_mode<synchronous>, transform_indices = @transform_12, window_bounds = array<i64: 2, 128>}, {pipeline_mode = #tpu.pipeline_mode<synchronous>, transform_indices = @transform_13, window_bounds = array<i64: 2, 128, 128>}, {pipeline_mode = #tpu.pipeline_mode<synchronous>, transform_indices = @transform_14, window_bounds = array<i64: 128, 128>}, {pipeline_mode = #tpu.pipeline_mode<synchronous>, transform_indices = @transform_15, window_bounds = array<i64: 1, 128>}, {transform_indices = @transform_16, window_bounds = array<i64: 2, 8, 128>}, {transform_indices = @transform_17, window_bounds = array<i64: 2, 8, 128>}]} {
    %c0 = arith.constant 0 : index
    %c0_0 = arith.constant 0 : index
    %c0_1 = arith.constant 0 : index
    %0 = vector.load %arg1[%c0, %c0_0, %c0_1] : memref<2x8x3xf32, #tpu.memory_space<vmem>>, vector<2x8x3xf32>
    %c0_2 = arith.constant 0 : index
    %c0_3 = arith.constant 0 : index
    %c0_4 = arith.constant 0 : index
    %1 = vector.load %arg2[%c0_2, %c0_3, %c0_4] : memref<2x8x128xf32, #tpu.memory_space<vmem>>, vector<2x8x128xf32>
    %2 = vector.shape_cast %1 : vector<2x8x128xf32> to vector<16x128xf32>
    %c0_5 = arith.constant 0 : index
    %c0_6 = arith.constant 0 : index
    %c0_7 = arith.constant 0 : index
    %3 = vector.load %arg4[%c0_5, %c0_6, %c0_7] : memref<2x1x8xf32, #tpu.memory_space<vmem>>, vector<2x1x8xf32>
    %c0_8 = arith.constant 0 : index
    %c0_9 = arith.constant 0 : index
    %c0_10 = arith.constant 0 : index
    %4 = vector.load %arg3[%c0_8, %c0_9, %c0_10] : memref<2x8x1xf32, #tpu.memory_space<vmem>>, vector<2x8x1xf32>
    %cst = arith.constant 1.000000e+00 : f32
    %5 = vector.broadcast %cst : f32 to vector<2x8x1xf32>
    %6 = arith.subf %5, %4 : vector<2x8x1xf32>
    %7 = tpu.iota {dimensions = array<i32: 0>} : vector<8x8xi32>
    %8 = tpu.iota {dimensions = array<i32: 1>} : vector<8x8xi32>
    %9 = arith.cmpi sle, %8, %7 : vector<8x8xi32>
    %10 = vector.shape_cast %9 : vector<8x8xi1> to vector<1x8x8xi1>
    %cst_11 = arith.constant 5.000000e-01 : f32
    %11 = vector.broadcast %cst_11 : f32 to vector<2x1x8xf32>
    %12 = arith.cmpf olt, %3, %11 : vector<2x1x8xf32>
    %13 = vector.broadcast %10 : vector<1x8x8xi1> to vector<2x8x8xi1>
    %14 = vector.broadcast %12 : vector<2x1x8xi1> to vector<2x8x8xi1>
    %15 = arith.andi %13, %14 : vector<2x8x8xi1>
    %c0_12 = arith.constant 0 : index
    %c0_13 = arith.constant 0 : index
    %c0_14 = arith.constant 0 : index
    %16 = vector.load %arg6[%c0_12, %c0_13, %c0_14] : memref<2x3x128xf32, #tpu.memory_space<vmem>>, vector<1x3x128xf32>
    %17 = vector.shape_cast %16 : vector<1x3x128xf32> to vector<3x128xf32>
    %c0_15 = arith.constant 0 : index
    %c0_16 = arith.constant 0 : index
    %c0_17 = arith.constant 0 : index
    %18 = vector.load %arg7[%c0_15, %c0_16, %c0_17] : memref<2x8x128xf32, #tpu.memory_space<vmem>>, vector<1x8x128xf32>
    %19 = vector.shape_cast %18 : vector<1x8x128xf32> to vector<8x128xf32>
    %20 = vector.extract_strided_slice %19 {offsets = [0, 0], sizes = [1, 128], strides = [1, 1]} : vector<8x128xf32> to vector<1x128xf32>
    %21 = vector.shape_cast %20 : vector<1x128xf32> to vector<128xf32>
    %22 = vector.extract_strided_slice %19 {offsets = [1, 0], sizes = [1, 128], strides = [1, 1]} : vector<8x128xf32> to vector<1x128xf32>
    %23 = vector.shape_cast %22 : vector<1x128xf32> to vector<128xf32>
    %24 = vector.extract_strided_slice %19 {offsets = [2, 0], sizes = [1, 128], strides = [1, 1]} : vector<8x128xf32> to vector<1x128xf32>
    %25 = vector.shape_cast %24 : vector<1x128xf32> to vector<128xf32>
    %26 = vector.extract_strided_slice %19 {offsets = [3, 0], sizes = [1, 128], strides = [1, 1]} : vector<8x128xf32> to vector<1x128xf32>
    %27 = vector.shape_cast %26 : vector<1x128xf32> to vector<128xf32>
    %28 = vector.extract_strided_slice %19 {offsets = [4, 0], sizes = [1, 128], strides = [1, 1]} : vector<8x128xf32> to vector<1x128xf32>
    %29 = vector.shape_cast %28 : vector<1x128xf32> to vector<128xf32>
    %30 = vector.extract_strided_slice %19 {offsets = [5, 0], sizes = [1, 128], strides = [1, 1]} : vector<8x128xf32> to vector<1x128xf32>
    %31 = vector.shape_cast %30 : vector<1x128xf32> to vector<128xf32>
    %32 = vector.extract_strided_slice %19 {offsets = [6, 0], sizes = [1, 128], strides = [1, 1]} : vector<8x128xf32> to vector<1x128xf32>
    %33 = vector.shape_cast %32 : vector<1x128xf32> to vector<128xf32>
    %34 = vector.extract_strided_slice %19 {offsets = [7, 0], sizes = [1, 128], strides = [1, 1]} : vector<8x128xf32> to vector<1x128xf32>
    %35 = vector.shape_cast %34 : vector<1x128xf32> to vector<128xf32>
    %36 = vector.extract_strided_slice %0 {offsets = [0, 0, 0], sizes = [2, 8, 1], strides = [1, 1, 1]} : vector<2x8x3xf32> to vector<2x8x1xf32>
    %37 = vector.extract_strided_slice %17 {offsets = [0, 0], sizes = [1, 128], strides = [1, 1]} : vector<3x128xf32> to vector<1x128xf32>
    %38 = vector.shape_cast %37 : vector<1x128xf32> to vector<128xf32>
    %39 = vector.shape_cast %38 : vector<128xf32> to vector<1x1x128xf32>
    %40 = vector.broadcast %36 : vector<2x8x1xf32> to vector<2x8x128xf32>
    %41 = vector.broadcast %39 : vector<1x1x128xf32> to vector<2x8x128xf32>
    %42 = arith.mulf %40, %41 : vector<2x8x128xf32>
    %43 = vector.extract_strided_slice %0 {offsets = [0, 0, 1], sizes = [2, 8, 1], strides = [1, 1, 1]} : vector<2x8x3xf32> to vector<2x8x1xf32>
    %44 = vector.extract_strided_slice %17 {offsets = [1, 0], sizes = [1, 128], strides = [1, 1]} : vector<3x128xf32> to vector<1x128xf32>
    %45 = vector.shape_cast %44 : vector<1x128xf32> to vector<128xf32>
    %46 = vector.shape_cast %45 : vector<128xf32> to vector<1x1x128xf32>
    %47 = vector.broadcast %43 : vector<2x8x1xf32> to vector<2x8x128xf32>
    %48 = vector.broadcast %46 : vector<1x1x128xf32> to vector<2x8x128xf32>
    %49 = arith.mulf %47, %48 : vector<2x8x128xf32>
    %50 = arith.addf %42, %49 : vector<2x8x128xf32>
    %51 = vector.extract_strided_slice %0 {offsets = [0, 0, 2], sizes = [2, 8, 1], strides = [1, 1, 1]} : vector<2x8x3xf32> to vector<2x8x1xf32>
    %52 = vector.extract_strided_slice %17 {offsets = [2, 0], sizes = [1, 128], strides = [1, 1]} : vector<3x128xf32> to vector<1x128xf32>
    %53 = vector.shape_cast %52 : vector<1x128xf32> to vector<128xf32>
    %54 = vector.shape_cast %53 : vector<128xf32> to vector<1x1x128xf32>
    %55 = vector.broadcast %51 : vector<2x8x1xf32> to vector<2x8x128xf32>
    %56 = vector.broadcast %54 : vector<1x1x128xf32> to vector<2x8x128xf32>
    %57 = arith.mulf %55, %56 : vector<2x8x128xf32>
    %58 = arith.addf %50, %57 : vector<2x8x128xf32>
    %59 = vector.shape_cast %21 : vector<128xf32> to vector<1x1x128xf32>
    %60 = vector.broadcast %59 : vector<1x1x128xf32> to vector<2x8x128xf32>
    %61 = arith.addf %58, %60 : vector<2x8x128xf32>
    %62 = arith.mulf %61, %61 : vector<2x8x128xf32>
    %63 = arith.mulf %61, %62 : vector<2x8x128xf32>
    %cst_18 = arith.constant 4.471500e-02 : f32
    %64 = vector.broadcast %cst_18 : f32 to vector<2x8x128xf32>
    %65 = arith.mulf %64, %63 : vector<2x8x128xf32>
    %66 = arith.addf %61, %65 : vector<2x8x128xf32>
    %cst_19 = arith.constant 0.797884583 : f32
    %67 = vector.broadcast %cst_19 : f32 to vector<2x8x128xf32>
    %68 = arith.mulf %67, %66 : vector<2x8x128xf32>
    %69 = math.tanh %68 : vector<2x8x128xf32>
    %cst_20 = arith.constant 1.000000e+00 : f32
    %70 = vector.broadcast %cst_20 : f32 to vector<2x8x128xf32>
    %71 = arith.addf %70, %69 : vector<2x8x128xf32>
    %cst_21 = arith.constant 5.000000e-01 : f32
    %72 = vector.broadcast %cst_21 : f32 to vector<2x8x128xf32>
    %73 = arith.mulf %72, %71 : vector<2x8x128xf32>
    %74 = arith.mulf %61, %73 : vector<2x8x128xf32>
    %75 = vector.shape_cast %74 : vector<2x8x128xf32> to vector<16x128xf32>
    %76 = arith.truncf %75 : vector<16x128xf32> to vector<16x128xbf16>
    %c0_22 = arith.constant 0 : index
    %c0_23 = arith.constant 0 : index
    %c0_24 = arith.constant 0 : index
    %77 = vector.load %arg8[%c0_22, %c0_23, %c0_24] : memref<2x128x128xbf16, #tpu.memory_space<vmem>>, vector<1x128x128xbf16>
    %78 = vector.shape_cast %77 : vector<1x128x128xbf16> to vector<128x128xbf16>
    %cst_25 = arith.constant dense<0.000000e+00> : vector<16x128xf32>
    %79 = tpu.matmul %76, %78, %cst_25 {dimension_numbers = #tpu.dot_dimension_numbers<[1], [0], [0], [1], [0, 0, 1, 1], [], []>} : vector<16x128xbf16>, vector<128x128xbf16>, vector<16x128xf32> -> vector<16x128xf32>
    %80 = vector.shape_cast %23 : vector<128xf32> to vector<1x128xf32>
    %81 = vector.broadcast %80 : vector<1x128xf32> to vector<16x128xf32>
    %82 = arith.addf %79, %81 : vector<16x128xf32>
    %83 = arith.addf %2, %82 : vector<16x128xf32>
    %cst_26 = arith.constant dense<0.000000e+00> : vector<16xf32>
    %84 = vector.multi_reduction <add>, %83, %cst_26 [1] : vector<16x128xf32> to vector<16xf32>
    %85 = vector.shape_cast %84 : vector<16xf32> to vector<16x1xf32>
    %86 = arith.mulf %83, %83 : vector<16x128xf32>
    %cst_27 = arith.constant dense<0.000000e+00> : vector<16xf32>
    %87 = vector.multi_reduction <add>, %86, %cst_27 [1] : vector<16x128xf32> to vector<16xf32>
    %88 = vector.shape_cast %87 : vector<16xf32> to vector<16x1xf32>
    %cst_28 = arith.constant 3.125000e-02 : f32
    %89 = vector.broadcast %cst_28 : f32 to vector<16x1xf32>
    %90 = arith.mulf %85, %89 : vector<16x1xf32>
    %cst_29 = arith.constant 3.125000e-02 : f32
    %91 = vector.broadcast %cst_29 : f32 to vector<16x1xf32>
    %92 = arith.mulf %88, %91 : vector<16x1xf32>
    %93 = arith.mulf %90, %90 : vector<16x1xf32>
    %94 = arith.subf %92, %93 : vector<16x1xf32>
    %95 = vector.broadcast %90 : vector<16x1xf32> to vector<16x128xf32>
    %96 = arith.subf %83, %95 : vector<16x128xf32>
    %cst_30 = arith.constant 9.99999974E-6 : f32
    %97 = vector.broadcast %cst_30 : f32 to vector<16x1xf32>
    %98 = arith.addf %94, %97 : vector<16x1xf32>
    %99 = math.rsqrt %98 : vector<16x1xf32>
    %100 = vector.broadcast %99 : vector<16x1xf32> to vector<16x128xf32>
    %101 = arith.mulf %96, %100 : vector<16x128xf32>
    %102 = vector.shape_cast %25 : vector<128xf32> to vector<1x128xf32>
    %103 = vector.broadcast %102 : vector<1x128xf32> to vector<16x128xf32>
    %104 = arith.mulf %101, %103 : vector<16x128xf32>
    %105 = vector.shape_cast %27 : vector<128xf32> to vector<1x128xf32>
    %106 = vector.broadcast %105 : vector<1x128xf32> to vector<16x128xf32>
    %107 = arith.addf %104, %106 : vector<16x128xf32>
    %108 = arith.truncf %107 : vector<16x128xf32> to vector<16x128xbf16>
    %c0_31 = arith.constant 0 : index
    %c0_32 = arith.constant 0 : index
    %c0_33 = arith.constant 0 : index
    %109 = vector.load %arg9[%c0_31, %c0_32, %c0_33] : memref<2x128x384xbf16, #tpu.memory_space<vmem>>, vector<1x128x384xbf16>
    %110 = vector.shape_cast %109 : vector<1x128x384xbf16> to vector<128x384xbf16>
    %cst_34 = arith.constant dense<0.000000e+00> : vector<16x384xf32>
    %111 = tpu.matmul %108, %110, %cst_34 {dimension_numbers = #tpu.dot_dimension_numbers<[1], [0], [0], [1], [0, 0, 1, 1], [], []>} : vector<16x128xbf16>, vector<128x384xbf16>, vector<16x384xf32> -> vector<16x384xf32>
    %c0_35 = arith.constant 0 : index
    %c0_36 = arith.constant 0 : index
    %112 = vector.load %arg10[%c0_35, %c0_36] : memref<2x384xf32, #tpu.memory_space<vmem>>, vector<1x384xf32>
    %113 = vector.shape_cast %112 : vector<1x384xf32> to vector<384xf32>
    %114 = vector.shape_cast %113 : vector<384xf32> to vector<1x384xf32>
    %115 = vector.broadcast %114 : vector<1x384xf32> to vector<16x384xf32>
    %116 = arith.addf %111, %115 : vector<16x384xf32>
    %117 = vector.extract_strided_slice %116 {offsets = [0, 0], sizes = [16, 128], strides = [1, 1]} : vector<16x384xf32> to vector<16x128xf32>
    %118 = vector.shape_cast %117 : vector<16x128xf32> to vector<2x8x128xf32>
    %119 = vector.extract_strided_slice %116 {offsets = [0, 128], sizes = [16, 128], strides = [1, 1]} : vector<16x384xf32> to vector<16x128xf32>
    %120 = vector.shape_cast %119 : vector<16x128xf32> to vector<2x8x128xf32>
    %121 = vector.extract_strided_slice %116 {offsets = [0, 256], sizes = [16, 128], strides = [1, 1]} : vector<16x384xf32> to vector<16x128xf32>
    %122 = vector.shape_cast %121 : vector<16x128xf32> to vector<2x8x128xf32>
    %123 = arith.truncf %118 : vector<2x8x128xf32> to vector<2x8x128xbf16>
    %124 = arith.truncf %120 : vector<2x8x128xf32> to vector<2x8x128xbf16>
    "tpu.trace_start"() <{level = 10 : i32, message = "bqd,bkd->bqk"}> : () -> ()
    %cst_37 = arith.constant dense<0.000000e+00> : vector<2x8x8xf32>
    %125 = tpu.matmul %123, %124, %cst_37 {dimension_numbers = #tpu.dot_dimension_numbers<[2], [2], [1], [1], [0, 0, 0, 1, 1, 1], [0], [0]>} : vector<2x8x128xbf16>, vector<2x8x128xbf16>, vector<2x8x8xf32> -> vector<2x8x8xf32>
    "tpu.trace_stop"() : () -> ()
    %cst_38 = arith.constant 0.176776692 : f32
    %126 = vector.broadcast %cst_38 : f32 to vector<2x8x8xf32>
    %127 = arith.mulf %125, %126 : vector<2x8x8xf32>
    %cst_39 = arith.constant -1.000000e+09 : f32
    %128 = vector.broadcast %cst_39 : f32 to vector<2x8x8xf32>
    %129 = arith.select %15, %127, %128 : vector<2x8x8xi1>, vector<2x8x8xf32>
    %cst_40 = arith.constant dense<0xFF800000> : vector<2x8xf32>
    %130 = vector.multi_reduction <maximumf>, %129, %cst_40 [2] : vector<2x8x8xf32> to vector<2x8xf32>
    %131 = vector.shape_cast %130 : vector<2x8xf32> to vector<2x8x1xf32>
    %132 = vector.broadcast %131 : vector<2x8x1xf32> to vector<2x8x8xf32>
    %133 = arith.subf %129, %132 : vector<2x8x8xf32>
    %134 = math.exp %133 : vector<2x8x8xf32>
    %cst_41 = arith.constant dense<0.000000e+00> : vector<2x8xf32>
    %135 = vector.multi_reduction <add>, %134, %cst_41 [2] : vector<2x8x8xf32> to vector<2x8xf32>
    %136 = vector.shape_cast %135 : vector<2x8xf32> to vector<2x8x1xf32>
    %137 = tpu.reciprocal %136 {approx = true} : vector<2x8x1xf32> -> vector<2x8x1xf32>
    %138 = vector.broadcast %137 : vector<2x8x1xf32> to vector<2x8x8xf32>
    %139 = arith.mulf %134, %138 : vector<2x8x8xf32>
    %140 = arith.truncf %139 : vector<2x8x8xf32> to vector<2x8x8xbf16>
    %141 = arith.truncf %122 : vector<2x8x128xf32> to vector<2x8x128xbf16>
    "tpu.trace_start"() <{level = 10 : i32, message = "bqk,bkd->bqd"}> : () -> ()
    %cst_42 = arith.constant dense<0.000000e+00> : vector<2x8x128xf32>
    %142 = tpu.matmul %140, %141, %cst_42 {dimension_numbers = #tpu.dot_dimension_numbers<[2], [1], [1], [2], [0, 0, 0, 1, 1, 2], [0], [0]>} : vector<2x8x8xbf16>, vector<2x8x128xbf16>, vector<2x8x128xf32> -> vector<2x8x128xf32>
    "tpu.trace_stop"() : () -> ()
    %143 = vector.shape_cast %142 : vector<2x8x128xf32> to vector<16x128xf32>
    %144 = arith.truncf %143 : vector<16x128xf32> to vector<16x128xbf16>
    %c0_43 = arith.constant 0 : index
    %c0_44 = arith.constant 0 : index
    %c0_45 = arith.constant 0 : index
    %145 = vector.load %arg11[%c0_43, %c0_44, %c0_45] : memref<2x128x128xbf16, #tpu.memory_space<vmem>>, vector<1x128x128xbf16>
    %146 = vector.shape_cast %145 : vector<1x128x128xbf16> to vector<128x128xbf16>
    %cst_46 = arith.constant dense<0.000000e+00> : vector<16x128xf32>
    %147 = tpu.matmul %144, %146, %cst_46 {dimension_numbers = #tpu.dot_dimension_numbers<[1], [0], [0], [1], [0, 0, 1, 1], [], []>} : vector<16x128xbf16>, vector<128x128xbf16>, vector<16x128xf32> -> vector<16x128xf32>
    %148 = vector.shape_cast %29 : vector<128xf32> to vector<1x128xf32>
    %149 = vector.broadcast %148 : vector<1x128xf32> to vector<16x128xf32>
    %150 = arith.addf %147, %149 : vector<16x128xf32>
    %151 = arith.addf %83, %150 : vector<16x128xf32>
    %cst_47 = arith.constant dense<0.000000e+00> : vector<16xf32>
    %152 = vector.multi_reduction <add>, %151, %cst_47 [1] : vector<16x128xf32> to vector<16xf32>
    %153 = vector.shape_cast %152 : vector<16xf32> to vector<16x1xf32>
    %154 = arith.mulf %151, %151 : vector<16x128xf32>
    %cst_48 = arith.constant dense<0.000000e+00> : vector<16xf32>
    %155 = vector.multi_reduction <add>, %154, %cst_48 [1] : vector<16x128xf32> to vector<16xf32>
    %156 = vector.shape_cast %155 : vector<16xf32> to vector<16x1xf32>
    %cst_49 = arith.constant 3.125000e-02 : f32
    %157 = vector.broadcast %cst_49 : f32 to vector<16x1xf32>
    %158 = arith.mulf %153, %157 : vector<16x1xf32>
    %cst_50 = arith.constant 3.125000e-02 : f32
    %159 = vector.broadcast %cst_50 : f32 to vector<16x1xf32>
    %160 = arith.mulf %156, %159 : vector<16x1xf32>
    %161 = arith.mulf %158, %158 : vector<16x1xf32>
    %162 = arith.subf %160, %161 : vector<16x1xf32>
    %163 = vector.broadcast %158 : vector<16x1xf32> to vector<16x128xf32>
    %164 = arith.subf %151, %163 : vector<16x128xf32>
    %cst_51 = arith.constant 9.99999974E-6 : f32
    %165 = vector.broadcast %cst_51 : f32 to vector<16x1xf32>
    %166 = arith.addf %162, %165 : vector<16x1xf32>
    %167 = math.rsqrt %166 : vector<16x1xf32>
    %168 = vector.broadcast %167 : vector<16x1xf32> to vector<16x128xf32>
    %169 = arith.mulf %164, %168 : vector<16x128xf32>
    %170 = vector.shape_cast %31 : vector<128xf32> to vector<1x128xf32>
    %171 = vector.broadcast %170 : vector<1x128xf32> to vector<16x128xf32>
    %172 = arith.mulf %169, %171 : vector<16x128xf32>
    %173 = vector.shape_cast %33 : vector<128xf32> to vector<1x128xf32>
    %174 = vector.broadcast %173 : vector<1x128xf32> to vector<16x128xf32>
    %175 = arith.addf %172, %174 : vector<16x128xf32>
    %176 = arith.truncf %175 : vector<16x128xf32> to vector<16x128xbf16>
    %c0_52 = arith.constant 0 : index
    %c0_53 = arith.constant 0 : index
    %c0_54 = arith.constant 0 : index
    %177 = vector.load %arg12[%c0_52, %c0_53, %c0_54] : memref<2x128x128xbf16, #tpu.memory_space<vmem>>, vector<1x128x128xbf16>
    %178 = vector.shape_cast %177 : vector<1x128x128xbf16> to vector<128x128xbf16>
    %cst_55 = arith.constant dense<0.000000e+00> : vector<16x128xf32>
    %179 = tpu.matmul %176, %178, %cst_55 {dimension_numbers = #tpu.dot_dimension_numbers<[1], [0], [0], [1], [0, 0, 1, 1], [], []>} : vector<16x128xbf16>, vector<128x128xbf16>, vector<16x128xf32> -> vector<16x128xf32>
    %c0_56 = arith.constant 0 : index
    %c0_57 = arith.constant 0 : index
    %180 = vector.load %arg13[%c0_56, %c0_57] : memref<2x128xf32, #tpu.memory_space<vmem>>, vector<1x128xf32>
    %181 = vector.shape_cast %180 : vector<1x128xf32> to vector<128xf32>
    %182 = vector.shape_cast %181 : vector<128xf32> to vector<1x128xf32>
    %183 = vector.broadcast %182 : vector<1x128xf32> to vector<16x128xf32>
    %184 = arith.addf %179, %183 : vector<16x128xf32>
    %185 = arith.mulf %184, %184 : vector<16x128xf32>
    %186 = arith.mulf %184, %185 : vector<16x128xf32>
    %cst_58 = arith.constant 4.471500e-02 : f32
    %187 = vector.broadcast %cst_58 : f32 to vector<16x128xf32>
    %188 = arith.mulf %187, %186 : vector<16x128xf32>
    %189 = arith.addf %184, %188 : vector<16x128xf32>
    %cst_59 = arith.constant 0.797884583 : f32
    %190 = vector.broadcast %cst_59 : f32 to vector<16x128xf32>
    %191 = arith.mulf %190, %189 : vector<16x128xf32>
    %192 = math.tanh %191 : vector<16x128xf32>
    %cst_60 = arith.constant 1.000000e+00 : f32
    %193 = vector.broadcast %cst_60 : f32 to vector<16x128xf32>
    %194 = arith.addf %193, %192 : vector<16x128xf32>
    %cst_61 = arith.constant 5.000000e-01 : f32
    %195 = vector.broadcast %cst_61 : f32 to vector<16x128xf32>
    %196 = arith.mulf %195, %194 : vector<16x128xf32>
    %197 = arith.mulf %184, %196 : vector<16x128xf32>
    %198 = arith.truncf %197 : vector<16x128xf32> to vector<16x128xbf16>
    %c0_62 = arith.constant 0 : index
    %c0_63 = arith.constant 0 : index
    %c0_64 = arith.constant 0 : index
    %199 = vector.load %arg14[%c0_62, %c0_63, %c0_64] : memref<2x128x128xbf16, #tpu.memory_space<vmem>>, vector<1x128x128xbf16>
    %200 = vector.shape_cast %199 : vector<1x128x128xbf16> to vector<128x128xbf16>
    %cst_65 = arith.constant dense<0.000000e+00> : vector<16x128xf32>
    %201 = tpu.matmul %198, %200, %cst_65 {dimension_numbers = #tpu.dot_dimension_numbers<[1], [0], [0], [1], [0, 0, 1, 1], [], []>} : vector<16x128xbf16>, vector<128x128xbf16>, vector<16x128xf32> -> vector<16x128xf32>
    %202 = vector.shape_cast %35 : vector<128xf32> to vector<1x128xf32>
    %203 = vector.broadcast %202 : vector<1x128xf32> to vector<16x128xf32>
    %204 = arith.addf %201, %203 : vector<16x128xf32>
    %205 = arith.addf %151, %204 : vector<16x128xf32>
    %c1 = arith.constant 1 : index
    %c0_66 = arith.constant 0 : index
    %c0_67 = arith.constant 0 : index
    %206 = vector.load %arg6[%c1, %c0_66, %c0_67] : memref<2x3x128xf32, #tpu.memory_space<vmem>>, vector<1x3x128xf32>
    %207 = vector.shape_cast %206 : vector<1x3x128xf32> to vector<3x128xf32>
    %c1_68 = arith.constant 1 : index
    %c0_69 = arith.constant 0 : index
    %c0_70 = arith.constant 0 : index
    %208 = vector.load %arg7[%c1_68, %c0_69, %c0_70] : memref<2x8x128xf32, #tpu.memory_space<vmem>>, vector<1x8x128xf32>
    %209 = vector.shape_cast %208 : vector<1x8x128xf32> to vector<8x128xf32>
    %210 = vector.extract_strided_slice %209 {offsets = [0, 0], sizes = [1, 128], strides = [1, 1]} : vector<8x128xf32> to vector<1x128xf32>
    %211 = vector.shape_cast %210 : vector<1x128xf32> to vector<128xf32>
    %212 = vector.extract_strided_slice %209 {offsets = [1, 0], sizes = [1, 128], strides = [1, 1]} : vector<8x128xf32> to vector<1x128xf32>
    %213 = vector.shape_cast %212 : vector<1x128xf32> to vector<128xf32>
    %214 = vector.extract_strided_slice %209 {offsets = [2, 0], sizes = [1, 128], strides = [1, 1]} : vector<8x128xf32> to vector<1x128xf32>
    %215 = vector.shape_cast %214 : vector<1x128xf32> to vector<128xf32>
    %216 = vector.extract_strided_slice %209 {offsets = [3, 0], sizes = [1, 128], strides = [1, 1]} : vector<8x128xf32> to vector<1x128xf32>
    %217 = vector.shape_cast %216 : vector<1x128xf32> to vector<128xf32>
    %218 = vector.extract_strided_slice %209 {offsets = [4, 0], sizes = [1, 128], strides = [1, 1]} : vector<8x128xf32> to vector<1x128xf32>
    %219 = vector.shape_cast %218 : vector<1x128xf32> to vector<128xf32>
    %220 = vector.extract_strided_slice %209 {offsets = [5, 0], sizes = [1, 128], strides = [1, 1]} : vector<8x128xf32> to vector<1x128xf32>
    %221 = vector.shape_cast %220 : vector<1x128xf32> to vector<128xf32>
    %222 = vector.extract_strided_slice %209 {offsets = [6, 0], sizes = [1, 128], strides = [1, 1]} : vector<8x128xf32> to vector<1x128xf32>
    %223 = vector.shape_cast %222 : vector<1x128xf32> to vector<128xf32>
    %224 = vector.extract_strided_slice %209 {offsets = [7, 0], sizes = [1, 128], strides = [1, 1]} : vector<8x128xf32> to vector<1x128xf32>
    %225 = vector.shape_cast %224 : vector<1x128xf32> to vector<128xf32>
    %226 = vector.extract_strided_slice %0 {offsets = [0, 0, 0], sizes = [2, 8, 1], strides = [1, 1, 1]} : vector<2x8x3xf32> to vector<2x8x1xf32>
    %227 = vector.extract_strided_slice %207 {offsets = [0, 0], sizes = [1, 128], strides = [1, 1]} : vector<3x128xf32> to vector<1x128xf32>
    %228 = vector.shape_cast %227 : vector<1x128xf32> to vector<128xf32>
    %229 = vector.shape_cast %228 : vector<128xf32> to vector<1x1x128xf32>
    %230 = vector.broadcast %226 : vector<2x8x1xf32> to vector<2x8x128xf32>
    %231 = vector.broadcast %229 : vector<1x1x128xf32> to vector<2x8x128xf32>
    %232 = arith.mulf %230, %231 : vector<2x8x128xf32>
    %233 = vector.extract_strided_slice %0 {offsets = [0, 0, 1], sizes = [2, 8, 1], strides = [1, 1, 1]} : vector<2x8x3xf32> to vector<2x8x1xf32>
    %234 = vector.extract_strided_slice %207 {offsets = [1, 0], sizes = [1, 128], strides = [1, 1]} : vector<3x128xf32> to vector<1x128xf32>
    %235 = vector.shape_cast %234 : vector<1x128xf32> to vector<128xf32>
    %236 = vector.shape_cast %235 : vector<128xf32> to vector<1x1x128xf32>
    %237 = vector.broadcast %233 : vector<2x8x1xf32> to vector<2x8x128xf32>
    %238 = vector.broadcast %236 : vector<1x1x128xf32> to vector<2x8x128xf32>
    %239 = arith.mulf %237, %238 : vector<2x8x128xf32>
    %240 = arith.addf %232, %239 : vector<2x8x128xf32>
    %241 = vector.extract_strided_slice %0 {offsets = [0, 0, 2], sizes = [2, 8, 1], strides = [1, 1, 1]} : vector<2x8x3xf32> to vector<2x8x1xf32>
    %242 = vector.extract_strided_slice %207 {offsets = [2, 0], sizes = [1, 128], strides = [1, 1]} : vector<3x128xf32> to vector<1x128xf32>
    %243 = vector.shape_cast %242 : vector<1x128xf32> to vector<128xf32>
    %244 = vector.shape_cast %243 : vector<128xf32> to vector<1x1x128xf32>
    %245 = vector.broadcast %241 : vector<2x8x1xf32> to vector<2x8x128xf32>
    %246 = vector.broadcast %244 : vector<1x1x128xf32> to vector<2x8x128xf32>
    %247 = arith.mulf %245, %246 : vector<2x8x128xf32>
    %248 = arith.addf %240, %247 : vector<2x8x128xf32>
    %249 = vector.shape_cast %211 : vector<128xf32> to vector<1x1x128xf32>
    %250 = vector.broadcast %249 : vector<1x1x128xf32> to vector<2x8x128xf32>
    %251 = arith.addf %248, %250 : vector<2x8x128xf32>
    %252 = arith.mulf %251, %251 : vector<2x8x128xf32>
    %253 = arith.mulf %251, %252 : vector<2x8x128xf32>
    %cst_71 = arith.constant 4.471500e-02 : f32
    %254 = vector.broadcast %cst_71 : f32 to vector<2x8x128xf32>
    %255 = arith.mulf %254, %253 : vector<2x8x128xf32>
    %256 = arith.addf %251, %255 : vector<2x8x128xf32>
    %cst_72 = arith.constant 0.797884583 : f32
    %257 = vector.broadcast %cst_72 : f32 to vector<2x8x128xf32>
    %258 = arith.mulf %257, %256 : vector<2x8x128xf32>
    %259 = math.tanh %258 : vector<2x8x128xf32>
    %cst_73 = arith.constant 1.000000e+00 : f32
    %260 = vector.broadcast %cst_73 : f32 to vector<2x8x128xf32>
    %261 = arith.addf %260, %259 : vector<2x8x128xf32>
    %cst_74 = arith.constant 5.000000e-01 : f32
    %262 = vector.broadcast %cst_74 : f32 to vector<2x8x128xf32>
    %263 = arith.mulf %262, %261 : vector<2x8x128xf32>
    %264 = arith.mulf %251, %263 : vector<2x8x128xf32>
    %265 = vector.shape_cast %264 : vector<2x8x128xf32> to vector<16x128xf32>
    %266 = arith.truncf %265 : vector<16x128xf32> to vector<16x128xbf16>
    %c1_75 = arith.constant 1 : index
    %c0_76 = arith.constant 0 : index
    %c0_77 = arith.constant 0 : index
    %267 = vector.load %arg8[%c1_75, %c0_76, %c0_77] : memref<2x128x128xbf16, #tpu.memory_space<vmem>>, vector<1x128x128xbf16>
    %268 = vector.shape_cast %267 : vector<1x128x128xbf16> to vector<128x128xbf16>
    %cst_78 = arith.constant dense<0.000000e+00> : vector<16x128xf32>
    %269 = tpu.matmul %266, %268, %cst_78 {dimension_numbers = #tpu.dot_dimension_numbers<[1], [0], [0], [1], [0, 0, 1, 1], [], []>} : vector<16x128xbf16>, vector<128x128xbf16>, vector<16x128xf32> -> vector<16x128xf32>
    %270 = vector.shape_cast %213 : vector<128xf32> to vector<1x128xf32>
    %271 = vector.broadcast %270 : vector<1x128xf32> to vector<16x128xf32>
    %272 = arith.addf %269, %271 : vector<16x128xf32>
    %273 = arith.addf %205, %272 : vector<16x128xf32>
    %cst_79 = arith.constant dense<0.000000e+00> : vector<16xf32>
    %274 = vector.multi_reduction <add>, %273, %cst_79 [1] : vector<16x128xf32> to vector<16xf32>
    %275 = vector.shape_cast %274 : vector<16xf32> to vector<16x1xf32>
    %276 = arith.mulf %273, %273 : vector<16x128xf32>
    %cst_80 = arith.constant dense<0.000000e+00> : vector<16xf32>
    %277 = vector.multi_reduction <add>, %276, %cst_80 [1] : vector<16x128xf32> to vector<16xf32>
    %278 = vector.shape_cast %277 : vector<16xf32> to vector<16x1xf32>
    %cst_81 = arith.constant 3.125000e-02 : f32
    %279 = vector.broadcast %cst_81 : f32 to vector<16x1xf32>
    %280 = arith.mulf %275, %279 : vector<16x1xf32>
    %cst_82 = arith.constant 3.125000e-02 : f32
    %281 = vector.broadcast %cst_82 : f32 to vector<16x1xf32>
    %282 = arith.mulf %278, %281 : vector<16x1xf32>
    %283 = arith.mulf %280, %280 : vector<16x1xf32>
    %284 = arith.subf %282, %283 : vector<16x1xf32>
    %285 = vector.broadcast %280 : vector<16x1xf32> to vector<16x128xf32>
    %286 = arith.subf %273, %285 : vector<16x128xf32>
    %cst_83 = arith.constant 9.99999974E-6 : f32
    %287 = vector.broadcast %cst_83 : f32 to vector<16x1xf32>
    %288 = arith.addf %284, %287 : vector<16x1xf32>
    %289 = math.rsqrt %288 : vector<16x1xf32>
    %290 = vector.broadcast %289 : vector<16x1xf32> to vector<16x128xf32>
    %291 = arith.mulf %286, %290 : vector<16x128xf32>
    %292 = vector.shape_cast %215 : vector<128xf32> to vector<1x128xf32>
    %293 = vector.broadcast %292 : vector<1x128xf32> to vector<16x128xf32>
    %294 = arith.mulf %291, %293 : vector<16x128xf32>
    %295 = vector.shape_cast %217 : vector<128xf32> to vector<1x128xf32>
    %296 = vector.broadcast %295 : vector<1x128xf32> to vector<16x128xf32>
    %297 = arith.addf %294, %296 : vector<16x128xf32>
    %298 = arith.truncf %297 : vector<16x128xf32> to vector<16x128xbf16>
    %c1_84 = arith.constant 1 : index
    %c0_85 = arith.constant 0 : index
    %c0_86 = arith.constant 0 : index
    %299 = vector.load %arg9[%c1_84, %c0_85, %c0_86] : memref<2x128x384xbf16, #tpu.memory_space<vmem>>, vector<1x128x384xbf16>
    %300 = vector.shape_cast %299 : vector<1x128x384xbf16> to vector<128x384xbf16>
    %cst_87 = arith.constant dense<0.000000e+00> : vector<16x384xf32>
    %301 = tpu.matmul %298, %300, %cst_87 {dimension_numbers = #tpu.dot_dimension_numbers<[1], [0], [0], [1], [0, 0, 1, 1], [], []>} : vector<16x128xbf16>, vector<128x384xbf16>, vector<16x384xf32> -> vector<16x384xf32>
    %c1_88 = arith.constant 1 : index
    %c0_89 = arith.constant 0 : index
    %302 = vector.load %arg10[%c1_88, %c0_89] : memref<2x384xf32, #tpu.memory_space<vmem>>, vector<1x384xf32>
    %303 = vector.shape_cast %302 : vector<1x384xf32> to vector<384xf32>
    %304 = vector.shape_cast %303 : vector<384xf32> to vector<1x384xf32>
    %305 = vector.broadcast %304 : vector<1x384xf32> to vector<16x384xf32>
    %306 = arith.addf %301, %305 : vector<16x384xf32>
    %307 = vector.extract_strided_slice %306 {offsets = [0, 0], sizes = [16, 128], strides = [1, 1]} : vector<16x384xf32> to vector<16x128xf32>
    %308 = vector.shape_cast %307 : vector<16x128xf32> to vector<2x8x128xf32>
    %309 = vector.extract_strided_slice %306 {offsets = [0, 128], sizes = [16, 128], strides = [1, 1]} : vector<16x384xf32> to vector<16x128xf32>
    %310 = vector.shape_cast %309 : vector<16x128xf32> to vector<2x8x128xf32>
    %311 = vector.extract_strided_slice %306 {offsets = [0, 256], sizes = [16, 128], strides = [1, 1]} : vector<16x384xf32> to vector<16x128xf32>
    %312 = vector.shape_cast %311 : vector<16x128xf32> to vector<2x8x128xf32>
    %313 = arith.truncf %308 : vector<2x8x128xf32> to vector<2x8x128xbf16>
    %314 = arith.truncf %310 : vector<2x8x128xf32> to vector<2x8x128xbf16>
    "tpu.trace_start"() <{level = 10 : i32, message = "bqd,bkd->bqk"}> : () -> ()
    %cst_90 = arith.constant dense<0.000000e+00> : vector<2x8x8xf32>
    %315 = tpu.matmul %313, %314, %cst_90 {dimension_numbers = #tpu.dot_dimension_numbers<[2], [2], [1], [1], [0, 0, 0, 1, 1, 1], [0], [0]>} : vector<2x8x128xbf16>, vector<2x8x128xbf16>, vector<2x8x8xf32> -> vector<2x8x8xf32>
    "tpu.trace_stop"() : () -> ()
    %cst_91 = arith.constant 0.176776692 : f32
    %316 = vector.broadcast %cst_91 : f32 to vector<2x8x8xf32>
    %317 = arith.mulf %315, %316 : vector<2x8x8xf32>
    %cst_92 = arith.constant -1.000000e+09 : f32
    %318 = vector.broadcast %cst_92 : f32 to vector<2x8x8xf32>
    %319 = arith.select %15, %317, %318 : vector<2x8x8xi1>, vector<2x8x8xf32>
    %cst_93 = arith.constant dense<0xFF800000> : vector<2x8xf32>
    %320 = vector.multi_reduction <maximumf>, %319, %cst_93 [2] : vector<2x8x8xf32> to vector<2x8xf32>
    %321 = vector.shape_cast %320 : vector<2x8xf32> to vector<2x8x1xf32>
    %322 = vector.broadcast %321 : vector<2x8x1xf32> to vector<2x8x8xf32>
    %323 = arith.subf %319, %322 : vector<2x8x8xf32>
    %324 = math.exp %323 : vector<2x8x8xf32>
    %cst_94 = arith.constant dense<0.000000e+00> : vector<2x8xf32>
    %325 = vector.multi_reduction <add>, %324, %cst_94 [2] : vector<2x8x8xf32> to vector<2x8xf32>
    %326 = vector.shape_cast %325 : vector<2x8xf32> to vector<2x8x1xf32>
    %327 = tpu.reciprocal %326 {approx = true} : vector<2x8x1xf32> -> vector<2x8x1xf32>
    %328 = vector.broadcast %327 : vector<2x8x1xf32> to vector<2x8x8xf32>
    %329 = arith.mulf %324, %328 : vector<2x8x8xf32>
    %330 = arith.truncf %329 : vector<2x8x8xf32> to vector<2x8x8xbf16>
    %331 = arith.truncf %312 : vector<2x8x128xf32> to vector<2x8x128xbf16>
    "tpu.trace_start"() <{level = 10 : i32, message = "bqk,bkd->bqd"}> : () -> ()
    %cst_95 = arith.constant dense<0.000000e+00> : vector<2x8x128xf32>
    %332 = tpu.matmul %330, %331, %cst_95 {dimension_numbers = #tpu.dot_dimension_numbers<[2], [1], [1], [2], [0, 0, 0, 1, 1, 2], [0], [0]>} : vector<2x8x8xbf16>, vector<2x8x128xbf16>, vector<2x8x128xf32> -> vector<2x8x128xf32>
    "tpu.trace_stop"() : () -> ()
    %333 = vector.shape_cast %332 : vector<2x8x128xf32> to vector<16x128xf32>
    %334 = arith.truncf %333 : vector<16x128xf32> to vector<16x128xbf16>
    %c1_96 = arith.constant 1 : index
    %c0_97 = arith.constant 0 : index
    %c0_98 = arith.constant 0 : index
    %335 = vector.load %arg11[%c1_96, %c0_97, %c0_98] : memref<2x128x128xbf16, #tpu.memory_space<vmem>>, vector<1x128x128xbf16>
    %336 = vector.shape_cast %335 : vector<1x128x128xbf16> to vector<128x128xbf16>
    %cst_99 = arith.constant dense<0.000000e+00> : vector<16x128xf32>
    %337 = tpu.matmul %334, %336, %cst_99 {dimension_numbers = #tpu.dot_dimension_numbers<[1], [0], [0], [1], [0, 0, 1, 1], [], []>} : vector<16x128xbf16>, vector<128x128xbf16>, vector<16x128xf32> -> vector<16x128xf32>
    %338 = vector.shape_cast %219 : vector<128xf32> to vector<1x128xf32>
    %339 = vector.broadcast %338 : vector<1x128xf32> to vector<16x128xf32>
    %340 = arith.addf %337, %339 : vector<16x128xf32>
    %341 = arith.addf %273, %340 : vector<16x128xf32>
    %cst_100 = arith.constant dense<0.000000e+00> : vector<16xf32>
    %342 = vector.multi_reduction <add>, %341, %cst_100 [1] : vector<16x128xf32> to vector<16xf32>
    %343 = vector.shape_cast %342 : vector<16xf32> to vector<16x1xf32>
    %344 = arith.mulf %341, %341 : vector<16x128xf32>
    %cst_101 = arith.constant dense<0.000000e+00> : vector<16xf32>
    %345 = vector.multi_reduction <add>, %344, %cst_101 [1] : vector<16x128xf32> to vector<16xf32>
    %346 = vector.shape_cast %345 : vector<16xf32> to vector<16x1xf32>
    %cst_102 = arith.constant 3.125000e-02 : f32
    %347 = vector.broadcast %cst_102 : f32 to vector<16x1xf32>
    %348 = arith.mulf %343, %347 : vector<16x1xf32>
    %cst_103 = arith.constant 3.125000e-02 : f32
    %349 = vector.broadcast %cst_103 : f32 to vector<16x1xf32>
    %350 = arith.mulf %346, %349 : vector<16x1xf32>
    %351 = arith.mulf %348, %348 : vector<16x1xf32>
    %352 = arith.subf %350, %351 : vector<16x1xf32>
    %353 = vector.broadcast %348 : vector<16x1xf32> to vector<16x128xf32>
    %354 = arith.subf %341, %353 : vector<16x128xf32>
    %cst_104 = arith.constant 9.99999974E-6 : f32
    %355 = vector.broadcast %cst_104 : f32 to vector<16x1xf32>
    %356 = arith.addf %352, %355 : vector<16x1xf32>
    %357 = math.rsqrt %356 : vector<16x1xf32>
    %358 = vector.broadcast %357 : vector<16x1xf32> to vector<16x128xf32>
    %359 = arith.mulf %354, %358 : vector<16x128xf32>
    %360 = vector.shape_cast %221 : vector<128xf32> to vector<1x128xf32>
    %361 = vector.broadcast %360 : vector<1x128xf32> to vector<16x128xf32>
    %362 = arith.mulf %359, %361 : vector<16x128xf32>
    %363 = vector.shape_cast %223 : vector<128xf32> to vector<1x128xf32>
    %364 = vector.broadcast %363 : vector<1x128xf32> to vector<16x128xf32>
    %365 = arith.addf %362, %364 : vector<16x128xf32>
    %366 = arith.truncf %365 : vector<16x128xf32> to vector<16x128xbf16>
    %c1_105 = arith.constant 1 : index
    %c0_106 = arith.constant 0 : index
    %c0_107 = arith.constant 0 : index
    %367 = vector.load %arg12[%c1_105, %c0_106, %c0_107] : memref<2x128x128xbf16, #tpu.memory_space<vmem>>, vector<1x128x128xbf16>
    %368 = vector.shape_cast %367 : vector<1x128x128xbf16> to vector<128x128xbf16>
    %cst_108 = arith.constant dense<0.000000e+00> : vector<16x128xf32>
    %369 = tpu.matmul %366, %368, %cst_108 {dimension_numbers = #tpu.dot_dimension_numbers<[1], [0], [0], [1], [0, 0, 1, 1], [], []>} : vector<16x128xbf16>, vector<128x128xbf16>, vector<16x128xf32> -> vector<16x128xf32>
    %c1_109 = arith.constant 1 : index
    %c0_110 = arith.constant 0 : index
    %370 = vector.load %arg13[%c1_109, %c0_110] : memref<2x128xf32, #tpu.memory_space<vmem>>, vector<1x128xf32>
    %371 = vector.shape_cast %370 : vector<1x128xf32> to vector<128xf32>
    %372 = vector.shape_cast %371 : vector<128xf32> to vector<1x128xf32>
    %373 = vector.broadcast %372 : vector<1x128xf32> to vector<16x128xf32>
    %374 = arith.addf %369, %373 : vector<16x128xf32>
    %375 = arith.mulf %374, %374 : vector<16x128xf32>
    %376 = arith.mulf %374, %375 : vector<16x128xf32>
    %cst_111 = arith.constant 4.471500e-02 : f32
    %377 = vector.broadcast %cst_111 : f32 to vector<16x128xf32>
    %378 = arith.mulf %377, %376 : vector<16x128xf32>
    %379 = arith.addf %374, %378 : vector<16x128xf32>
    %cst_112 = arith.constant 0.797884583 : f32
    %380 = vector.broadcast %cst_112 : f32 to vector<16x128xf32>
    %381 = arith.mulf %380, %379 : vector<16x128xf32>
    %382 = math.tanh %381 : vector<16x128xf32>
    %cst_113 = arith.constant 1.000000e+00 : f32
    %383 = vector.broadcast %cst_113 : f32 to vector<16x128xf32>
    %384 = arith.addf %383, %382 : vector<16x128xf32>
    %cst_114 = arith.constant 5.000000e-01 : f32
    %385 = vector.broadcast %cst_114 : f32 to vector<16x128xf32>
    %386 = arith.mulf %385, %384 : vector<16x128xf32>
    %387 = arith.mulf %374, %386 : vector<16x128xf32>
    %388 = arith.truncf %387 : vector<16x128xf32> to vector<16x128xbf16>
    %c1_115 = arith.constant 1 : index
    %c0_116 = arith.constant 0 : index
    %c0_117 = arith.constant 0 : index
    %389 = vector.load %arg14[%c1_115, %c0_116, %c0_117] : memref<2x128x128xbf16, #tpu.memory_space<vmem>>, vector<1x128x128xbf16>
    %390 = vector.shape_cast %389 : vector<1x128x128xbf16> to vector<128x128xbf16>
    %cst_118 = arith.constant dense<0.000000e+00> : vector<16x128xf32>
    %391 = tpu.matmul %388, %390, %cst_118 {dimension_numbers = #tpu.dot_dimension_numbers<[1], [0], [0], [1], [0, 0, 1, 1], [], []>} : vector<16x128xbf16>, vector<128x128xbf16>, vector<16x128xf32> -> vector<16x128xf32>
    %392 = vector.shape_cast %225 : vector<128xf32> to vector<1x128xf32>
    %393 = vector.broadcast %392 : vector<1x128xf32> to vector<16x128xf32>
    %394 = arith.addf %391, %393 : vector<16x128xf32>
    %395 = arith.addf %341, %394 : vector<16x128xf32>
    %396 = arith.truncf %395 : vector<16x128xf32> to vector<16x128xbf16>
    %c0_119 = arith.constant 0 : index
    %c0_120 = arith.constant 0 : index
    %397 = vector.load %arg15[%c0_119, %c0_120] : memref<128x128xbf16, #tpu.memory_space<vmem>>, vector<128x128xbf16>
    %cst_121 = arith.constant dense<0.000000e+00> : vector<16x128xf32>
    %398 = tpu.matmul %396, %397, %cst_121 {dimension_numbers = #tpu.dot_dimension_numbers<[1], [0], [0], [1], [0, 0, 1, 1], [], []>} : vector<16x128xbf16>, vector<128x128xbf16>, vector<16x128xf32> -> vector<16x128xf32>
    %c0_122 = arith.constant 0 : index
    %c0_123 = arith.constant 0 : index
    %399 = vector.load %arg16[%c0_122, %c0_123] : memref<1x128xf32, #tpu.memory_space<vmem>>, vector<1x128xf32>
    %400 = vector.shape_cast %399 : vector<1x128xf32> to vector<128xf32>
    %401 = vector.shape_cast %400 : vector<128xf32> to vector<1x128xf32>
    %402 = vector.broadcast %401 : vector<1x128xf32> to vector<16x128xf32>
    %403 = arith.addf %398, %402 : vector<16x128xf32>
    %404 = vector.shape_cast %403 : vector<16x128xf32> to vector<2x8x128xf32>
    %405 = vector.broadcast %6 : vector<2x8x1xf32> to vector<2x8x128xf32>
    %406 = arith.mulf %404, %405 : vector<2x8x128xf32>
    %c0_124 = arith.constant 0 : index
    %c0_125 = arith.constant 0 : index
    %c0_126 = arith.constant 0 : index
    %407 = vector.load %arg17[%c0_124, %c0_125, %c0_126] : memref<2x8x128xf32, #tpu.memory_space<vmem>>, vector<2x8x128xf32>
    tpu.vector_store %arg17[%c0_124, %c0_125, %c0_126], %406 {strides = array<i32>} : memref<2x8x128xf32, #tpu.memory_space<vmem>>, vector<2x8x128xf32>,
    %c0_127 = arith.constant 0 : index
    %c0_128 = arith.constant 0 : index
    %c0_129 = arith.constant 0 : index
    %408 = vector.load %arg5[%c0_127, %c0_128, %c0_129] : memref<2x8x128xf32, #tpu.memory_space<vmem>>, vector<2x8x128xf32>
    %409 = vector.broadcast %6 : vector<2x8x1xf32> to vector<2x8x128xf32>
    %410 = arith.mulf %408, %409 : vector<2x8x128xf32>
    %c0_130 = arith.constant 0 : index
    %c0_131 = arith.constant 0 : index
    %c0_132 = arith.constant 0 : index
    %411 = vector.load %arg18[%c0_130, %c0_131, %c0_132] : memref<2x8x128xf32, #tpu.memory_space<vmem>>, vector<2x8x128xf32>
    tpu.vector_store %arg18[%c0_130, %c0_131, %c0_132], %410 {strides = array<i32>} : memref<2x8x128xf32, #tpu.memory_space<vmem>>, vector<2x8x128xf32>,
    return
  }
  func.func @transform_0(%arg0: i32) -> (i32, i32, i32) {
    %c0_i32 = arith.constant 0 : i32
    %c0_i32_0 = arith.constant 0 : i32
    %c0_i32_1 = arith.constant 0 : i32
    return %arg0, %c0_i32, %c0_i32_0 : i32, i32, i32
  }
  func.func @transform_1(%arg0: i32) -> (i32, i32, i32) {
    %c0_i32 = arith.constant 0 : i32
    %c0_i32_0 = arith.constant 0 : i32
    %c0_i32_1 = arith.constant 0 : i32
    return %arg0, %c0_i32, %c0_i32_0 : i32, i32, i32
  }
  func.func @transform_2(%arg0: i32) -> (i32, i32, i32) {
    %c0_i32 = arith.constant 0 : i32
    %c0_i32_0 = arith.constant 0 : i32
    %c0_i32_1 = arith.constant 0 : i32
    return %arg0, %c0_i32, %c0_i32_0 : i32, i32, i32
  }
  func.func @transform_3(%arg0: i32) -> (i32, i32, i32) {
    %c0_i32 = arith.constant 0 : i32
    %c0_i32_0 = arith.constant 0 : i32
    %c0_i32_1 = arith.constant 0 : i32
    return %arg0, %c0_i32, %c0_i32_0 : i32, i32, i32
  }
  func.func @transform_4(%arg0: i32) -> (i32, i32, i32) {
    %c0_i32 = arith.constant 0 : i32
    %c0_i32_0 = arith.constant 0 : i32
    %c0_i32_1 = arith.constant 0 : i32
    return %arg0, %c0_i32, %c0_i32_0 : i32, i32, i32
  }
  func.func @transform_5(%arg0: i32) -> (i32, i32, i32) {
    %c0_i32 = arith.constant 0 : i32
    %c0_i32_0 = arith.constant 0 : i32
    %c0_i32_1 = arith.constant 0 : i32
    %c0_i32_2 = arith.constant 0 : i32
    return %c0_i32, %c0_i32_0, %c0_i32_1 : i32, i32, i32
  }
  func.func @transform_6(%arg0: i32) -> (i32, i32, i32) {
    %c0_i32 = arith.constant 0 : i32
    %c0_i32_0 = arith.constant 0 : i32
    %c0_i32_1 = arith.constant 0 : i32
    %c0_i32_2 = arith.constant 0 : i32
    return %c0_i32, %c0_i32_0, %c0_i32_1 : i32, i32, i32
  }
  func.func @transform_7(%arg0: i32) -> (i32, i32, i32) {
    %c0_i32 = arith.constant 0 : i32
    %c0_i32_0 = arith.constant 0 : i32
    %c0_i32_1 = arith.constant 0 : i32
    %c0_i32_2 = arith.constant 0 : i32
    return %c0_i32, %c0_i32_0, %c0_i32_1 : i32, i32, i32
  }
  func.func @transform_8(%arg0: i32) -> (i32, i32, i32) {
    %c0_i32 = arith.constant 0 : i32
    %c0_i32_0 = arith.constant 0 : i32
    %c0_i32_1 = arith.constant 0 : i32
    %c0_i32_2 = arith.constant 0 : i32
    return %c0_i32, %c0_i32_0, %c0_i32_1 : i32, i32, i32
  }
  func.func @transform_9(%arg0: i32) -> (i32, i32) {
    %c0_i32 = arith.constant 0 : i32
    %c0_i32_0 = arith.constant 0 : i32
    %c0_i32_1 = arith.constant 0 : i32
    return %c0_i32, %c0_i32_0 : i32, i32
  }
  func.func @transform_10(%arg0: i32) -> (i32, i32, i32) {
    %c0_i32 = arith.constant 0 : i32
    %c0_i32_0 = arith.constant 0 : i32
    %c0_i32_1 = arith.constant 0 : i32
    %c0_i32_2 = arith.constant 0 : i32
    return %c0_i32, %c0_i32_0, %c0_i32_1 : i32, i32, i32
  }
  func.func @transform_11(%arg0: i32) -> (i32, i32, i32) {
    %c0_i32 = arith.constant 0 : i32
    %c0_i32_0 = arith.constant 0 : i32
    %c0_i32_1 = arith.constant 0 : i32
    %c0_i32_2 = arith.constant 0 : i32
    return %c0_i32, %c0_i32_0, %c0_i32_1 : i32, i32, i32
  }
  func.func @transform_12(%arg0: i32) -> (i32, i32) {
    %c0_i32 = arith.constant 0 : i32
    %c0_i32_0 = arith.constant 0 : i32
    %c0_i32_1 = arith.constant 0 : i32
    return %c0_i32, %c0_i32_0 : i32, i32
  }
  func.func @transform_13(%arg0: i32) -> (i32, i32, i32) {
    %c0_i32 = arith.constant 0 : i32
    %c0_i32_0 = arith.constant 0 : i32
    %c0_i32_1 = arith.constant 0 : i32
    %c0_i32_2 = arith.constant 0 : i32
    return %c0_i32, %c0_i32_0, %c0_i32_1 : i32, i32, i32
  }
  func.func @transform_14(%arg0: i32) -> (i32, i32) {
    %c0_i32 = arith.constant 0 : i32
    %c0_i32_0 = arith.constant 0 : i32
    %c0_i32_1 = arith.constant 0 : i32
    return %c0_i32, %c0_i32_0 : i32, i32
  }
  func.func @transform_15(%arg0: i32) -> (i32, i32) {
    %c0_i32 = arith.constant 0 : i32
    %c0_i32_0 = arith.constant 0 : i32
    %c0_i32_1 = arith.constant 0 : i32
    return %c0_i32, %c0_i32_0 : i32, i32
  }
  func.func @transform_16(%arg0: i32) -> (i32, i32, i32) {
    %c0_i32 = arith.constant 0 : i32
    %c0_i32_0 = arith.constant 0 : i32
    %c0_i32_1 = arith.constant 0 : i32
    return %arg0, %c0_i32, %c0_i32_0 : i32, i32, i32
  }
  func.func @transform_17(%arg0: i32) -> (i32, i32, i32) {
    %c0_i32 = arith.constant 0 : i32
    %c0_i32_0 = arith.constant 0 : i32
    %c0_i32_1 = arith.constant 0 : i32
    return %arg0, %c0_i32, %c0_i32_0 : i32, i32, i32
  }
}

</mosaic_0001>

<llo_original>
// kernel: aux_gpt_forward.1
$region0: #{aux_gpt_forward.1}
  #allocation0 [shape = 'u32[]', space=smem, size = 0x4, offset = 0x4, fixed_abs, tag = 'smem constant byte address 0x4 - core index']
  #allocation1 [shape = 'u32[144,128]{1,0:T(1,128)}', space=vmem, size = 0x12000, scoped, tag = 'internal scratch']
  %s0 = inlined_call_operand.vmem [shape: f32[2,8,3], index: 0, kind: input, shape index: {}]
  %s1 = inlined_call_operand.vmem [shape: f32[2,8,128], index: 1, kind: input, shape index: {}]
  %s2 = inlined_call_operand.vmem [shape: f32[2,8,1], index: 2, kind: input, shape index: {}]
  %s3 = inlined_call_operand.vmem [shape: f32[2,1,8], index: 3, kind: input, shape index: {}]
  %s4 = inlined_call_operand.vmem [shape: f32[2,8,128], index: 4, kind: input, shape index: {}]
  %s5 = inlined_call_operand.vmem [shape: f32[2,3,128], index: 5, kind: input, shape index: {}]
  %s6 = inlined_call_operand.vmem [shape: f32[2,8,128], index: 6, kind: input, shape index: {}]
  %s7 = inlined_call_operand.vmem [shape: bf16[2,128,128], index: 7, kind: input, shape index: {}]
  %s8 = inlined_call_operand.vmem [shape: bf16[2,128,384], index: 8, kind: input, shape index: {}]
  %s9 = inlined_call_operand.vmem [shape: f32[2,384], index: 9, kind: input, shape index: {}]
  %s10 = inlined_call_operand.vmem [shape: bf16[2,128,128], index: 10, kind: input, shape index: {}]
  %s11 = inlined_call_operand.vmem [shape: bf16[2,128,128], index: 11, kind: input, shape index: {}]
  %s12 = inlined_call_operand.vmem [shape: f32[2,128], index: 12, kind: input, shape index: {}]
  %s13 = inlined_call_operand.vmem [shape: bf16[2,128,128], index: 13, kind: input, shape index: {}]
  %s14 = inlined_call_operand.vmem [shape: bf16[128,128], index: 14, kind: input, shape index: {}]
  %s15 = inlined_call_operand.vmem [shape: f32[1,128], index: 15, kind: input, shape index: {}]
  %s16 = inlined_call_operand.vmem [shape: f32[2,8,128], index: 16, kind: output, shape index: {0}]
  %s17 = inlined_call_operand.vmem [shape: f32[2,8,128], index: 17, kind: output, shape index: {1}]
  %18 = xla_tuple %s16, %s17
  %s19 = sld [smem:[#allocation0]]
  $region82: #{aux_gpt_forward.1} parent=0
    _
  %s21 = ssub.s32 1, %s19
  %s22 = scalar_select 0, %s21, %s19
  // Predicated region
  $region2: #{aux_gpt_forward.1} parent=0 // pred_check
    _
  $region3: #{aux_gpt_forward.1} parent=0 // pred_check_branch
    %24 = sbr.rel (0) target = $region5
  $region4: #{aux_gpt_forward.1} parent=0 // pred_region
    _
  $region5: #{aux_gpt_forward.1} parent=0 // pred_fallthru
    _
  // Predicated region
  $region6: #{aux_gpt_forward.1} parent=0 // pred_check
    _
  $region7: #{aux_gpt_forward.1} parent=0 // pred_check_branch
    %26 = sbr.rel (0) target = $region9
  $region8: #{aux_gpt_forward.1} parent=0 // pred_region
    _
  $region9: #{aux_gpt_forward.1} parent=0 // pred_fallthru
    _
  // Predicated region
  $region10: #{aux_gpt_forward.1} parent=0 // pred_check
    _
  $region11: #{aux_gpt_forward.1} parent=0 // pred_check_branch
    %28 = sbr.rel (0) target = $region13
  $region12: #{aux_gpt_forward.1} parent=0 // pred_region
    _
  $region13: #{aux_gpt_forward.1} parent=0 // pred_fallthru
    _
  // Predicated region
  $region14: #{aux_gpt_forward.1} parent=0 // pred_check
    _
  $region15: #{aux_gpt_forward.1} parent=0 // pred_check_branch
    %30 = sbr.rel (0) target = $region17
  $region16: #{aux_gpt_forward.1} parent=0 // pred_region
    _
  $region17: #{aux_gpt_forward.1} parent=0 // pred_fallthru
    _
  // Predicated region
  $region18: #{aux_gpt_forward.1} parent=0 // pred_check
    _
  $region19: #{aux_gpt_forward.1} parent=0 // pred_check_branch
    %32 = sbr.rel (0) target = $region21
  $region20: #{aux_gpt_forward.1} parent=0 // pred_region
    _
  $region21: #{aux_gpt_forward.1} parent=0 // pred_fallthru
    _
  // Predicated region
  $region22: #{aux_gpt_forward.1} parent=0 // pred_check
    _
  $region23: #{aux_gpt_forward.1} parent=0 // pred_check_branch
    %34 = sbr.rel (0) target = $region25
  $region24: #{aux_gpt_forward.1} parent=0 // pred_region
    _
  $region25: #{aux_gpt_forward.1} parent=0 // pred_fallthru
    _
  // Predicated region
  $region26: #{aux_gpt_forward.1} parent=0 // pred_check
    _
  $region27: #{aux_gpt_forward.1} parent=0 // pred_check_branch
    %36 = sbr.rel (0) target = $region29
  $region28: #{aux_gpt_forward.1} parent=0 // pred_region
    _
  $region29: #{aux_gpt_forward.1} parent=0 // pred_fallthru
    _
  // Predicated region
  $region30: #{aux_gpt_forward.1} parent=0 // pred_check
    _
  $region31: #{aux_gpt_forward.1} parent=0 // pred_check_branch
    %38 = sbr.rel (0) target = $region33
  $region32: #{aux_gpt_forward.1} parent=0 // pred_region
    _
  $region33: #{aux_gpt_forward.1} parent=0 // pred_fallthru
    _
  // Predicated region
  $region34: #{aux_gpt_forward.1} parent=0 // pred_check
    _
  $region35: #{aux_gpt_forward.1} parent=0 // pred_check_branch
    %40 = sbr.rel (0) target = $region37
  $region36: #{aux_gpt_forward.1} parent=0 // pred_region
    _
  $region37: #{aux_gpt_forward.1} parent=0 // pred_fallthru
    _
  // Predicated region
  $region38: #{aux_gpt_forward.1} parent=0 // pred_check
    _
  $region39: #{aux_gpt_forward.1} parent=0 // pred_check_branch
    %42 = sbr.rel (0) target = $region41
  $region40: #{aux_gpt_forward.1} parent=0 // pred_region
    _
  $region41: #{aux_gpt_forward.1} parent=0 // pred_fallthru
    _
  // Predicated region
  $region42: #{aux_gpt_forward.1} parent=0 // pred_check
    _
  $region43: #{aux_gpt_forward.1} parent=0 // pred_check_branch
    %44 = sbr.rel (0) target = $region45
  $region44: #{aux_gpt_forward.1} parent=0 // pred_region
    _
  $region45: #{aux_gpt_forward.1} parent=0 // pred_fallthru
    _
  // Predicated region
  $region46: #{aux_gpt_forward.1} parent=0 // pred_check
    _
  $region47: #{aux_gpt_forward.1} parent=0 // pred_check_branch
    %46 = sbr.rel (0) target = $region49
  $region48: #{aux_gpt_forward.1} parent=0 // pred_region
    _
  $region49: #{aux_gpt_forward.1} parent=0 // pred_fallthru
    _
  // Predicated region
  $region50: #{aux_gpt_forward.1} parent=0 // pred_check
    _
  $region51: #{aux_gpt_forward.1} parent=0 // pred_check_branch
    %48 = sbr.rel (0) target = $region53
  $region52: #{aux_gpt_forward.1} parent=0 // pred_region
    _
  $region53: #{aux_gpt_forward.1} parent=0 // pred_fallthru
    _
  // Predicated region
  $region54: #{aux_gpt_forward.1} parent=0 // pred_check
    _
  $region55: #{aux_gpt_forward.1} parent=0 // pred_check_branch
    %50 = sbr.rel (0) target = $region57
  $region56: #{aux_gpt_forward.1} parent=0 // pred_region
    _
  $region57: #{aux_gpt_forward.1} parent=0 // pred_fallthru
    _
  // Predicated region
  $region58: #{aux_gpt_forward.1} parent=0 // pred_check
    _
  $region59: #{aux_gpt_forward.1} parent=0 // pred_check_branch
    %52 = sbr.rel (0) target = $region61
  $region60: #{aux_gpt_forward.1} parent=0 // pred_region
    _
  $region61: #{aux_gpt_forward.1} parent=0 // pred_fallthru
    _
  // Predicated region
  $region62: #{aux_gpt_forward.1} parent=0 // pred_check
    _
  $region63: #{aux_gpt_forward.1} parent=0 // pred_check_branch
    %54 = sbr.rel (0) target = $region65
  $region64: #{aux_gpt_forward.1} parent=0 // pred_region
    _
  $region65: #{aux_gpt_forward.1} parent=0 // pred_fallthru
    _
  %v56 = vld [vmem:[%s0] sm:$0xff]
  %v57 = vld [vmem:[%s0 + $0x8] sm:$0xff]
  %v58 = vld [vmem:[%s1] sm:$0xff]
  %v59 = vld [vmem:[%s1 + $0x8] sm:$0xff]
  %v60 = vld [vmem:[%s3] sm:$0x1]
  %v61 = vld [vmem:[%s3 + $0x1] sm:$0x1]
  %v62 = vld [vmem:[%s2] sm:$0xff]
  %v63 = vld [vmem:[%s2 + $0x8] sm:$0xff]
  %v64 = vsub.f32 1.0, %v62
  %v65 = vsub.f32 1.0, %v63
  %v66 = vlaneseq
  %v67 = vshrl.u32 %v66, 7
  %v68 = vlaneseq
  %v69 = vand.u32 %v68, 127
  %vm70 = vcmp.le.s32.totalorder %v69, %v67
  %vm71 = vcmp.lt.f32.partialorder %v60, 0.5
  %vm72 = vcmp.lt.f32.partialorder %v61, 0.5
  %v73 = vsel %vm70, 1, 0
  %vm74 = vcmp.eq.s32.totalorder %v73, 1
  %v75 = vsel %vm71, 1, 0
  %v76 = vsel %vm72, 1, 0
  %v77 = vlaneseq
  %v78 = vshrl.u32 %v77, 7
  %v79 = vsub.s32 0, %v78
  %v80 = vrot.slane %v75, %v79
  %v81 = vlaneseq
  %v82 = vshrl.u32 %v81, 7
  %v83 = vsub.s32 0, %v82
  %v84 = vrot.slane %v76, %v83
  %vm85 = vcmp.eq.s32.totalorder %v80, 1
  %vm86 = vcmp.eq.s32.totalorder %v84, 1
  %vm87 = vmand %vm74, %vm85
  %vm88 = vmand %vm74, %vm86
  %v89 = vld [vmem:[%s5] sm:$0x7]
  %v90 = vld [vmem:[%s6] sm:$0xff]
  %92 = vset.pattern.permute.xlu0 0
  %93 = vperm.xlu0 %92, %v56
  %v94 = vpop.permute.xlu0 %93
  %97 = vset.pattern.permute.xlu0 0
  %98 = vperm.xlu0 %97, %v57
  %v99 = vpop.permute.xlu0 %98
  %v101 = vlaneseq
  %v102 = vshrl.u32 %v101, 7
  %v103 = vsub.s32 0, %v102
  %v104 = vrot.slane %v89, %v103
  %v105 = vmul.f32 %v94, %v104
  %v106 = vmul.f32 %v99, %v104
  %107 = vset.pattern.permute.xlu0 1
  %108 = vperm.xlu0 %107, %v56
  %v109 = vpop.permute.xlu0 %108
  %111 = vset.pattern.permute.xlu0 1
  %112 = vperm.xlu0 %111, %v57
  %v113 = vpop.permute.xlu0 %112
  %v115 = vlaneseq
  %v116 = vshrl.u32 %v115, 7
  %v117 = vsub.s32 1, %v116
  %v118 = vrot.slane %v89, %v117
  %v119 = vmul.f32 %v109, %v118
  %v120 = vmul.f32 %v113, %v118
  %v121 = vadd.f32 %v105, %v119
  %v122 = vadd.f32 %v106, %v120
  %123 = vset.pattern.permute.xlu0 2
  %124 = vperm.xlu0 %123, %v56
  %v125 = vpop.permute.xlu0 %124
  %127 = vset.pattern.permute.xlu0 2
  %128 = vperm.xlu0 %127, %v57
  %v129 = vpop.permute.xlu0 %128
  %v131 = vlaneseq
  %v132 = vshrl.u32 %v131, 7
  %v133 = vsub.s32 2, %v132
  %v134 = vrot.slane %v89, %v133
  %v135 = vmul.f32 %v125, %v134
  %v136 = vmul.f32 %v129, %v134
  %v137 = vadd.f32 %v121, %v135
  %v138 = vadd.f32 %v122, %v136
  %v139 = vlaneseq
  %v140 = vshrl.u32 %v139, 7
  %v141 = vsub.s32 0, %v140
  %v142 = vrot.slane %v90, %v141
  %v143 = vadd.f32 %v137, %v142
  %v144 = vadd.f32 %v138, %v142
  %v145 = vmul.f32 %v143, %v143
  %v146 = vmul.f32 %v144, %v144
  %v147 = vmul.f32 %v143, %v145
  %v148 = vmul.f32 %v144, %v146
  %v149 = vmul.f32 %v147, 0.044715
  %v150 = vmul.f32 %v148, 0.044715
  %v151 = vadd.f32 %v143, %v149
  %v152 = vadd.f32 %v144, %v150
  %v153 = vmul.f32 %v151, 0.7978846
  %v154 = vmul.f32 %v152, 0.7978846
  %v155 = vtanh.pop %v153
  %v156 = vtanh.pop %v154
  %v157 = vadd.f32 %v155, 1.0
  %v158 = vadd.f32 %v156, 1.0
  %v159 = vmul.f32 %v157, 0.5
  %v160 = vmul.f32 %v158, 0.5
  %v161 = vmul.f32 %v143, %v159
  %v162 = vmul.f32 %v144, %v160
  %v163 = vpack.c.bf16 %v162, %v161
  %v164 = vld [vmem:[%s7] sm:$0xf]
  %v165 = vld [vmem:[%s7 + $0x4] sm:$0xf]
  %v166 = vld [vmem:[%s7 + $0x8] sm:$0xf]
  %v167 = vld [vmem:[%s7 + $0xc] sm:$0xf]
  %v168 = vld [vmem:[%s7 + $0x10] sm:$0xf]
  %v169 = vld [vmem:[%s7 + $0x14] sm:$0xf]
  %v170 = vld [vmem:[%s7 + $0x18] sm:$0xf]
  %v171 = vld [vmem:[%s7 + $0x1c] sm:$0xf]
  %v172 = vld [vmem:[%s7 + $0x20] sm:$0xf]
  %v173 = vld [vmem:[%s7 + $0x24] sm:$0xf]
  %v174 = vld [vmem:[%s7 + $0x28] sm:$0xf]
  %v175 = vld [vmem:[%s7 + $0x2c] sm:$0xf]
  %v176 = vld [vmem:[%s7 + $0x30] sm:$0xf]
  %v177 = vld [vmem:[%s7 + $0x34] sm:$0xf]
  %v178 = vld [vmem:[%s7 + $0x38] sm:$0xf]
  %v179 = vld [vmem:[%s7 + $0x3c] sm:$0xf]
  %v180 = vlaneseq
  %v181 = vshrl.u32 %v180, 7
  %v182 = vsub.s32 1, %v181
  %v183 = vrot.slane %v90, %v182
  %v200 = vunpack.c.l.b16 %v164
  %v201 = vunpack.c.l.b16 %v165
  %v202 = vunpack.c.l.b16 %v166
  %v203 = vunpack.c.l.b16 %v167
  %v204 = vunpack.c.l.b16 %v168
  %v205 = vunpack.c.l.b16 %v169
  %v206 = vunpack.c.l.b16 %v170
  %v207 = vunpack.c.l.b16 %v171
  %v208 = vunpack.c.l.b16 %v172
  %v209 = vunpack.c.l.b16 %v173
  %v210 = vunpack.c.l.b16 %v174
  %v211 = vunpack.c.l.b16 %v175
  %v212 = vunpack.c.l.b16 %v176
  %v213 = vunpack.c.l.b16 %v177
  %v214 = vunpack.c.l.b16 %v178
  %v215 = vunpack.c.l.b16 %v179
  %v216 = vpack.c.b16 %v201, %v200
  %v217 = vpack.c.b16 %v203, %v202
  %v218 = vpack.c.b16 %v205, %v204
  %v219 = vpack.c.b16 %v207, %v206
  %v220 = vpack.c.b16 %v209, %v208
  %v221 = vpack.c.b16 %v211, %v210
  %v222 = vpack.c.b16 %v213, %v212
  %v223 = vpack.c.b16 %v215, %v214
  %232 = vmatprep.subr.bf16.mxu0 0
  %233 = vmatpush1.bf16.msra.mxu0 %v223
  %234 = vmatprep.subr.bf16.mxu0 0
  %235 = vmatpush1.bf16.msra.mxu0 %v222
  %236 = vmatprep.subr.bf16.mxu0 0
  %237 = vmatpush1.bf16.msra.mxu0 %v221
  %238 = vmatprep.subr.bf16.mxu0 0
  %239 = vmatpush1.bf16.msra.mxu0 %v220
  %240 = vmatprep.subr.bf16.mxu0 0
  %241 = vmatpush1.bf16.msra.mxu0 %v219
  %242 = vmatprep.subr.bf16.mxu0 0
  %243 = vmatpush1.bf16.msra.mxu0 %v218
  %244 = vmatprep.subr.bf16.mxu0 0
  %245 = vmatpush1.bf16.msra.mxu0 %v217
  %246 = vmatprep.subr.bf16.mxu0 0
  %247 = vmatpush1.bf16.msra.mxu0 %v216
  %248 = vmatprep.subr.bf16.mxu0 0
  %249 = vmatpush2.bf16.msra.mxu0 0
  %250 = vmatprep.subr.bf16.mxu0 0
  %251 = vmatpush2.bf16.msra.mxu0 0
  %252 = vmatprep.subr.bf16.mxu0 0
  %253 = vmatpush2.bf16.msra.mxu0 0
  %254 = vmatprep.subr.bf16.mxu0 0
  %255 = vmatpush2.bf16.msra.mxu0 0
  %256 = vmatprep.subr.bf16.mxu0 0
  %257 = vmatpush2.bf16.msra.mxu0 0
  %258 = vmatprep.subr.bf16.mxu0 0
  %259 = vmatpush2.bf16.msra.mxu0 0
  %260 = vmatprep.subr.bf16.mxu0 0
  %261 = vmatpush2.bf16.msra.mxu0 0
  %262 = vmatprep.subr.bf16.mxu0 0
  %263 = vmatpush2.bf16.msra.mxu0 0
  %264 = vmatprep.mubr.bf16.mxu0 0
  %265 = vmatmul.mubr.bf16.gmra.mxu0 %v163
  %v266 = vpop.f32.mrf.mxu0
  %v267 = vadd.f32 %v183, %v266
  %v268 = vpop.f32.mrf.mxu0
  %v269 = vpop.f32.mrf.mxu0
  %v270 = vadd.f32 %v183, %v269
  %v271 = vpop.f32.mrf.mxu0
  %272 = vdwg.mxu0
  %v273 = vadd.f32 %v58, %v267
  %v274 = vadd.f32 %v59, %v270
  %275 = vadd.xlane.f32.xlu0 %v273
  %v276 = vpop.xlane.xlu0 %275
  %277 = vadd.xlane.f32.xlu0 %v274
  %v278 = vpop.xlane.xlu0 %277
  %v279 = vmul.f32 %v273, %v273
  %v280 = vmul.f32 %v274, %v274
  %281 = vadd.xlane.f32.xlu0 %v279
  %v282 = vpop.xlane.xlu0 %281
  %283 = vadd.xlane.f32.xlu0 %v280
  %v284 = vpop.xlane.xlu0 %283
  %v285 = vmul.f32 %v276, 0.03125
  %v286 = vmul.f32 %v278, 0.03125
  %v287 = vmul.f32 %v282, 0.03125
  %v288 = vmul.f32 %v284, 0.03125
  %v289 = vmul.f32 %v285, %v285
  %v290 = vmul.f32 %v286, %v286
  %v291 = vsub.f32 %v287, %v289
  %v292 = vsub.f32 %v288, %v290
  %v293 = vsub.f32 %v273, %v285
  %v294 = vsub.f32 %v274, %v286
  %v295 = vadd.f32 %v291, 1e-05
  %v296 = vadd.f32 %v292, 1e-05
  %v297 = vrsqrt.pop %v295
  %v298 = vrsqrt.pop %v296
  %v299 = vmul.f32 %v293, %v297
  %v300 = vmul.f32 %v294, %v298
  %v301 = vlaneseq
  %v302 = vshrl.u32 %v301, 7
  %v303 = vsub.s32 2, %v302
  %v304 = vrot.slane %v90, %v303
  %v305 = vmul.f32 %v299, %v304
  %v306 = vmul.f32 %v300, %v304
  %v307 = vlaneseq
  %v308 = vshrl.u32 %v307, 7
  %v309 = vsub.s32 3, %v308
  %v310 = vrot.slane %v90, %v309
  %v311 = vadd.f32 %v305, %v310
  %v312 = vadd.f32 %v306, %v310
  %v313 = vpack.c.bf16 %v312, %v311
  %v314 = vld [vmem:[%s8] sm:$0xff]
  %v315 = vld [vmem:[%s8 + $0x8] sm:$0xf]
  %v316 = vld [vmem:[%s8 + $0xc] sm:$0xff]
  %v317 = vld [vmem:[%s8 + $0x14] sm:$0xf]
  %v318 = vld [vmem:[%s8 + $0x18] sm:$0xff]
  %v319 = vld [vmem:[%s8 + $0x20] sm:$0xf]
  %v320 = vld [vmem:[%s8 + $0x24] sm:$0xff]
  %v321 = vld [vmem:[%s8 + $0x2c] sm:$0xf]
  %v322 = vld [vmem:[%s8 + $0x30] sm:$0xff]
  %v323 = vld [vmem:[%s8 + $0x38] sm:$0xf]
  %v324 = vld [vmem:[%s8 + $0x3c] sm:$0xff]
  %v325 = vld [vmem:[%s8 + $0x44] sm:$0xf]
  %v326 = vld [vmem:[%s8 + $0x48] sm:$0xff]
  %v327 = vld [vmem:[%s8 + $0x50] sm:$0xf]
  %v328 = vld [vmem:[%s8 + $0x54] sm:$0xff]
  %v329 = vld [vmem:[%s8 + $0x5c] sm:$0xf]
  %v330 = vld [vmem:[%s8 + $0x60] sm:$0xff]
  %v331 = vld [vmem:[%s8 + $0x68] sm:$0xf]
  %v332 = vld [vmem:[%s8 + $0x6c] sm:$0xff]
  %v333 = vld [vmem:[%s8 + $0x74] sm:$0xf]
  %v334 = vld [vmem:[%s8 + $0x78] sm:$0xff]
  %v335 = vld [vmem:[%s8 + $0x80] sm:$0xf]
  %v336 = vld [vmem:[%s8 + $0x84] sm:$0xff]
  %v337 = vld [vmem:[%s8 + $0x8c] sm:$0xf]
  %v338 = vld [vmem:[%s8 + $0x90] sm:$0xff]
  %v339 = vld [vmem:[%s8 + $0x98] sm:$0xf]
  %v340 = vld [vmem:[%s8 + $0x9c] sm:$0xff]
  %v341 = vld [vmem:[%s8 + $0xa4] sm:$0xf]
  %v342 = vld [vmem:[%s8 + $0xa8] sm:$0xff]
  %v343 = vld [vmem:[%s8 + $0xb0] sm:$0xf]
  %v344 = vld [vmem:[%s8 + $0xb4] sm:$0xff]
  %v345 = vld [vmem:[%s8 + $0xbc] sm:$0xf]
  %v346 = vld [vmem:[%s9] ss:$2 sm:$0x7]
  %v348 = vlaneseq
  %v349 = vshrl.u32 %v348, 7
  %v350 = vsub.s32 0, %v349
  %v351 = vrot.slane %v346, %v350
  %v352 = vlaneseq
  %v353 = vshrl.u32 %v352, 7
  %v354 = vsub.s32 1, %v353
  %v355 = vrot.slane %v346, %v354
  %v356 = vlaneseq
  %v357 = vshrl.u32 %v356, 7
  %v358 = vsub.s32 2, %v357
  %v359 = vrot.slane %v346, %v358
  %v395 = vunpack.c.l.b16 %v314
  %v396 = vunpack.c.h.b16 %v314
  %v397 = vunpack.c.l.b16 %v315
  %v398 = vunpack.c.l.b16 %v316
  %v399 = vunpack.c.h.b16 %v316
  %v400 = vunpack.c.l.b16 %v317
  %v401 = vunpack.c.l.b16 %v318
  %v402 = vunpack.c.h.b16 %v318
  %v403 = vunpack.c.l.b16 %v319
  %v404 = vunpack.c.l.b16 %v320
  %v405 = vunpack.c.h.b16 %v320
  %v406 = vunpack.c.l.b16 %v321
  %v407 = vunpack.c.l.b16 %v322
  %v408 = vunpack.c.h.b16 %v322
  %v409 = vunpack.c.l.b16 %v323
  %v410 = vunpack.c.l.b16 %v324
  %v411 = vunpack.c.h.b16 %v324
  %v412 = vunpack.c.l.b16 %v325
  %v413 = vunpack.c.l.b16 %v326
  %v414 = vunpack.c.h.b16 %v326
  %v415 = vunpack.c.l.b16 %v327
  %v416 = vunpack.c.l.b16 %v328
  %v417 = vunpack.c.h.b16 %v328
  %v418 = vunpack.c.l.b16 %v329
  %v419 = vunpack.c.l.b16 %v330
  %v420 = vunpack.c.h.b16 %v330
  %v421 = vunpack.c.l.b16 %v331
  %v422 = vunpack.c.l.b16 %v332
  %v423 = vunpack.c.h.b16 %v332
  %v424 = vunpack.c.l.b16 %v333
  %v425 = vunpack.c.l.b16 %v334
  %v426 = vunpack.c.h.b16 %v334
  %v427 = vunpack.c.l.b16 %v335
  %v428 = vunpack.c.l.b16 %v336
  %v429 = vunpack.c.h.b16 %v336
  %v430 = vunpack.c.l.b16 %v337
  %v431 = vunpack.c.l.b16 %v338
  %v432 = vunpack.c.h.b16 %v338
  %v433 = vunpack.c.l.b16 %v339
  %v434 = vunpack.c.l.b16 %v340
  %v435 = vunpack.c.h.b16 %v340
  %v436 = vunpack.c.l.b16 %v341
  %v437 = vunpack.c.l.b16 %v342
  %v438 = vunpack.c.h.b16 %v342
  %v439 = vunpack.c.l.b16 %v343
  %v440 = vunpack.c.l.b16 %v344
  %v441 = vunpack.c.h.b16 %v344
  %v442 = vunpack.c.l.b16 %v345
  %v443 = vpack.c.b16 %v398, %v395
  %v444 = vpack.c.b16 %v399, %v396
  %v445 = vpack.c.b16 %v400, %v397
  %v446 = vpack.c.b16 %v404, %v401
  %v447 = vpack.c.b16 %v405, %v402
  %v448 = vpack.c.b16 %v406, %v403
  %v449 = vpack.c.b16 %v410, %v407
  %v450 = vpack.c.b16 %v411, %v408
  %v451 = vpack.c.b16 %v412, %v409
  %v452 = vpack.c.b16 %v416, %v413
  %v453 = vpack.c.b16 %v417, %v414
  %v454 = vpack.c.b16 %v418, %v415
  %v455 = vpack.c.b16 %v422, %v419
  %v456 = vpack.c.b16 %v423, %v420
  %v457 = vpack.c.b16 %v424, %v421
  %v458 = vpack.c.b16 %v428, %v425
  %v459 = vpack.c.b16 %v429, %v426
  %v460 = vpack.c.b16 %v430, %v427
  %v461 = vpack.c.b16 %v434, %v431
  %v462 = vpack.c.b16 %v435, %v432
  %v463 = vpack.c.b16 %v436, %v433
  %v464 = vpack.c.b16 %v440, %v437
  %v465 = vpack.c.b16 %v441, %v438
  %v466 = vpack.c.b16 %v442, %v439
  %491 = vmatprep.subr.bf16.mxu0 %v465
  %492 = vmatpush1.bf16.msra.mxu0 %v464
  %493 = vmatprep.subr.bf16.mxu0 %v462
  %494 = vmatpush1.bf16.msra.mxu0 %v461
  %495 = vmatprep.subr.bf16.mxu0 %v459
  %496 = vmatpush1.bf16.msra.mxu0 %v458
  %497 = vmatprep.subr.bf16.mxu0 %v456
  %498 = vmatpush1.bf16.msra.mxu0 %v455
  %499 = vmatprep.subr.bf16.mxu0 %v453
  %500 = vmatpush1.bf16.msra.mxu0 %v452
  %501 = vmatprep.subr.bf16.mxu0 %v450
  %502 = vmatpush1.bf16.msra.mxu0 %v449
  %503 = vmatprep.subr.bf16.mxu0 %v447
  %504 = vmatpush1.bf16.msra.mxu0 %v446
  %505 = vmatprep.subr.bf16.mxu0 %v444
  %506 = vmatpush1.bf16.msra.mxu0 %v443
  %507 = vmatprep.subr.bf16.mxu0 0
  %508 = vmatpush2.bf16.msra.mxu0 0
  %509 = vmatprep.subr.bf16.mxu0 0
  %510 = vmatpush2.bf16.msra.mxu0 0
  %511 = vmatprep.subr.bf16.mxu0 0
  %512 = vmatpush2.bf16.msra.mxu0 0
  %513 = vmatprep.subr.bf16.mxu0 0
  %514 = vmatpush2.bf16.msra.mxu0 0
  %515 = vmatprep.subr.bf16.mxu0 0
  %516 = vmatpush2.bf16.msra.mxu0 0
  %517 = vmatprep.subr.bf16.mxu0 0
  %518 = vmatpush2.bf16.msra.mxu0 0
  %519 = vmatprep.subr.bf16.mxu0 0
  %520 = vmatpush2.bf16.msra.mxu0 0
  %521 = vmatprep.subr.bf16.mxu0 0
  %522 = vmatpush2.bf16.msra.mxu0 0
  %523 = vmatprep.mubr.bf16.mxu0 0
  %524 = vmatmul.mubr.bf16.gmra.mxu0 %v313
  %v525 = vpop.f32.mrf.mxu0
  %v526 = vadd.f32 %v351, %v525
  %v527 = vpop.f32.mrf.mxu0
  %v528 = vadd.f32 %v355, %v527
  %v529 = vpop.f32.mrf.mxu0
  %v530 = vadd.f32 %v351, %v529
  %v531 = vpop.f32.mrf.mxu0
  %v532 = vadd.f32 %v355, %v531
  %533 = vdwg.mxu0
  %534 = vmatprep.subr.bf16.mxu0 0
  %535 = vmatpush1.bf16.msra.mxu0 %v466
  %536 = vmatprep.subr.bf16.mxu0 0
  %537 = vmatpush1.bf16.msra.mxu0 %v463
  %538 = vmatprep.subr.bf16.mxu0 0
  %539 = vmatpush1.bf16.msra.mxu0 %v460
  %540 = vmatprep.subr.bf16.mxu0 0
  %541 = vmatpush1.bf16.msra.mxu0 %v457
  %542 = vmatprep.subr.bf16.mxu0 0
  %543 = vmatpush1.bf16.msra.mxu0 %v454
  %544 = vmatprep.subr.bf16.mxu0 0
  %545 = vmatpush1.bf16.msra.mxu0 %v451
  %546 = vmatprep.subr.bf16.mxu0 0
  %547 = vmatpush1.bf16.msra.mxu0 %v448
  %548 = vmatprep.subr.bf16.mxu0 0
  %549 = vmatpush1.bf16.msra.mxu0 %v445
  %550 = vmatprep.subr.bf16.mxu0 0
  %551 = vmatpush2.bf16.msra.mxu0 0
  %552 = vmatprep.subr.bf16.mxu0 0
  %553 = vmatpush2.bf16.msra.mxu0 0
  %554 = vmatprep.subr.bf16.mxu0 0
  %555 = vmatpush2.bf16.msra.mxu0 0
  %556 = vmatprep.subr.bf16.mxu0 0
  %557 = vmatpush2.bf16.msra.mxu0 0
  %558 = vmatprep.subr.bf16.mxu0 0
  %559 = vmatpush2.bf16.msra.mxu0 0
  %560 = vmatprep.subr.bf16.mxu0 0
  %561 = vmatpush2.bf16.msra.mxu0 0
  %562 = vmatprep.subr.bf16.mxu0 0
  %563 = vmatpush2.bf16.msra.mxu0 0
  %564 = vmatprep.subr.bf16.mxu0 0
  %565 = vmatpush2.bf16.msra.mxu0 0
  %566 = vmatprep.mubr.bf16.mxu0 0
  %567 = vmatmul.mubr.bf16.gmra.mxu0 %v313
  %v568 = vpop.f32.mrf.mxu0
  %v569 = vadd.f32 %v359, %v568
  %v570 = vpop.f32.mrf.mxu0
  %v571 = vpop.f32.mrf.mxu0
  %v572 = vadd.f32 %v359, %v571
  %v573 = vpop.f32.mrf.mxu0
  %574 = vdwg.mxu0
  %v575 = vpack.c.bf16 %v526, %v526
  %v576 = vpack.c.bf16 %v530, %v530
  %v577 = vpack.c.bf16 %v528, %v528
  %v578 = vpack.c.bf16 %v532, %v532
  %579 = vmatprep.subr.bf16.mxu0 0
  %580 = vmatpush1.bf16.xpose.msra.mxu0 0
  %581 = vmatprep.subr.bf16.mxu0 0
  %582 = vmatpush1.bf16.xpose.msra.mxu0 0
  %583 = vmatprep.subr.bf16.mxu0 0
  %584 = vmatpush1.bf16.xpose.msra.mxu0 0
  %585 = vmatprep.subr.bf16.mxu0 0
  %586 = vmatpush1.bf16.xpose.msra.mxu0 0
  %587 = vmatprep.subr.bf16.mxu0 0
  %588 = vmatpush1.bf16.xpose.msra.mxu0 0
  %589 = vmatprep.subr.bf16.mxu0 0
  %590 = vmatpush1.bf16.xpose.msra.mxu0 0
  %591 = vmatprep.subr.bf16.mxu0 0
  %592 = vmatpush1.bf16.xpose.msra.mxu0 0
  %593 = vmatprep.subr.bf16.mxu0 0
  %594 = vmatpush1.bf16.xpose.msra.mxu0 %v577
  %595 = vmatprep.subr.bf16.mxu0 0
  %596 = vmatpush2.bf16.xpose.msra.mxu0 0
  %597 = vmatprep.subr.bf16.mxu0 0
  %598 = vmatpush2.bf16.xpose.msra.mxu0 0
  %599 = vmatprep.subr.bf16.mxu0 0
  %600 = vmatpush2.bf16.xpose.msra.mxu0 0
  %601 = vmatprep.subr.bf16.mxu0 0
  %602 = vmatpush2.bf16.xpose.msra.mxu0 0
  %603 = vmatprep.subr.bf16.mxu0 0
  %604 = vmatpush2.bf16.xpose.msra.mxu0 0
  %605 = vmatprep.subr.bf16.mxu0 0
  %606 = vmatpush2.bf16.xpose.msra.mxu0 0
  %607 = vmatprep.subr.bf16.mxu0 0
  %608 = vmatpush2.bf16.xpose.msra.mxu0 0
  %609 = vmatprep.subr.bf16.mxu0 0
  %610 = vmatpush2.bf16.xpose.msra.mxu0 0
  %611 = vmatprep.mubr.bf16.mxu0 0
  %612 = vmatmul.mubr.bf16.gmra.mxu0 %v575
  %v613 = vpop.f32.mrf.mxu0
  %v614 = vadd.f32 0.0, %v613
  %v615 = vpop.f32.mrf.mxu0
  %v616 = vpop.f32.mrf.mxu0
  %v617 = vpop.f32.mrf.mxu0
  %618 = vdwg.mxu0
  %619 = vmatprep.subr.bf16.mxu0 0
  %620 = vmatpush1.bf16.xpose.msra.mxu0 0
  %621 = vmatprep.subr.bf16.mxu0 0
  %622 = vmatpush1.bf16.xpose.msra.mxu0 0
  %623 = vmatprep.subr.bf16.mxu0 0
  %624 = vmatpush1.bf16.xpose.msra.mxu0 0
  %625 = vmatprep.subr.bf16.mxu0 0
  %626 = vmatpush1.bf16.xpose.msra.mxu0 0
  %627 = vmatprep.subr.bf16.mxu0 0
  %628 = vmatpush1.bf16.xpose.msra.mxu0 0
  %629 = vmatprep.subr.bf16.mxu0 0
  %630 = vmatpush1.bf16.xpose.msra.mxu0 0
  %631 = vmatprep.subr.bf16.mxu0 0
  %632 = vmatpush1.bf16.xpose.msra.mxu0 0
  %633 = vmatprep.subr.bf16.mxu0 0
  %634 = vmatpush1.bf16.xpose.msra.mxu0 %v578
  %635 = vmatprep.subr.bf16.mxu0 0
  %636 = vmatpush2.bf16.xpose.msra.mxu0 0
  %637 = vmatprep.subr.bf16.mxu0 0
  %638 = vmatpush2.bf16.xpose.msra.mxu0 0
  %639 = vmatprep.subr.bf16.mxu0 0
  %640 = vmatpush2.bf16.xpose.msra.mxu0 0
  %641 = vmatprep.subr.bf16.mxu0 0
  %642 = vmatpush2.bf16.xpose.msra.mxu0 0
  %643 = vmatprep.subr.bf16.mxu0 0
  %644 = vmatpush2.bf16.xpose.msra.mxu0 0
  %645 = vmatprep.subr.bf16.mxu0 0
  %646 = vmatpush2.bf16.xpose.msra.mxu0 0
  %647 = vmatprep.subr.bf16.mxu0 0
  %648 = vmatpush2.bf16.xpose.msra.mxu0 0
  %649 = vmatprep.subr.bf16.mxu0 0
  %650 = vmatpush2.bf16.xpose.msra.mxu0 0
  %651 = vmatprep.mubr.bf16.mxu0 0
  %652 = vmatmul.mubr.bf16.gmra.mxu0 %v576
  %v653 = vpop.f32.mrf.mxu0
  %v654 = vadd.f32 0.0, %v653
  %v655 = vpop.f32.mrf.mxu0
  %v656 = vpop.f32.mrf.mxu0
  %v657 = vpop.f32.mrf.mxu0
  %658 = vdwg.mxu0
  %v659 = vmul.f32 %v614, 0.17677669
  %v660 = vmul.f32 %v654, 0.17677669
  %v661 = vsel %vm87, %v659, -1e+09
  %v662 = vsel %vm88, %v660, -1e+09
  %vm663 = vcmask 64512
  %v664 = vsel %vm663, %v661, -inf
  %665 = vmax.xlane.f32.xlu0 %v664
  %v666 = vpop.xlane.xlu0 %665
  %v667 = vsel %vm663, %v662, -inf
  %668 = vmax.xlane.f32.xlu0 %v667
  %v669 = vpop.xlane.xlu0 %668
  %v670 = vsub.f32 %v661, %v666
  %v671 = vsub.f32 %v662, %v669
  %v672 = vmul.f32 %v670, 1.442695
  %v673 = vpow.pop %v672
  %v674 = vmul.f32 %v671, 1.442695
  %v675 = vpow.pop %v674
  %v676 = vsel %vm663, %v673, 0.0
  %677 = vadd.xlane.f32.xlu0 %v676
  %v678 = vpop.xlane.xlu0 %677
  %v679 = vsel %vm663, %v675, 0.0
  %680 = vadd.xlane.f32.xlu0 %v679
  %v681 = vpop.xlane.xlu0 %680
  %v682 = vrcp.pop %v678
  %v683 = vrcp.pop %v681
  %v684 = vmul.f32 %v673, %v682
  %v685 = vmul.f32 %v675, %v683
  %v686 = vpack.c.bf16 %v684, %v684
  %v687 = vpack.c.bf16 %v685, %v685
  %v688 = vpack.c.bf16 %v569, %v569
  %v689 = vpack.c.bf16 %v572, %v572
  %v691 = vsel %vm663, %v686, 0
  %vm693 = vcmask 1043456
  %v695 = vsel %vm693, %v688, 0
  %697 = vmatprep.subr.bf16.mxu0 0
  %698 = vmatpush1.bf16.msra.mxu0 0
  %699 = vmatprep.subr.bf16.mxu0 0
  %700 = vmatpush1.bf16.msra.mxu0 0
  %701 = vmatprep.subr.bf16.mxu0 0
  %702 = vmatpush1.bf16.msra.mxu0 0
  %703 = vmatprep.subr.bf16.mxu0 0
  %704 = vmatpush1.bf16.msra.mxu0 0
  %705 = vmatprep.subr.bf16.mxu0 0
  %706 = vmatpush1.bf16.msra.mxu0 0
  %707 = vmatprep.subr.bf16.mxu0 0
  %708 = vmatpush1.bf16.msra.mxu0 0
  %709 = vmatprep.subr.bf16.mxu0 0
  %710 = vmatpush1.bf16.msra.mxu0 0
  %711 = vmatprep.subr.bf16.mxu0 0
  %712 = vmatpush1.bf16.msra.mxu0 %v695
  %713 = vmatprep.subr.bf16.mxu0 0
  %714 = vmatpush2.bf16.msra.mxu0 0
  %715 = vmatprep.subr.bf16.mxu0 0
  %716 = vmatpush2.bf16.msra.mxu0 0
  %717 = vmatprep.subr.bf16.mxu0 0
  %718 = vmatpush2.bf16.msra.mxu0 0
  %719 = vmatprep.subr.bf16.mxu0 0
  %720 = vmatpush2.bf16.msra.mxu0 0
  %721 = vmatprep.subr.bf16.mxu0 0
  %722 = vmatpush2.bf16.msra.mxu0 0
  %723 = vmatprep.subr.bf16.mxu0 0
  %724 = vmatpush2.bf16.msra.mxu0 0
  %725 = vmatprep.subr.bf16.mxu0 0
  %726 = vmatpush2.bf16.msra.mxu0 0
  %727 = vmatprep.subr.bf16.mxu0 0
  %728 = vmatpush2.bf16.msra.mxu0 0
  %729 = vmatprep.mubr.bf16.mxu0 0
  %730 = vmatmul.mubr.bf16.gmra.mxu0 %v691
  %v731 = vpop.f32.mrf.mxu0
  %v732 = vadd.f32 0.0, %v731
  %v733 = vpop.f32.mrf.mxu0
  %v734 = vpop.f32.mrf.mxu0
  %v735 = vpop.f32.mrf.mxu0
  %736 = vdwg.mxu0
  %v738 = vsel %vm663, %v687, 0
  %v741 = vsel %vm693, %v689, 0
  %743 = vmatprep.subr.bf16.mxu0 0
  %744 = vmatpush1.bf16.msra.mxu0 0
  %745 = vmatprep.subr.bf16.mxu0 0
  %746 = vmatpush1.bf16.msra.mxu0 0
  %747 = vmatprep.subr.bf16.mxu0 0
  %748 = vmatpush1.bf16.msra.mxu0 0
  %749 = vmatprep.subr.bf16.mxu0 0
  %750 = vmatpush1.bf16.msra.mxu0 0
  %751 = vmatprep.subr.bf16.mxu0 0
  %752 = vmatpush1.bf16.msra.mxu0 0
  %753 = vmatprep.subr.bf16.mxu0 0
  %754 = vmatpush1.bf16.msra.mxu0 0
  %755 = vmatprep.subr.bf16.mxu0 0
  %756 = vmatpush1.bf16.msra.mxu0 0
  %757 = vmatprep.subr.bf16.mxu0 0
  %758 = vmatpush1.bf16.msra.mxu0 %v741
  %759 = vmatprep.subr.bf16.mxu0 0
  %760 = vmatpush2.bf16.msra.mxu0 0
  %761 = vmatprep.subr.bf16.mxu0 0
  %762 = vmatpush2.bf16.msra.mxu0 0
  %763 = vmatprep.subr.bf16.mxu0 0
  %764 = vmatpush2.bf16.msra.mxu0 0
  %765 = vmatprep.subr.bf16.mxu0 0
  %766 = vmatpush2.bf16.msra.mxu0 0
  %767 = vmatprep.subr.bf16.mxu0 0
  %768 = vmatpush2.bf16.msra.mxu0 0
  %769 = vmatprep.subr.bf16.mxu0 0
  %770 = vmatpush2.bf16.msra.mxu0 0
  %771 = vmatprep.subr.bf16.mxu0 0
  %772 = vmatpush2.bf16.msra.mxu0 0
  %773 = vmatprep.subr.bf16.mxu0 0
  %774 = vmatpush2.bf16.msra.mxu0 0
  %775 = vmatprep.mubr.bf16.mxu0 0
  %776 = vmatmul.mubr.bf16.gmra.mxu0 %v738
  %v777 = vpop.f32.mrf.mxu0
  %v778 = vadd.f32 0.0, %v777
  %v779 = vpop.f32.mrf.mxu0
  %v780 = vpop.f32.mrf.mxu0
  %v781 = vpop.f32.mrf.mxu0
  %782 = vdwg.mxu0
  %v783 = vpack.c.bf16 %v778, %v732
  %v784 = vld [vmem:[%s10] sm:$0xf]
  %v785 = vld [vmem:[%s10 + $0x4] sm:$0xf]
  %v786 = vld [vmem:[%s10 + $0x8] sm:$0xf]
  %v787 = vld [vmem:[%s10 + $0xc] sm:$0xf]
  %v788 = vld [vmem:[%s10 + $0x10] sm:$0xf]
  %v789 = vld [vmem:[%s10 + $0x14] sm:$0xf]
  %v790 = vld [vmem:[%s10 + $0x18] sm:$0xf]
  %v791 = vld [vmem:[%s10 + $0x1c] sm:$0xf]
  %v792 = vld [vmem:[%s10 + $0x20] sm:$0xf]
  %v793 = vld [vmem:[%s10 + $0x24] sm:$0xf]
  %v794 = vld [vmem:[%s10 + $0x28] sm:$0xf]
  %v795 = vld [vmem:[%s10 + $0x2c] sm:$0xf]
  %v796 = vld [vmem:[%s10 + $0x30] sm:$0xf]
  %v797 = vld [vmem:[%s10 + $0x34] sm:$0xf]
  %v798 = vld [vmem:[%s10 + $0x38] sm:$0xf]
  %v799 = vld [vmem:[%s10 + $0x3c] sm:$0xf]
  %v800 = vlaneseq
  %v801 = vshrl.u32 %v800, 7
  %v802 = vsub.s32 4, %v801
  %v803 = vrot.slane %v90, %v802
  %v820 = vunpack.c.l.b16 %v784
  %v821 = vunpack.c.l.b16 %v785
  %v822 = vunpack.c.l.b16 %v786
  %v823 = vunpack.c.l.b16 %v787
  %v824 = vunpack.c.l.b16 %v788
  %v825 = vunpack.c.l.b16 %v789
  %v826 = vunpack.c.l.b16 %v790
  %v827 = vunpack.c.l.b16 %v791
  %v828 = vunpack.c.l.b16 %v792
  %v829 = vunpack.c.l.b16 %v793
  %v830 = vunpack.c.l.b16 %v794
  %v831 = vunpack.c.l.b16 %v795
  %v832 = vunpack.c.l.b16 %v796
  %v833 = vunpack.c.l.b16 %v797
  %v834 = vunpack.c.l.b16 %v798
  %v835 = vunpack.c.l.b16 %v799
  %v836 = vpack.c.b16 %v821, %v820
  %v837 = vpack.c.b16 %v823, %v822
  %v838 = vpack.c.b16 %v825, %v824
  %v839 = vpack.c.b16 %v827, %v826
  %v840 = vpack.c.b16 %v829, %v828
  %v841 = vpack.c.b16 %v831, %v830
  %v842 = vpack.c.b16 %v833, %v832
  %v843 = vpack.c.b16 %v835, %v834
  %852 = vmatprep.subr.bf16.mxu0 0
  %853 = vmatpush1.bf16.msra.mxu0 %v843
  %854 = vmatprep.subr.bf16.mxu0 0
  %855 = vmatpush1.bf16.msra.mxu0 %v842
  %856 = vmatprep.subr.bf16.mxu0 0
  %857 = vmatpush1.bf16.msra.mxu0 %v841
  %858 = vmatprep.subr.bf16.mxu0 0
  %859 = vmatpush1.bf16.msra.mxu0 %v840
  %860 = vmatprep.subr.bf16.mxu0 0
  %861 = vmatpush1.bf16.msra.mxu0 %v839
  %862 = vmatprep.subr.bf16.mxu0 0
  %863 = vmatpush1.bf16.msra.mxu0 %v838
  %864 = vmatprep.subr.bf16.mxu0 0
  %865 = vmatpush1.bf16.msra.mxu0 %v837
  %866 = vmatprep.subr.bf16.mxu0 0
  %867 = vmatpush1.bf16.msra.mxu0 %v836
  %868 = vmatprep.subr.bf16.mxu0 0
  %869 = vmatpush2.bf16.msra.mxu0 0
  %870 = vmatprep.subr.bf16.mxu0 0
  %871 = vmatpush2.bf16.msra.mxu0 0
  %872 = vmatprep.subr.bf16.mxu0 0
  %873 = vmatpush2.bf16.msra.mxu0 0
  %874 = vmatprep.subr.bf16.mxu0 0
  %875 = vmatpush2.bf16.msra.mxu0 0
  %876 = vmatprep.subr.bf16.mxu0 0
  %877 = vmatpush2.bf16.msra.mxu0 0
  %878 = vmatprep.subr.bf16.mxu0 0
  %879 = vmatpush2.bf16.msra.mxu0 0
  %880 = vmatprep.subr.bf16.mxu0 0
  %881 = vmatpush2.bf16.msra.mxu0 0
  %882 = vmatprep.subr.bf16.mxu0 0
  %883 = vmatpush2.bf16.msra.mxu0 0
  %884 = vmatprep.mubr.bf16.mxu0 0
  %885 = vmatmul.mubr.bf16.gmra.mxu0 %v783
  %v886 = vpop.f32.mrf.mxu0
  %v887 = vadd.f32 %v803, %v886
  %v888 = vpop.f32.mrf.mxu0
  %v889 = vpop.f32.mrf.mxu0
  %v890 = vadd.f32 %v803, %v889
  %v891 = vpop.f32.mrf.mxu0
  %892 = vdwg.mxu0
  %v893 = vadd.f32 %v273, %v887
  %v894 = vadd.f32 %v274, %v890
  %895 = vadd.xlane.f32.xlu0 %v893
  %v896 = vpop.xlane.xlu0 %895
  %897 = vadd.xlane.f32.xlu0 %v894
  %v898 = vpop.xlane.xlu0 %897
  %v899 = vmul.f32 %v893, %v893
  %v900 = vmul.f32 %v894, %v894
  %901 = vadd.xlane.f32.xlu0 %v899
  %v902 = vpop.xlane.xlu0 %901
  %903 = vadd.xlane.f32.xlu0 %v900
  %v904 = vpop.xlane.xlu0 %903
  %v905 = vmul.f32 %v896, 0.03125
  %v906 = vmul.f32 %v898, 0.03125
  %v907 = vmul.f32 %v902, 0.03125
  %v908 = vmul.f32 %v904, 0.03125
  %v909 = vmul.f32 %v905, %v905
  %v910 = vmul.f32 %v906, %v906
  %v911 = vsub.f32 %v907, %v909
  %v912 = vsub.f32 %v908, %v910
  %v913 = vsub.f32 %v893, %v905
  %v914 = vsub.f32 %v894, %v906
  %v915 = vadd.f32 %v911, 1e-05
  %v916 = vadd.f32 %v912, 1e-05
  %v917 = vrsqrt.pop %v915
  %v918 = vrsqrt.pop %v916
  %v919 = vmul.f32 %v913, %v917
  %v920 = vmul.f32 %v914, %v918
  %v921 = vlaneseq
  %v922 = vshrl.u32 %v921, 7
  %v923 = vsub.s32 5, %v922
  %v924 = vrot.slane %v90, %v923
  %v925 = vmul.f32 %v919, %v924
  %v926 = vmul.f32 %v920, %v924
  %v927 = vlaneseq
  %v928 = vshrl.u32 %v927, 7
  %v929 = vsub.s32 6, %v928
  %v930 = vrot.slane %v90, %v929
  %v931 = vadd.f32 %v925, %v930
  %v932 = vadd.f32 %v926, %v930
  %v933 = vpack.c.bf16 %v932, %v931
  %v934 = vld [vmem:[%s11] sm:$0xf]
  %v935 = vld [vmem:[%s11 + $0x4] sm:$0xf]
  %v936 = vld [vmem:[%s11 + $0x8] sm:$0xf]
  %v937 = vld [vmem:[%s11 + $0xc] sm:$0xf]
  %v938 = vld [vmem:[%s11 + $0x10] sm:$0xf]
  %v939 = vld [vmem:[%s11 + $0x14] sm:$0xf]
  %v940 = vld [vmem:[%s11 + $0x18] sm:$0xf]
  %v941 = vld [vmem:[%s11 + $0x1c] sm:$0xf]
  %v942 = vld [vmem:[%s11 + $0x20] sm:$0xf]
  %v943 = vld [vmem:[%s11 + $0x24] sm:$0xf]
  %v944 = vld [vmem:[%s11 + $0x28] sm:$0xf]
  %v945 = vld [vmem:[%s11 + $0x2c] sm:$0xf]
  %v946 = vld [vmem:[%s11 + $0x30] sm:$0xf]
  %v947 = vld [vmem:[%s11 + $0x34] sm:$0xf]
  %v948 = vld [vmem:[%s11 + $0x38] sm:$0xf]
  %v949 = vld [vmem:[%s11 + $0x3c] sm:$0xf]
  %v950 = vld [vmem:[%s12] sm:$0x1]
  %v951 = vlaneseq
  %v952 = vshrl.u32 %v951, 7
  %v953 = vsub.s32 0, %v952
  %v954 = vrot.slane %v950, %v953
  %v971 = vunpack.c.l.b16 %v934
  %v972 = vunpack.c.l.b16 %v935
  %v973 = vunpack.c.l.b16 %v936
  %v974 = vunpack.c.l.b16 %v937
  %v975 = vunpack.c.l.b16 %v938
  %v976 = vunpack.c.l.b16 %v939
  %v977 = vunpack.c.l.b16 %v940
  %v978 = vunpack.c.l.b16 %v941
  %v979 = vunpack.c.l.b16 %v942
  %v980 = vunpack.c.l.b16 %v943
  %v981 = vunpack.c.l.b16 %v944
  %v982 = vunpack.c.l.b16 %v945
  %v983 = vunpack.c.l.b16 %v946
  %v984 = vunpack.c.l.b16 %v947
  %v985 = vunpack.c.l.b16 %v948
  %v986 = vunpack.c.l.b16 %v949
  %v987 = vpack.c.b16 %v972, %v971
  %v988 = vpack.c.b16 %v974, %v973
  %v989 = vpack.c.b16 %v976, %v975
  %v990 = vpack.c.b16 %v978, %v977
  %v991 = vpack.c.b16 %v980, %v979
  %v992 = vpack.c.b16 %v982, %v981
  %v993 = vpack.c.b16 %v984, %v983
  %v994 = vpack.c.b16 %v986, %v985
  %1003 = vmatprep.subr.bf16.mxu0 0
  %1004 = vmatpush1.bf16.msra.mxu0 %v994
  %1005 = vmatprep.subr.bf16.mxu0 0
  %1006 = vmatpush1.bf16.msra.mxu0 %v993
  %1007 = vmatprep.subr.bf16.mxu0 0
  %1008 = vmatpush1.bf16.msra.mxu0 %v992
  %1009 = vmatprep.subr.bf16.mxu0 0
  %1010 = vmatpush1.bf16.msra.mxu0 %v991
  %1011 = vmatprep.subr.bf16.mxu0 0
  %1012 = vmatpush1.bf16.msra.mxu0 %v990
  %1013 = vmatprep.subr.bf16.mxu0 0
  %1014 = vmatpush1.bf16.msra.mxu0 %v989
  %1015 = vmatprep.subr.bf16.mxu0 0
  %1016 = vmatpush1.bf16.msra.mxu0 %v988
  %1017 = vmatprep.subr.bf16.mxu0 0
  %1018 = vmatpush1.bf16.msra.mxu0 %v987
  %1019 = vmatprep.subr.bf16.mxu0 0
  %1020 = vmatpush2.bf16.msra.mxu0 0
  %1021 = vmatprep.subr.bf16.mxu0 0
  %1022 = vmatpush2.bf16.msra.mxu0 0
  %1023 = vmatprep.subr.bf16.mxu0 0
  %1024 = vmatpush2.bf16.msra.mxu0 0
  %1025 = vmatprep.subr.bf16.mxu0 0
  %1026 = vmatpush2.bf16.msra.mxu0 0
  %1027 = vmatprep.subr.bf16.mxu0 0
  %1028 = vmatpush2.bf16.msra.mxu0 0
  %1029 = vmatprep.subr.bf16.mxu0 0
  %1030 = vmatpush2.bf16.msra.mxu0 0
  %1031 = vmatprep.subr.bf16.mxu0 0
  %1032 = vmatpush2.bf16.msra.mxu0 0
  %1033 = vmatprep.subr.bf16.mxu0 0
  %1034 = vmatpush2.bf16.msra.mxu0 0
  %1035 = vmatprep.mubr.bf16.mxu0 0
  %1036 = vmatmul.mubr.bf16.gmra.mxu0 %v933
  %v1037 = vpop.f32.mrf.mxu0
  %v1038 = vadd.f32 %v954, %v1037
  %v1039 = vpop.f32.mrf.mxu0
  %v1040 = vpop.f32.mrf.mxu0
  %v1041 = vadd.f32 %v954, %v1040
  %v1042 = vpop.f32.mrf.mxu0
  %1043 = vdwg.mxu0
  %v1044 = vmul.f32 %v1038, %v1038
  %v1045 = vmul.f32 %v1041, %v1041
  %v1046 = vmul.f32 %v1038, %v1044
  %v1047 = vmul.f32 %v1041, %v1045
  %v1048 = vmul.f32 %v1046, 0.044715
  %v1049 = vmul.f32 %v1047, 0.044715
  %v1050 = vadd.f32 %v1038, %v1048
  %v1051 = vadd.f32 %v1041, %v1049
  %v1052 = vmul.f32 %v1050, 0.7978846
  %v1053 = vmul.f32 %v1051, 0.7978846
  %v1054 = vtanh.pop %v1052
  %v1055 = vtanh.pop %v1053
  %v1056 = vadd.f32 %v1054, 1.0
  %v1057 = vadd.f32 %v1055, 1.0
  %v1058 = vmul.f32 %v1056, 0.5
  %v1059 = vmul.f32 %v1057, 0.5
  %v1060 = vmul.f32 %v1038, %v1058
  %v1061 = vmul.f32 %v1041, %v1059
  %v1062 = vpack.c.bf16 %v1061, %v1060
  %v1063 = vld [vmem:[%s13] sm:$0xf]
  %v1064 = vld [vmem:[%s13 + $0x4] sm:$0xf]
  %v1065 = vld [vmem:[%s13 + $0x8] sm:$0xf]
  %v1066 = vld [vmem:[%s13 + $0xc] sm:$0xf]
  %v1067 = vld [vmem:[%s13 + $0x10] sm:$0xf]
  %v1068 = vld [vmem:[%s13 + $0x14] sm:$0xf]
  %v1069 = vld [vmem:[%s13 + $0x18] sm:$0xf]
  %v1070 = vld [vmem:[%s13 + $0x1c] sm:$0xf]
  %v1071 = vld [vmem:[%s13 + $0x20] sm:$0xf]
  %v1072 = vld [vmem:[%s13 + $0x24] sm:$0xf]
  %v1073 = vld [vmem:[%s13 + $0x28] sm:$0xf]
  %v1074 = vld [vmem:[%s13 + $0x2c] sm:$0xf]
  %v1075 = vld [vmem:[%s13 + $0x30] sm:$0xf]
  %v1076 = vld [vmem:[%s13 + $0x34] sm:$0xf]
  %v1077 = vld [vmem:[%s13 + $0x38] sm:$0xf]
  %v1078 = vld [vmem:[%s13 + $0x3c] sm:$0xf]
  %v1079 = vlaneseq
  %v1080 = vshrl.u32 %v1079, 7
  %v1081 = vsub.s32 7, %v1080
  %v1082 = vrot.slane %v90, %v1081
  %v1099 = vunpack.c.l.b16 %v1063
  %v1100 = vunpack.c.l.b16 %v1064
  %v1101 = vunpack.c.l.b16 %v1065
  %v1102 = vunpack.c.l.b16 %v1066
  %v1103 = vunpack.c.l.b16 %v1067
  %v1104 = vunpack.c.l.b16 %v1068
  %v1105 = vunpack.c.l.b16 %v1069
  %v1106 = vunpack.c.l.b16 %v1070
  %v1107 = vunpack.c.l.b16 %v1071
  %v1108 = vunpack.c.l.b16 %v1072
  %v1109 = vunpack.c.l.b16 %v1073
  %v1110 = vunpack.c.l.b16 %v1074
  %v1111 = vunpack.c.l.b16 %v1075
  %v1112 = vunpack.c.l.b16 %v1076
  %v1113 = vunpack.c.l.b16 %v1077
  %v1114 = vunpack.c.l.b16 %v1078
  %v1115 = vpack.c.b16 %v1100, %v1099
  %v1116 = vpack.c.b16 %v1102, %v1101
  %v1117 = vpack.c.b16 %v1104, %v1103
  %v1118 = vpack.c.b16 %v1106, %v1105
  %v1119 = vpack.c.b16 %v1108, %v1107
  %v1120 = vpack.c.b16 %v1110, %v1109
  %v1121 = vpack.c.b16 %v1112, %v1111
  %v1122 = vpack.c.b16 %v1114, %v1113
  %1131 = vmatprep.subr.bf16.mxu0 0
  %1132 = vmatpush1.bf16.msra.mxu0 %v1122
  %1133 = vmatprep.subr.bf16.mxu0 0
  %1134 = vmatpush1.bf16.msra.mxu0 %v1121
  %1135 = vmatprep.subr.bf16.mxu0 0
  %1136 = vmatpush1.bf16.msra.mxu0 %v1120
  %1137 = vmatprep.subr.bf16.mxu0 0
  %1138 = vmatpush1.bf16.msra.mxu0 %v1119
  %1139 = vmatprep.subr.bf16.mxu0 0
  %1140 = vmatpush1.bf16.msra.mxu0 %v1118
  %1141 = vmatprep.subr.bf16.mxu0 0
  %1142 = vmatpush1.bf16.msra.mxu0 %v1117
  %1143 = vmatprep.subr.bf16.mxu0 0
  %1144 = vmatpush1.bf16.msra.mxu0 %v1116
  %1145 = vmatprep.subr.bf16.mxu0 0
  %1146 = vmatpush1.bf16.msra.mxu0 %v1115
  %1147 = vmatprep.subr.bf16.mxu0 0
  %1148 = vmatpush2.bf16.msra.mxu0 0
  %1149 = vmatprep.subr.bf16.mxu0 0
  %1150 = vmatpush2.bf16.msra.mxu0 0
  %1151 = vmatprep.subr.bf16.mxu0 0
  %1152 = vmatpush2.bf16.msra.mxu0 0
  %1153 = vmatprep.subr.bf16.mxu0 0
  %1154 = vmatpush2.bf16.msra.mxu0 0
  %1155 = vmatprep.subr.bf16.mxu0 0
  %1156 = vmatpush2.bf16.msra.mxu0 0
  %1157 = vmatprep.subr.bf16.mxu0 0
  %1158 = vmatpush2.bf16.msra.mxu0 0
  %1159 = vmatprep.subr.bf16.mxu0 0
  %1160 = vmatpush2.bf16.msra.mxu0 0
  %1161 = vmatprep.subr.bf16.mxu0 0
  %1162 = vmatpush2.bf16.msra.mxu0 0
  %1163 = vmatprep.mubr.bf16.mxu0 0
  %1164 = vmatmul.mubr.bf16.gmra.mxu0 %v1062
  %v1165 = vpop.f32.mrf.mxu0
  %v1166 = vadd.f32 %v1082, %v1165
  %v1167 = vpop.f32.mrf.mxu0
  %v1168 = vpop.f32.mrf.mxu0
  %v1169 = vadd.f32 %v1082, %v1168
  %v1170 = vpop.f32.mrf.mxu0
  %1171 = vdwg.mxu0
  %v1172 = vadd.f32 %v893, %v1166
  %v1173 = vadd.f32 %v894, %v1169
  %s1174 = scalar_lea.vmem %s5, 4
  %v1175 = vld [vmem:[%s1174] sm:$0x7]
  %s1176 = scalar_lea.vmem %s6, 8
  %v1177 = vld [vmem:[%s1176] sm:$0xff]
  %v1178 = vlaneseq
  %v1179 = vshrl.u32 %v1178, 7
  %v1180 = vsub.s32 0, %v1179
  %v1181 = vrot.slane %v1175, %v1180
  %v1182 = vmul.f32 %v94, %v1181
  %v1183 = vmul.f32 %v99, %v1181
  %v1184 = vlaneseq
  %v1185 = vshrl.u32 %v1184, 7
  %v1186 = vsub.s32 1, %v1185
  %v1187 = vrot.slane %v1175, %v1186
  %v1188 = vmul.f32 %v109, %v1187
  %v1189 = vmul.f32 %v113, %v1187
  %v1190 = vadd.f32 %v1182, %v1188
  %v1191 = vadd.f32 %v1183, %v1189
  %v1192 = vlaneseq
  %v1193 = vshrl.u32 %v1192, 7
  %v1194 = vsub.s32 2, %v1193
  %v1195 = vrot.slane %v1175, %v1194
  %v1196 = vmul.f32 %v125, %v1195
  %v1197 = vmul.f32 %v129, %v1195
  %v1198 = vadd.f32 %v1190, %v1196
  %v1199 = vadd.f32 %v1191, %v1197
  %v1200 = vlaneseq
  %v1201 = vshrl.u32 %v1200, 7
  %v1202 = vsub.s32 0, %v1201
  %v1203 = vrot.slane %v1177, %v1202
  %v1204 = vadd.f32 %v1198, %v1203
  %v1205 = vadd.f32 %v1199, %v1203
  %v1206 = vmul.f32 %v1204, %v1204
  %v1207 = vmul.f32 %v1205, %v1205
  %v1208 = vmul.f32 %v1204, %v1206
  %v1209 = vmul.f32 %v1205, %v1207
  %v1210 = vmul.f32 %v1208, 0.044715
  %v1211 = vmul.f32 %v1209, 0.044715
  %v1212 = vadd.f32 %v1204, %v1210
  %v1213 = vadd.f32 %v1205, %v1211
  %v1214 = vmul.f32 %v1212, 0.7978846
  %v1215 = vmul.f32 %v1213, 0.7978846
  %v1216 = vtanh.pop %v1214
  %v1217 = vtanh.pop %v1215
  %v1218 = vadd.f32 %v1216, 1.0
  %v1219 = vadd.f32 %v1217, 1.0
  %v1220 = vmul.f32 %v1218, 0.5
  %v1221 = vmul.f32 %v1219, 0.5
  %v1222 = vmul.f32 %v1204, %v1220
  %v1223 = vmul.f32 %v1205, %v1221
  %v1224 = vpack.c.bf16 %v1223, %v1222
  %s1225 = scalar_lea.vmem %s7, 64
  %v1226 = vld [vmem:[%s1225] sm:$0xf]
  %v1227 = vld [vmem:[%s1225 + $0x4] sm:$0xf]
  %v1228 = vld [vmem:[%s1225 + $0x8] sm:$0xf]
  %v1229 = vld [vmem:[%s1225 + $0xc] sm:$0xf]
  %v1230 = vld [vmem:[%s1225 + $0x10] sm:$0xf]
  %v1231 = vld [vmem:[%s1225 + $0x14] sm:$0xf]
  %v1232 = vld [vmem:[%s1225 + $0x18] sm:$0xf]
  %v1233 = vld [vmem:[%s1225 + $0x1c] sm:$0xf]
  %v1234 = vld [vmem:[%s1225 + $0x20] sm:$0xf]
  %v1235 = vld [vmem:[%s1225 + $0x24] sm:$0xf]
  %v1236 = vld [vmem:[%s1225 + $0x28] sm:$0xf]
  %v1237 = vld [vmem:[%s1225 + $0x2c] sm:$0xf]
  %v1238 = vld [vmem:[%s1225 + $0x30] sm:$0xf]
  %v1239 = vld [vmem:[%s1225 + $0x34] sm:$0xf]
  %v1240 = vld [vmem:[%s1225 + $0x38] sm:$0xf]
  %v1241 = vld [vmem:[%s1225 + $0x3c] sm:$0xf]
  %v1242 = vlaneseq
  %v1243 = vshrl.u32 %v1242, 7
  %v1244 = vsub.s32 1, %v1243
  %v1245 = vrot.slane %v1177, %v1244
  %v1262 = vunpack.c.l.b16 %v1226
  %v1263 = vunpack.c.l.b16 %v1227
  %v1264 = vunpack.c.l.b16 %v1228
  %v1265 = vunpack.c.l.b16 %v1229
  %v1266 = vunpack.c.l.b16 %v1230
  %v1267 = vunpack.c.l.b16 %v1231
  %v1268 = vunpack.c.l.b16 %v1232
  %v1269 = vunpack.c.l.b16 %v1233
  %v1270 = vunpack.c.l.b16 %v1234
  %v1271 = vunpack.c.l.b16 %v1235
  %v1272 = vunpack.c.l.b16 %v1236
  %v1273 = vunpack.c.l.b16 %v1237
  %v1274 = vunpack.c.l.b16 %v1238
  %v1275 = vunpack.c.l.b16 %v1239
  %v1276 = vunpack.c.l.b16 %v1240
  %v1277 = vunpack.c.l.b16 %v1241
  %v1278 = vpack.c.b16 %v1263, %v1262
  %v1279 = vpack.c.b16 %v1265, %v1264
  %v1280 = vpack.c.b16 %v1267, %v1266
  %v1281 = vpack.c.b16 %v1269, %v1268
  %v1282 = vpack.c.b16 %v1271, %v1270
  %v1283 = vpack.c.b16 %v1273, %v1272
  %v1284 = vpack.c.b16 %v1275, %v1274
  %v1285 = vpack.c.b16 %v1277, %v1276
  %1294 = vmatprep.subr.bf16.mxu0 0
  %1295 = vmatpush1.bf16.msra.mxu0 %v1285
  %1296 = vmatprep.subr.bf16.mxu0 0
  %1297 = vmatpush1.bf16.msra.mxu0 %v1284
  %1298 = vmatprep.subr.bf16.mxu0 0
  %1299 = vmatpush1.bf16.msra.mxu0 %v1283
  %1300 = vmatprep.subr.bf16.mxu0 0
  %1301 = vmatpush1.bf16.msra.mxu0 %v1282
  %1302 = vmatprep.subr.bf16.mxu0 0
  %1303 = vmatpush1.bf16.msra.mxu0 %v1281
  %1304 = vmatprep.subr.bf16.mxu0 0
  %1305 = vmatpush1.bf16.msra.mxu0 %v1280
  %1306 = vmatprep.subr.bf16.mxu0 0
  %1307 = vmatpush1.bf16.msra.mxu0 %v1279
  %1308 = vmatprep.subr.bf16.mxu0 0
  %1309 = vmatpush1.bf16.msra.mxu0 %v1278
  %1310 = vmatprep.subr.bf16.mxu0 0
  %1311 = vmatpush2.bf16.msra.mxu0 0
  %1312 = vmatprep.subr.bf16.mxu0 0
  %1313 = vmatpush2.bf16.msra.mxu0 0
  %1314 = vmatprep.subr.bf16.mxu0 0
  %1315 = vmatpush2.bf16.msra.mxu0 0
  %1316 = vmatprep.subr.bf16.mxu0 0
  %1317 = vmatpush2.bf16.msra.mxu0 0
  %1318 = vmatprep.subr.bf16.mxu0 0
  %1319 = vmatpush2.bf16.msra.mxu0 0
  %1320 = vmatprep.subr.bf16.mxu0 0
  %1321 = vmatpush2.bf16.msra.mxu0 0
  %1322 = vmatprep.subr.bf16.mxu0 0
  %1323 = vmatpush2.bf16.msra.mxu0 0
  %1324 = vmatprep.subr.bf16.mxu0 0
  %1325 = vmatpush2.bf16.msra.mxu0 0
  %1326 = vmatprep.mubr.bf16.mxu0 0
  %1327 = vmatmul.mubr.bf16.gmra.mxu0 %v1224
  %v1328 = vpop.f32.mrf.mxu0
  %v1329 = vadd.f32 %v1245, %v1328
  %v1330 = vpop.f32.mrf.mxu0
  %v1331 = vpop.f32.mrf.mxu0
  %v1332 = vadd.f32 %v1245, %v1331
  %v1333 = vpop.f32.mrf.mxu0
  %1334 = vdwg.mxu0
  %v1335 = vadd.f32 %v1172, %v1329
  %v1336 = vadd.f32 %v1173, %v1332
  %1337 = vadd.xlane.f32.xlu0 %v1335
  %v1338 = vpop.xlane.xlu0 %1337
  %1339 = vadd.xlane.f32.xlu0 %v1336
  %v1340 = vpop.xlane.xlu0 %1339
  %v1341 = vmul.f32 %v1335, %v1335
  %v1342 = vmul.f32 %v1336, %v1336
  %1343 = vadd.xlane.f32.xlu0 %v1341
  %v1344 = vpop.xlane.xlu0 %1343
  %1345 = vadd.xlane.f32.xlu0 %v1342
  %v1346 = vpop.xlane.xlu0 %1345
  %v1347 = vmul.f32 %v1338, 0.03125
  %v1348 = vmul.f32 %v1340, 0.03125
  %v1349 = vmul.f32 %v1344, 0.03125
  %v1350 = vmul.f32 %v1346, 0.03125
  %v1351 = vmul.f32 %v1347, %v1347
  %v1352 = vmul.f32 %v1348, %v1348
  %v1353 = vsub.f32 %v1349, %v1351
  %v1354 = vsub.f32 %v1350, %v1352
  %v1355 = vsub.f32 %v1335, %v1347
  %v1356 = vsub.f32 %v1336, %v1348
  %v1357 = vadd.f32 %v1353, 1e-05
  %v1358 = vadd.f32 %v1354, 1e-05
  %v1359 = vrsqrt.pop %v1357
  %v1360 = vrsqrt.pop %v1358
  %v1361 = vmul.f32 %v1355, %v1359
  %v1362 = vmul.f32 %v1356, %v1360
  %v1363 = vlaneseq
  %v1364 = vshrl.u32 %v1363, 7
  %v1365 = vsub.s32 2, %v1364
  %v1366 = vrot.slane %v1177, %v1365
  %v1367 = vmul.f32 %v1361, %v1366
  %v1368 = vmul.f32 %v1362, %v1366
  %v1369 = vlaneseq
  %v1370 = vshrl.u32 %v1369, 7
  %v1371 = vsub.s32 3, %v1370
  %v1372 = vrot.slane %v1177, %v1371
  %v1373 = vadd.f32 %v1367, %v1372
  %v1374 = vadd.f32 %v1368, %v1372
  %v1375 = vpack.c.bf16 %v1374, %v1373
  %s1376 = scalar_lea.vmem %s8, 192
  %v1377 = vld [vmem:[%s1376] sm:$0xff]
  %v1378 = vld [vmem:[%s1376 + $0x8] sm:$0xf]
  %v1379 = vld [vmem:[%s1376 + $0xc] sm:$0xff]
  %v1380 = vld [vmem:[%s1376 + $0x14] sm:$0xf]
  %v1381 = vld [vmem:[%s1376 + $0x18] sm:$0xff]
  %v1382 = vld [vmem:[%s1376 + $0x20] sm:$0xf]
  %v1383 = vld [vmem:[%s1376 + $0x24] sm:$0xff]
  %v1384 = vld [vmem:[%s1376 + $0x2c] sm:$0xf]
  %v1385 = vld [vmem:[%s1376 + $0x30] sm:$0xff]
  %v1386 = vld [vmem:[%s1376 + $0x38] sm:$0xf]
  %v1387 = vld [vmem:[%s1376 + $0x3c] sm:$0xff]
  %v1388 = vld [vmem:[%s1376 + $0x44] sm:$0xf]
  %v1389 = vld [vmem:[%s1376 + $0x48] sm:$0xff]
  %v1390 = vld [vmem:[%s1376 + $0x50] sm:$0xf]
  %v1391 = vld [vmem:[%s1376 + $0x54] sm:$0xff]
  %v1392 = vld [vmem:[%s1376 + $0x5c] sm:$0xf]
  %v1393 = vld [vmem:[%s1376 + $0x60] sm:$0xff]
  %v1394 = vld [vmem:[%s1376 + $0x68] sm:$0xf]
  %v1395 = vld [vmem:[%s1376 + $0x6c] sm:$0xff]
  %v1396 = vld [vmem:[%s1376 + $0x74] sm:$0xf]
  %v1397 = vld [vmem:[%s1376 + $0x78] sm:$0xff]
  %v1398 = vld [vmem:[%s1376 + $0x80] sm:$0xf]
  %v1399 = vld [vmem:[%s1376 + $0x84] sm:$0xff]
  %v1400 = vld [vmem:[%s1376 + $0x8c] sm:$0xf]
  %v1401 = vld [vmem:[%s1376 + $0x90] sm:$0xff]
  %v1402 = vld [vmem:[%s1376 + $0x98] sm:$0xf]
  %v1403 = vld [vmem:[%s1376 + $0x9c] sm:$0xff]
  %v1404 = vld [vmem:[%s1376 + $0xa4] sm:$0xf]
  %v1405 = vld [vmem:[%s1376 + $0xa8] sm:$0xff]
  %v1406 = vld [vmem:[%s1376 + $0xb0] sm:$0xf]
  %v1407 = vld [vmem:[%s1376 + $0xb4] sm:$0xff]
  %v1408 = vld [vmem:[%s1376 + $0xbc] sm:$0xf]
  %s1409 = scalar_lea.vmem %s9, 1
  %v1410 = vld [vmem:[%s1409] ss:$2 sm:$0x7]
  %v1412 = vlaneseq
  %v1413 = vshrl.u32 %v1412, 7
  %v1414 = vsub.s32 0, %v1413
  %v1415 = vrot.slane %v1410, %v1414
  %v1416 = vlaneseq
  %v1417 = vshrl.u32 %v1416, 7
  %v1418 = vsub.s32 1, %v1417
  %v1419 = vrot.slane %v1410, %v1418
  %v1420 = vlaneseq
  %v1421 = vshrl.u32 %v1420, 7
  %v1422 = vsub.s32 2, %v1421
  %v1423 = vrot.slane %v1410, %v1422
  %v1459 = vunpack.c.l.b16 %v1377
  %v1460 = vunpack.c.h.b16 %v1377
  %v1461 = vunpack.c.l.b16 %v1378
  %v1462 = vunpack.c.l.b16 %v1379
  %v1463 = vunpack.c.h.b16 %v1379
  %v1464 = vunpack.c.l.b16 %v1380
  %v1465 = vunpack.c.l.b16 %v1381
  %v1466 = vunpack.c.h.b16 %v1381
  %v1467 = vunpack.c.l.b16 %v1382
  %v1468 = vunpack.c.l.b16 %v1383
  %v1469 = vunpack.c.h.b16 %v1383
  %v1470 = vunpack.c.l.b16 %v1384
  %v1471 = vunpack.c.l.b16 %v1385
  %v1472 = vunpack.c.h.b16 %v1385
  %v1473 = vunpack.c.l.b16 %v1386
  %v1474 = vunpack.c.l.b16 %v1387
  %v1475 = vunpack.c.h.b16 %v1387
  %v1476 = vunpack.c.l.b16 %v1388
  %v1477 = vunpack.c.l.b16 %v1389
  %v1478 = vunpack.c.h.b16 %v1389
  %v1479 = vunpack.c.l.b16 %v1390
  %v1480 = vunpack.c.l.b16 %v1391
  %v1481 = vunpack.c.h.b16 %v1391
  %v1482 = vunpack.c.l.b16 %v1392
  %v1483 = vunpack.c.l.b16 %v1393
  %v1484 = vunpack.c.h.b16 %v1393
  %v1485 = vunpack.c.l.b16 %v1394
  %v1486 = vunpack.c.l.b16 %v1395
  %v1487 = vunpack.c.h.b16 %v1395
  %v1488 = vunpack.c.l.b16 %v1396
  %v1489 = vunpack.c.l.b16 %v1397
  %v1490 = vunpack.c.h.b16 %v1397
  %v1491 = vunpack.c.l.b16 %v1398
  %v1492 = vunpack.c.l.b16 %v1399
  %v1493 = vunpack.c.h.b16 %v1399
  %v1494 = vunpack.c.l.b16 %v1400
  %v1495 = vunpack.c.l.b16 %v1401
  %v1496 = vunpack.c.h.b16 %v1401
  %v1497 = vunpack.c.l.b16 %v1402
  %v1498 = vunpack.c.l.b16 %v1403
  %v1499 = vunpack.c.h.b16 %v1403
  %v1500 = vunpack.c.l.b16 %v1404
  %v1501 = vunpack.c.l.b16 %v1405
  %v1502 = vunpack.c.h.b16 %v1405
  %v1503 = vunpack.c.l.b16 %v1406
  %v1504 = vunpack.c.l.b16 %v1407
  %v1505 = vunpack.c.h.b16 %v1407
  %v1506 = vunpack.c.l.b16 %v1408
  %v1507 = vpack.c.b16 %v1462, %v1459
  %v1508 = vpack.c.b16 %v1463, %v1460
  %v1509 = vpack.c.b16 %v1464, %v1461
  %v1510 = vpack.c.b16 %v1468, %v1465
  %v1511 = vpack.c.b16 %v1469, %v1466
  %v1512 = vpack.c.b16 %v1470, %v1467
  %v1513 = vpack.c.b16 %v1474, %v1471
  %v1514 = vpack.c.b16 %v1475, %v1472
  %v1515 = vpack.c.b16 %v1476, %v1473
  %v1516 = vpack.c.b16 %v1480, %v1477
  %v1517 = vpack.c.b16 %v1481, %v1478
  %v1518 = vpack.c.b16 %v1482, %v1479
  %v1519 = vpack.c.b16 %v1486, %v1483
  %v1520 = vpack.c.b16 %v1487, %v1484
  %v1521 = vpack.c.b16 %v1488, %v1485
  %v1522 = vpack.c.b16 %v1492, %v1489
  %v1523 = vpack.c.b16 %v1493, %v1490
  %v1524 = vpack.c.b16 %v1494, %v1491
  %v1525 = vpack.c.b16 %v1498, %v1495
  %v1526 = vpack.c.b16 %v1499, %v1496
  %v1527 = vpack.c.b16 %v1500, %v1497
  %v1528 = vpack.c.b16 %v1504, %v1501
  %v1529 = vpack.c.b16 %v1505, %v1502
  %v1530 = vpack.c.b16 %v1506, %v1503
  %1555 = vmatprep.subr.bf16.mxu0 %v1529
  %1556 = vmatpush1.bf16.msra.mxu0 %v1528
  %1557 = vmatprep.subr.bf16.mxu0 %v1526
  %1558 = vmatpush1.bf16.msra.mxu0 %v1525
  %1559 = vmatprep.subr.bf16.mxu0 %v1523
  %1560 = vmatpush1.bf16.msra.mxu0 %v1522
  %1561 = vmatprep.subr.bf16.mxu0 %v1520
  %1562 = vmatpush1.bf16.msra.mxu0 %v1519
  %1563 = vmatprep.subr.bf16.mxu0 %v1517
  %1564 = vmatpush1.bf16.msra.mxu0 %v1516
  %1565 = vmatprep.subr.bf16.mxu0 %v1514
  %1566 = vmatpush1.bf16.msra.mxu0 %v1513
  %1567 = vmatprep.subr.bf16.mxu0 %v1511
  %1568 = vmatpush1.bf16.msra.mxu0 %v1510
  %1569 = vmatprep.subr.bf16.mxu0 %v1508
  %1570 = vmatpush1.bf16.msra.mxu0 %v1507
  %1571 = vmatprep.subr.bf16.mxu0 0
  %1572 = vmatpush2.bf16.msra.mxu0 0
  %1573 = vmatprep.subr.bf16.mxu0 0
  %1574 = vmatpush2.bf16.msra.mxu0 0
  %1575 = vmatprep.subr.bf16.mxu0 0
  %1576 = vmatpush2.bf16.msra.mxu0 0
  %1577 = vmatprep.subr.bf16.mxu0 0
  %1578 = vmatpush2.bf16.msra.mxu0 0
  %1579 = vmatprep.subr.bf16.mxu0 0
  %1580 = vmatpush2.bf16.msra.mxu0 0
  %1581 = vmatprep.subr.bf16.mxu0 0
  %1582 = vmatpush2.bf16.msra.mxu0 0
  %1583 = vmatprep.subr.bf16.mxu0 0
  %1584 = vmatpush2.bf16.msra.mxu0 0
  %1585 = vmatprep.subr.bf16.mxu0 0
  %1586 = vmatpush2.bf16.msra.mxu0 0
  %1587 = vmatprep.mubr.bf16.mxu0 0
  %1588 = vmatmul.mubr.bf16.gmra.mxu0 %v1375
  %v1589 = vpop.f32.mrf.mxu0
  %v1590 = vadd.f32 %v1415, %v1589
  %v1591 = vpop.f32.mrf.mxu0
  %v1592 = vadd.f32 %v1419, %v1591
  %v1593 = vpop.f32.mrf.mxu0
  %v1594 = vadd.f32 %v1415, %v1593
  %v1595 = vpop.f32.mrf.mxu0
  %v1596 = vadd.f32 %v1419, %v1595
  %1597 = vdwg.mxu0
  %1598 = vmatprep.subr.bf16.mxu0 0
  %1599 = vmatpush1.bf16.msra.mxu0 %v1530
  %1600 = vmatprep.subr.bf16.mxu0 0
  %1601 = vmatpush1.bf16.msra.mxu0 %v1527
  %1602 = vmatprep.subr.bf16.mxu0 0
  %1603 = vmatpush1.bf16.msra.mxu0 %v1524
  %1604 = vmatprep.subr.bf16.mxu0 0
  %1605 = vmatpush1.bf16.msra.mxu0 %v1521
  %1606 = vmatprep.subr.bf16.mxu0 0
  %1607 = vmatpush1.bf16.msra.mxu0 %v1518
  %1608 = vmatprep.subr.bf16.mxu0 0
  %1609 = vmatpush1.bf16.msra.mxu0 %v1515
  %1610 = vmatprep.subr.bf16.mxu0 0
  %1611 = vmatpush1.bf16.msra.mxu0 %v1512
  %1612 = vmatprep.subr.bf16.mxu0 0
  %1613 = vmatpush1.bf16.msra.mxu0 %v1509
  %1614 = vmatprep.subr.bf16.mxu0 0
  %1615 = vmatpush2.bf16.msra.mxu0 0
  %1616 = vmatprep.subr.bf16.mxu0 0
  %1617 = vmatpush2.bf16.msra.mxu0 0
  %1618 = vmatprep.subr.bf16.mxu0 0
  %1619 = vmatpush2.bf16.msra.mxu0 0
  %1620 = vmatprep.subr.bf16.mxu0 0
  %1621 = vmatpush2.bf16.msra.mxu0 0
  %1622 = vmatprep.subr.bf16.mxu0 0
  %1623 = vmatpush2.bf16.msra.mxu0 0
  %1624 = vmatprep.subr.bf16.mxu0 0
  %1625 = vmatpush2.bf16.msra.mxu0 0
  %1626 = vmatprep.subr.bf16.mxu0 0
  %1627 = vmatpush2.bf16.msra.mxu0 0
  %1628 = vmatprep.subr.bf16.mxu0 0
  %1629 = vmatpush2.bf16.msra.mxu0 0
  %1630 = vmatprep.mubr.bf16.mxu0 0
  %1631 = vmatmul.mubr.bf16.gmra.mxu0 %v1375
  %v1632 = vpop.f32.mrf.mxu0
  %v1633 = vadd.f32 %v1423, %v1632
  %v1634 = vpop.f32.mrf.mxu0
  %v1635 = vpop.f32.mrf.mxu0
  %v1636 = vadd.f32 %v1423, %v1635
  %v1637 = vpop.f32.mrf.mxu0
  %1638 = vdwg.mxu0
  %v1639 = vpack.c.bf16 %v1590, %v1590
  %v1640 = vpack.c.bf16 %v1594, %v1594
  %v1641 = vpack.c.bf16 %v1592, %v1592
  %v1642 = vpack.c.bf16 %v1596, %v1596
  %1643 = vmatprep.subr.bf16.mxu0 0
  %1644 = vmatpush1.bf16.xpose.msra.mxu0 0
  %1645 = vmatprep.subr.bf16.mxu0 0
  %1646 = vmatpush1.bf16.xpose.msra.mxu0 0
  %1647 = vmatprep.subr.bf16.mxu0 0
  %1648 = vmatpush1.bf16.xpose.msra.mxu0 0
  %1649 = vmatprep.subr.bf16.mxu0 0
  %1650 = vmatpush1.bf16.xpose.msra.mxu0 0
  %1651 = vmatprep.subr.bf16.mxu0 0
  %1652 = vmatpush1.bf16.xpose.msra.mxu0 0
  %1653 = vmatprep.subr.bf16.mxu0 0
  %1654 = vmatpush1.bf16.xpose.msra.mxu0 0
  %1655 = vmatprep.subr.bf16.mxu0 0
  %1656 = vmatpush1.bf16.xpose.msra.mxu0 0
  %1657 = vmatprep.subr.bf16.mxu0 0
  %1658 = vmatpush1.bf16.xpose.msra.mxu0 %v1641
  %1659 = vmatprep.subr.bf16.mxu0 0
  %1660 = vmatpush2.bf16.xpose.msra.mxu0 0
  %1661 = vmatprep.subr.bf16.mxu0 0
  %1662 = vmatpush2.bf16.xpose.msra.mxu0 0
  %1663 = vmatprep.subr.bf16.mxu0 0
  %1664 = vmatpush2.bf16.xpose.msra.mxu0 0
  %1665 = vmatprep.subr.bf16.mxu0 0
  %1666 = vmatpush2.bf16.xpose.msra.mxu0 0
  %1667 = vmatprep.subr.bf16.mxu0 0
  %1668 = vmatpush2.bf16.xpose.msra.mxu0 0
  %1669 = vmatprep.subr.bf16.mxu0 0
  %1670 = vmatpush2.bf16.xpose.msra.mxu0 0
  %1671 = vmatprep.subr.bf16.mxu0 0
  %1672 = vmatpush2.bf16.xpose.msra.mxu0 0
  %1673 = vmatprep.subr.bf16.mxu0 0
  %1674 = vmatpush2.bf16.xpose.msra.mxu0 0
  %1675 = vmatprep.mubr.bf16.mxu0 0
  %1676 = vmatmul.mubr.bf16.gmra.mxu0 %v1639
  %v1677 = vpop.f32.mrf.mxu0
  %v1678 = vadd.f32 0.0, %v1677
  %v1679 = vpop.f32.mrf.mxu0
  %v1680 = vpop.f32.mrf.mxu0
  %v1681 = vpop.f32.mrf.mxu0
  %1682 = vdwg.mxu0
  %1683 = vmatprep.subr.bf16.mxu0 0
  %1684 = vmatpush1.bf16.xpose.msra.mxu0 0
  %1685 = vmatprep.subr.bf16.mxu0 0
  %1686 = vmatpush1.bf16.xpose.msra.mxu0 0
  %1687 = vmatprep.subr.bf16.mxu0 0
  %1688 = vmatpush1.bf16.xpose.msra.mxu0 0
  %1689 = vmatprep.subr.bf16.mxu0 0
  %1690 = vmatpush1.bf16.xpose.msra.mxu0 0
  %1691 = vmatprep.subr.bf16.mxu0 0
  %1692 = vmatpush1.bf16.xpose.msra.mxu0 0
  %1693 = vmatprep.subr.bf16.mxu0 0
  %1694 = vmatpush1.bf16.xpose.msra.mxu0 0
  %1695 = vmatprep.subr.bf16.mxu0 0
  %1696 = vmatpush1.bf16.xpose.msra.mxu0 0
  %1697 = vmatprep.subr.bf16.mxu0 0
  %1698 = vmatpush1.bf16.xpose.msra.mxu0 %v1642
  %1699 = vmatprep.subr.bf16.mxu0 0
  %1700 = vmatpush2.bf16.xpose.msra.mxu0 0
  %1701 = vmatprep.subr.bf16.mxu0 0
  %1702 = vmatpush2.bf16.xpose.msra.mxu0 0
  %1703 = vmatprep.subr.bf16.mxu0 0
  %1704 = vmatpush2.bf16.xpose.msra.mxu0 0
  %1705 = vmatprep.subr.bf16.mxu0 0
  %1706 = vmatpush2.bf16.xpose.msra.mxu0 0
  %1707 = vmatprep.subr.bf16.mxu0 0
  %1708 = vmatpush2.bf16.xpose.msra.mxu0 0
  %1709 = vmatprep.subr.bf16.mxu0 0
  %1710 = vmatpush2.bf16.xpose.msra.mxu0 0
  %1711 = vmatprep.subr.bf16.mxu0 0
  %1712 = vmatpush2.bf16.xpose.msra.mxu0 0
  %1713 = vmatprep.subr.bf16.mxu0 0
  %1714 = vmatpush2.bf16.xpose.msra.mxu0 0
  %1715 = vmatprep.mubr.bf16.mxu0 0
  %1716 = vmatmul.mubr.bf16.gmra.mxu0 %v1640
  %v1717 = vpop.f32.mrf.mxu0
  %v1718 = vadd.f32 0.0, %v1717
  %v1719 = vpop.f32.mrf.mxu0
  %v1720 = vpop.f32.mrf.mxu0
  %v1721 = vpop.f32.mrf.mxu0
  %1722 = vdwg.mxu0
  %v1723 = vmul.f32 %v1678, 0.17677669
  %v1724 = vmul.f32 %v1718, 0.17677669
  %v1725 = vsel %vm87, %v1723, -1e+09
  %v1726 = vsel %vm88, %v1724, -1e+09
  %v1727 = vsel %vm663, %v1725, -inf
  %1728 = vmax.xlane.f32.xlu0 %v1727
  %v1729 = vpop.xlane.xlu0 %1728
  %v1730 = vsel %vm663, %v1726, -inf
  %1731 = vmax.xlane.f32.xlu0 %v1730
  %v1732 = vpop.xlane.xlu0 %1731
  %v1733 = vsub.f32 %v1725, %v1729
  %v1734 = vsub.f32 %v1726, %v1732
  %v1735 = vmul.f32 %v1733, 1.442695
  %v1736 = vpow.pop %v1735
  %v1737 = vmul.f32 %v1734, 1.442695
  %v1738 = vpow.pop %v1737
  %v1739 = vsel %vm663, %v1736, 0.0
  %1740 = vadd.xlane.f32.xlu0 %v1739
  %v1741 = vpop.xlane.xlu0 %1740
  %v1742 = vsel %vm663, %v1738, 0.0
  %1743 = vadd.xlane.f32.xlu0 %v1742
  %v1744 = vpop.xlane.xlu0 %1743
  %v1745 = vrcp.pop %v1741
  %v1746 = vrcp.pop %v1744
  %v1747 = vmul.f32 %v1736, %v1745
  %v1748 = vmul.f32 %v1738, %v1746
  %v1749 = vpack.c.bf16 %v1747, %v1747
  %v1750 = vpack.c.bf16 %v1748, %v1748
  %v1751 = vpack.c.bf16 %v1633, %v1633
  %v1752 = vpack.c.bf16 %v1636, %v1636
  %v1754 = vsel %vm663, %v1749, 0
  %v1757 = vsel %vm693, %v1751, 0
  %1759 = vmatprep.subr.bf16.mxu0 0
  %1760 = vmatpush1.bf16.msra.mxu0 0
  %1761 = vmatprep.subr.bf16.mxu0 0
  %1762 = vmatpush1.bf16.msra.mxu0 0
  %1763 = vmatprep.subr.bf16.mxu0 0
  %1764 = vmatpush1.bf16.msra.mxu0 0
  %1765 = vmatprep.subr.bf16.mxu0 0
  %1766 = vmatpush1.bf16.msra.mxu0 0
  %1767 = vmatprep.subr.bf16.mxu0 0
  %1768 = vmatpush1.bf16.msra.mxu0 0
  %1769 = vmatprep.subr.bf16.mxu0 0
  %1770 = vmatpush1.bf16.msra.mxu0 0
  %1771 = vmatprep.subr.bf16.mxu0 0
  %1772 = vmatpush1.bf16.msra.mxu0 0
  %1773 = vmatprep.subr.bf16.mxu0 0
  %1774 = vmatpush1.bf16.msra.mxu0 %v1757
  %1775 = vmatprep.subr.bf16.mxu0 0
  %1776 = vmatpush2.bf16.msra.mxu0 0
  %1777 = vmatprep.subr.bf16.mxu0 0
  %1778 = vmatpush2.bf16.msra.mxu0 0
  %1779 = vmatprep.subr.bf16.mxu0 0
  %1780 = vmatpush2.bf16.msra.mxu0 0
  %1781 = vmatprep.subr.bf16.mxu0 0
  %1782 = vmatpush2.bf16.msra.mxu0 0
  %1783 = vmatprep.subr.bf16.mxu0 0
  %1784 = vmatpush2.bf16.msra.mxu0 0
  %1785 = vmatprep.subr.bf16.mxu0 0
  %1786 = vmatpush2.bf16.msra.mxu0 0
  %1787 = vmatprep.subr.bf16.mxu0 0
  %1788 = vmatpush2.bf16.msra.mxu0 0
  %1789 = vmatprep.subr.bf16.mxu0 0
  %1790 = vmatpush2.bf16.msra.mxu0 0
  %1791 = vmatprep.mubr.bf16.mxu0 0
  %1792 = vmatmul.mubr.bf16.gmra.mxu0 %v1754
  %v1793 = vpop.f32.mrf.mxu0
  %v1794 = vadd.f32 0.0, %v1793
  %v1795 = vpop.f32.mrf.mxu0
  %v1796 = vpop.f32.mrf.mxu0
  %v1797 = vpop.f32.mrf.mxu0
  %1798 = vdwg.mxu0
  %v1800 = vsel %vm663, %v1750, 0
  %v1803 = vsel %vm693, %v1752, 0
  %1805 = vmatprep.subr.bf16.mxu0 0
  %1806 = vmatpush1.bf16.msra.mxu0 0
  %1807 = vmatprep.subr.bf16.mxu0 0
  %1808 = vmatpush1.bf16.msra.mxu0 0
  %1809 = vmatprep.subr.bf16.mxu0 0
  %1810 = vmatpush1.bf16.msra.mxu0 0
  %1811 = vmatprep.subr.bf16.mxu0 0
  %1812 = vmatpush1.bf16.msra.mxu0 0
  %1813 = vmatprep.subr.bf16.mxu0 0
  %1814 = vmatpush1.bf16.msra.mxu0 0
  %1815 = vmatprep.subr.bf16.mxu0 0
  %1816 = vmatpush1.bf16.msra.mxu0 0
  %1817 = vmatprep.subr.bf16.mxu0 0
  %1818 = vmatpush1.bf16.msra.mxu0 0
  %1819 = vmatprep.subr.bf16.mxu0 0
  %1820 = vmatpush1.bf16.msra.mxu0 %v1803
  %1821 = vmatprep.subr.bf16.mxu0 0
  %1822 = vmatpush2.bf16.msra.mxu0 0
  %1823 = vmatprep.subr.bf16.mxu0 0
  %1824 = vmatpush2.bf16.msra.mxu0 0
  %1825 = vmatprep.subr.bf16.mxu0 0
  %1826 = vmatpush2.bf16.msra.mxu0 0
  %1827 = vmatprep.subr.bf16.mxu0 0
  %1828 = vmatpush2.bf16.msra.mxu0 0
  %1829 = vmatprep.subr.bf16.mxu0 0
  %1830 = vmatpush2.bf16.msra.mxu0 0
  %1831 = vmatprep.subr.bf16.mxu0 0
  %1832 = vmatpush2.bf16.msra.mxu0 0
  %1833 = vmatprep.subr.bf16.mxu0 0
  %1834 = vmatpush2.bf16.msra.mxu0 0
  %1835 = vmatprep.subr.bf16.mxu0 0
  %1836 = vmatpush2.bf16.msra.mxu0 0
  %1837 = vmatprep.mubr.bf16.mxu0 0
  %1838 = vmatmul.mubr.bf16.gmra.mxu0 %v1800
  %v1839 = vpop.f32.mrf.mxu0
  %v1840 = vadd.f32 0.0, %v1839
  %v1841 = vpop.f32.mrf.mxu0
  %v1842 = vpop.f32.mrf.mxu0
  %v1843 = vpop.f32.mrf.mxu0
  %1844 = vdwg.mxu0
  %v1845 = vpack.c.bf16 %v1840, %v1794
  %s1846 = scalar_lea.vmem %s10, 64
  %v1847 = vld [vmem:[%s1846] sm:$0xf]
  %v1848 = vld [vmem:[%s1846 + $0x4] sm:$0xf]
  %v1849 = vld [vmem:[%s1846 + $0x8] sm:$0xf]
  %v1850 = vld [vmem:[%s1846 + $0xc] sm:$0xf]
  %v1851 = vld [vmem:[%s1846 + $0x10] sm:$0xf]
  %v1852 = vld [vmem:[%s1846 + $0x14] sm:$0xf]
  %v1853 = vld [vmem:[%s1846 + $0x18] sm:$0xf]
  %v1854 = vld [vmem:[%s1846 + $0x1c] sm:$0xf]
  %v1855 = vld [vmem:[%s1846 + $0x20] sm:$0xf]
  %v1856 = vld [vmem:[%s1846 + $0x24] sm:$0xf]
  %v1857 = vld [vmem:[%s1846 + $0x28] sm:$0xf]
  %v1858 = vld [vmem:[%s1846 + $0x2c] sm:$0xf]
  %v1859 = vld [vmem:[%s1846 + $0x30] sm:$0xf]
  %v1860 = vld [vmem:[%s1846 + $0x34] sm:$0xf]
  %v1861 = vld [vmem:[%s1846 + $0x38] sm:$0xf]
  %v1862 = vld [vmem:[%s1846 + $0x3c] sm:$0xf]
  %v1863 = vlaneseq
  %v1864 = vshrl.u32 %v1863, 7
  %v1865 = vsub.s32 4, %v1864
  %v1866 = vrot.slane %v1177, %v1865
  %v1883 = vunpack.c.l.b16 %v1847
  %v1884 = vunpack.c.l.b16 %v1848
  %v1885 = vunpack.c.l.b16 %v1849
  %v1886 = vunpack.c.l.b16 %v1850
  %v1887 = vunpack.c.l.b16 %v1851
  %v1888 = vunpack.c.l.b16 %v1852
  %v1889 = vunpack.c.l.b16 %v1853
  %v1890 = vunpack.c.l.b16 %v1854
  %v1891 = vunpack.c.l.b16 %v1855
  %v1892 = vunpack.c.l.b16 %v1856
  %v1893 = vunpack.c.l.b16 %v1857
  %v1894 = vunpack.c.l.b16 %v1858
  %v1895 = vunpack.c.l.b16 %v1859
  %v1896 = vunpack.c.l.b16 %v1860
  %v1897 = vunpack.c.l.b16 %v1861
  %v1898 = vunpack.c.l.b16 %v1862
  %v1899 = vpack.c.b16 %v1884, %v1883
  %v1900 = vpack.c.b16 %v1886, %v1885
  %v1901 = vpack.c.b16 %v1888, %v1887
  %v1902 = vpack.c.b16 %v1890, %v1889
  %v1903 = vpack.c.b16 %v1892, %v1891
  %v1904 = vpack.c.b16 %v1894, %v1893
  %v1905 = vpack.c.b16 %v1896, %v1895
  %v1906 = vpack.c.b16 %v1898, %v1897
  %1915 = vmatprep.subr.bf16.mxu0 0
  %1916 = vmatpush1.bf16.msra.mxu0 %v1906
  %1917 = vmatprep.subr.bf16.mxu0 0
  %1918 = vmatpush1.bf16.msra.mxu0 %v1905
  %1919 = vmatprep.subr.bf16.mxu0 0
  %1920 = vmatpush1.bf16.msra.mxu0 %v1904
  %1921 = vmatprep.subr.bf16.mxu0 0
  %1922 = vmatpush1.bf16.msra.mxu0 %v1903
  %1923 = vmatprep.subr.bf16.mxu0 0
  %1924 = vmatpush1.bf16.msra.mxu0 %v1902
  %1925 = vmatprep.subr.bf16.mxu0 0
  %1926 = vmatpush1.bf16.msra.mxu0 %v1901
  %1927 = vmatprep.subr.bf16.mxu0 0
  %1928 = vmatpush1.bf16.msra.mxu0 %v1900
  %1929 = vmatprep.subr.bf16.mxu0 0
  %1930 = vmatpush1.bf16.msra.mxu0 %v1899
  %1931 = vmatprep.subr.bf16.mxu0 0
  %1932 = vmatpush2.bf16.msra.mxu0 0
  %1933 = vmatprep.subr.bf16.mxu0 0
  %1934 = vmatpush2.bf16.msra.mxu0 0
  %1935 = vmatprep.subr.bf16.mxu0 0
  %1936 = vmatpush2.bf16.msra.mxu0 0
  %1937 = vmatprep.subr.bf16.mxu0 0
  %1938 = vmatpush2.bf16.msra.mxu0 0
  %1939 = vmatprep.subr.bf16.mxu0 0
  %1940 = vmatpush2.bf16.msra.mxu0 0
  %1941 = vmatprep.subr.bf16.mxu0 0
  %1942 = vmatpush2.bf16.msra.mxu0 0
  %1943 = vmatprep.subr.bf16.mxu0 0
  %1944 = vmatpush2.bf16.msra.mxu0 0
  %1945 = vmatprep.subr.bf16.mxu0 0
  %1946 = vmatpush2.bf16.msra.mxu0 0
  %1947 = vmatprep.mubr.bf16.mxu0 0
  %1948 = vmatmul.mubr.bf16.gmra.mxu0 %v1845
  %v1949 = vpop.f32.mrf.mxu0
  %v1950 = vadd.f32 %v1866, %v1949
  %v1951 = vpop.f32.mrf.mxu0
  %v1952 = vpop.f32.mrf.mxu0
  %v1953 = vadd.f32 %v1866, %v1952
  %v1954 = vpop.f32.mrf.mxu0
  %1955 = vdwg.mxu0
  %v1956 = vadd.f32 %v1335, %v1950
  %v1957 = vadd.f32 %v1336, %v1953
  %1958 = vadd.xlane.f32.xlu0 %v1956
  %v1959 = vpop.xlane.xlu0 %1958
  %1960 = vadd.xlane.f32.xlu0 %v1957
  %v1961 = vpop.xlane.xlu0 %1960
  %v1962 = vmul.f32 %v1956, %v1956
  %v1963 = vmul.f32 %v1957, %v1957
  %1964 = vadd.xlane.f32.xlu0 %v1962
  %v1965 = vpop.xlane.xlu0 %1964
  %1966 = vadd.xlane.f32.xlu0 %v1963
  %v1967 = vpop.xlane.xlu0 %1966
  %v1968 = vmul.f32 %v1959, 0.03125
  %v1969 = vmul.f32 %v1961, 0.03125
  %v1970 = vmul.f32 %v1965, 0.03125
  %v1971 = vmul.f32 %v1967, 0.03125
  %v1972 = vmul.f32 %v1968, %v1968
  %v1973 = vmul.f32 %v1969, %v1969
  %v1974 = vsub.f32 %v1970, %v1972
  %v1975 = vsub.f32 %v1971, %v1973
  %v1976 = vsub.f32 %v1956, %v1968
  %v1977 = vsub.f32 %v1957, %v1969
  %v1978 = vadd.f32 %v1974, 1e-05
  %v1979 = vadd.f32 %v1975, 1e-05
  %v1980 = vrsqrt.pop %v1978
  %v1981 = vrsqrt.pop %v1979
  %v1982 = vmul.f32 %v1976, %v1980
  %v1983 = vmul.f32 %v1977, %v1981
  %v1984 = vlaneseq
  %v1985 = vshrl.u32 %v1984, 7
  %v1986 = vsub.s32 5, %v1985
  %v1987 = vrot.slane %v1177, %v1986
  %v1988 = vmul.f32 %v1982, %v1987
  %v1989 = vmul.f32 %v1983, %v1987
  %v1990 = vlaneseq
  %v1991 = vshrl.u32 %v1990, 7
  %v1992 = vsub.s32 6, %v1991
  %v1993 = vrot.slane %v1177, %v1992
  %v1994 = vadd.f32 %v1988, %v1993
  %v1995 = vadd.f32 %v1989, %v1993
  %v1996 = vpack.c.bf16 %v1995, %v1994
  %s1997 = scalar_lea.vmem %s11, 64
  %v1998 = vld [vmem:[%s1997] sm:$0xf]
  %v1999 = vld [vmem:[%s1997 + $0x4] sm:$0xf]
  %v2000 = vld [vmem:[%s1997 + $0x8] sm:$0xf]
  %v2001 = vld [vmem:[%s1997 + $0xc] sm:$0xf]
  %v2002 = vld [vmem:[%s1997 + $0x10] sm:$0xf]
  %v2003 = vld [vmem:[%s1997 + $0x14] sm:$0xf]
  %v2004 = vld [vmem:[%s1997 + $0x18] sm:$0xf]
  %v2005 = vld [vmem:[%s1997 + $0x1c] sm:$0xf]
  %v2006 = vld [vmem:[%s1997 + $0x20] sm:$0xf]
  %v2007 = vld [vmem:[%s1997 + $0x24] sm:$0xf]
  %v2008 = vld [vmem:[%s1997 + $0x28] sm:$0xf]
  %v2009 = vld [vmem:[%s1997 + $0x2c] sm:$0xf]
  %v2010 = vld [vmem:[%s1997 + $0x30] sm:$0xf]
  %v2011 = vld [vmem:[%s1997 + $0x34] sm:$0xf]
  %v2012 = vld [vmem:[%s1997 + $0x38] sm:$0xf]
  %v2013 = vld [vmem:[%s1997 + $0x3c] sm:$0xf]
  %v2014 = vld [vmem:[%s12 + $0x1] sm:$0x1]
  %v2015 = vlaneseq
  %v2016 = vshrl.u32 %v2015, 7
  %v2017 = vsub.s32 0, %v2016
  %v2018 = vrot.slane %v2014, %v2017
  %v2035 = vunpack.c.l.b16 %v1998
  %v2036 = vunpack.c.l.b16 %v1999
  %v2037 = vunpack.c.l.b16 %v2000
  %v2038 = vunpack.c.l.b16 %v2001
  %v2039 = vunpack.c.l.b16 %v2002
  %v2040 = vunpack.c.l.b16 %v2003
  %v2041 = vunpack.c.l.b16 %v2004
  %v2042 = vunpack.c.l.b16 %v2005
  %v2043 = vunpack.c.l.b16 %v2006
  %v2044 = vunpack.c.l.b16 %v2007
  %v2045 = vunpack.c.l.b16 %v2008
  %v2046 = vunpack.c.l.b16 %v2009
  %v2047 = vunpack.c.l.b16 %v2010
  %v2048 = vunpack.c.l.b16 %v2011
  %v2049 = vunpack.c.l.b16 %v2012
  %v2050 = vunpack.c.l.b16 %v2013
  %v2051 = vpack.c.b16 %v2036, %v2035
  %v2052 = vpack.c.b16 %v2038, %v2037
  %v2053 = vpack.c.b16 %v2040, %v2039
  %v2054 = vpack.c.b16 %v2042, %v2041
  %v2055 = vpack.c.b16 %v2044, %v2043
  %v2056 = vpack.c.b16 %v2046, %v2045
  %v2057 = vpack.c.b16 %v2048, %v2047
  %v2058 = vpack.c.b16 %v2050, %v2049
  %2067 = vmatprep.subr.bf16.mxu0 0
  %2068 = vmatpush1.bf16.msra.mxu0 %v2058
  %2069 = vmatprep.subr.bf16.mxu0 0
  %2070 = vmatpush1.bf16.msra.mxu0 %v2057
  %2071 = vmatprep.subr.bf16.mxu0 0
  %2072 = vmatpush1.bf16.msra.mxu0 %v2056
  %2073 = vmatprep.subr.bf16.mxu0 0
  %2074 = vmatpush1.bf16.msra.mxu0 %v2055
  %2075 = vmatprep.subr.bf16.mxu0 0
  %2076 = vmatpush1.bf16.msra.mxu0 %v2054
  %2077 = vmatprep.subr.bf16.mxu0 0
  %2078 = vmatpush1.bf16.msra.mxu0 %v2053
  %2079 = vmatprep.subr.bf16.mxu0 0
  %2080 = vmatpush1.bf16.msra.mxu0 %v2052
  %2081 = vmatprep.subr.bf16.mxu0 0
  %2082 = vmatpush1.bf16.msra.mxu0 %v2051
  %2083 = vmatprep.subr.bf16.mxu0 0
  %2084 = vmatpush2.bf16.msra.mxu0 0
  %2085 = vmatprep.subr.bf16.mxu0 0
  %2086 = vmatpush2.bf16.msra.mxu0 0
  %2087 = vmatprep.subr.bf16.mxu0 0
  %2088 = vmatpush2.bf16.msra.mxu0 0
  %2089 = vmatprep.subr.bf16.mxu0 0
  %2090 = vmatpush2.bf16.msra.mxu0 0
  %2091 = vmatprep.subr.bf16.mxu0 0
  %2092 = vmatpush2.bf16.msra.mxu0 0
  %2093 = vmatprep.subr.bf16.mxu0 0
  %2094 = vmatpush2.bf16.msra.mxu0 0
  %2095 = vmatprep.subr.bf16.mxu0 0
  %2096 = vmatpush2.bf16.msra.mxu0 0
  %2097 = vmatprep.subr.bf16.mxu0 0
  %2098 = vmatpush2.bf16.msra.mxu0 0
  %2099 = vmatprep.mubr.bf16.mxu0 0
  %2100 = vmatmul.mubr.bf16.gmra.mxu0 %v1996
  %v2101 = vpop.f32.mrf.mxu0
  %v2102 = vadd.f32 %v2018, %v2101
  %v2103 = vpop.f32.mrf.mxu0
  %v2104 = vpop.f32.mrf.mxu0
  %v2105 = vadd.f32 %v2018, %v2104
  %v2106 = vpop.f32.mrf.mxu0
  %2107 = vdwg.mxu0
  %v2108 = vmul.f32 %v2102, %v2102
  %v2109 = vmul.f32 %v2105, %v2105
  %v2110 = vmul.f32 %v2102, %v2108
  %v2111 = vmul.f32 %v2105, %v2109
  %v2112 = vmul.f32 %v2110, 0.044715
  %v2113 = vmul.f32 %v2111, 0.044715
  %v2114 = vadd.f32 %v2102, %v2112
  %v2115 = vadd.f32 %v2105, %v2113
  %v2116 = vmul.f32 %v2114, 0.7978846
  %v2117 = vmul.f32 %v2115, 0.7978846
  %v2118 = vtanh.pop %v2116
  %v2119 = vtanh.pop %v2117
  %v2120 = vadd.f32 %v2118, 1.0
  %v2121 = vadd.f32 %v2119, 1.0
  %v2122 = vmul.f32 %v2120, 0.5
  %v2123 = vmul.f32 %v2121, 0.5
  %v2124 = vmul.f32 %v2102, %v2122
  %v2125 = vmul.f32 %v2105, %v2123
  %v2126 = vpack.c.bf16 %v2125, %v2124
  %s2127 = scalar_lea.vmem %s13, 64
  %v2128 = vld [vmem:[%s2127] sm:$0xf]
  %v2129 = vld [vmem:[%s2127 + $0x4] sm:$0xf]
  %v2130 = vld [vmem:[%s2127 + $0x8] sm:$0xf]
  %v2131 = vld [vmem:[%s2127 + $0xc] sm:$0xf]
  %v2132 = vld [vmem:[%s2127 + $0x10] sm:$0xf]
  %v2133 = vld [vmem:[%s2127 + $0x14] sm:$0xf]
  %v2134 = vld [vmem:[%s2127 + $0x18] sm:$0xf]
  %v2135 = vld [vmem:[%s2127 + $0x1c] sm:$0xf]
  %v2136 = vld [vmem:[%s2127 + $0x20] sm:$0xf]
  %v2137 = vld [vmem:[%s2127 + $0x24] sm:$0xf]
  %v2138 = vld [vmem:[%s2127 + $0x28] sm:$0xf]
  %v2139 = vld [vmem:[%s2127 + $0x2c] sm:$0xf]
  %v2140 = vld [vmem:[%s2127 + $0x30] sm:$0xf]
  %v2141 = vld [vmem:[%s2127 + $0x34] sm:$0xf]
  %v2142 = vld [vmem:[%s2127 + $0x38] sm:$0xf]
  %v2143 = vld [vmem:[%s2127 + $0x3c] sm:$0xf]
  %v2144 = vlaneseq
  %v2145 = vshrl.u32 %v2144, 7
  %v2146 = vsub.s32 7, %v2145
  %v2147 = vrot.slane %v1177, %v2146
  %v2164 = vunpack.c.l.b16 %v2128
  %v2165 = vunpack.c.l.b16 %v2129
  %v2166 = vunpack.c.l.b16 %v2130
  %v2167 = vunpack.c.l.b16 %v2131
  %v2168 = vunpack.c.l.b16 %v2132
  %v2169 = vunpack.c.l.b16 %v2133
  %v2170 = vunpack.c.l.b16 %v2134
  %v2171 = vunpack.c.l.b16 %v2135
  %v2172 = vunpack.c.l.b16 %v2136
  %v2173 = vunpack.c.l.b16 %v2137
  %v2174 = vunpack.c.l.b16 %v2138
  %v2175 = vunpack.c.l.b16 %v2139
  %v2176 = vunpack.c.l.b16 %v2140
  %v2177 = vunpack.c.l.b16 %v2141
  %v2178 = vunpack.c.l.b16 %v2142
  %v2179 = vunpack.c.l.b16 %v2143
  %v2180 = vpack.c.b16 %v2165, %v2164
  %v2181 = vpack.c.b16 %v2167, %v2166
  %v2182 = vpack.c.b16 %v2169, %v2168
  %v2183 = vpack.c.b16 %v2171, %v2170
  %v2184 = vpack.c.b16 %v2173, %v2172
  %v2185 = vpack.c.b16 %v2175, %v2174
  %v2186 = vpack.c.b16 %v2177, %v2176
  %v2187 = vpack.c.b16 %v2179, %v2178
  %2196 = vmatprep.subr.bf16.mxu0 0
  %2197 = vmatpush1.bf16.msra.mxu0 %v2187
  %2198 = vmatprep.subr.bf16.mxu0 0
  %2199 = vmatpush1.bf16.msra.mxu0 %v2186
  %2200 = vmatprep.subr.bf16.mxu0 0
  %2201 = vmatpush1.bf16.msra.mxu0 %v2185
  %2202 = vmatprep.subr.bf16.mxu0 0
  %2203 = vmatpush1.bf16.msra.mxu0 %v2184
  %2204 = vmatprep.subr.bf16.mxu0 0
  %2205 = vmatpush1.bf16.msra.mxu0 %v2183
  %2206 = vmatprep.subr.bf16.mxu0 0
  %2207 = vmatpush1.bf16.msra.mxu0 %v2182
  %2208 = vmatprep.subr.bf16.mxu0 0
  %2209 = vmatpush1.bf16.msra.mxu0 %v2181
  %2210 = vmatprep.subr.bf16.mxu0 0
  %2211 = vmatpush1.bf16.msra.mxu0 %v2180
  %2212 = vmatprep.subr.bf16.mxu0 0
  %2213 = vmatpush2.bf16.msra.mxu0 0
  %2214 = vmatprep.subr.bf16.mxu0 0
  %2215 = vmatpush2.bf16.msra.mxu0 0
  %2216 = vmatprep.subr.bf16.mxu0 0
  %2217 = vmatpush2.bf16.msra.mxu0 0
  %2218 = vmatprep.subr.bf16.mxu0 0
  %2219 = vmatpush2.bf16.msra.mxu0 0
  %2220 = vmatprep.subr.bf16.mxu0 0
  %2221 = vmatpush2.bf16.msra.mxu0 0
  %2222 = vmatprep.subr.bf16.mxu0 0
  %2223 = vmatpush2.bf16.msra.mxu0 0
  %2224 = vmatprep.subr.bf16.mxu0 0
  %2225 = vmatpush2.bf16.msra.mxu0 0
  %2226 = vmatprep.subr.bf16.mxu0 0
  %2227 = vmatpush2.bf16.msra.mxu0 0
  %2228 = vmatprep.mubr.bf16.mxu0 0
  %2229 = vmatmul.mubr.bf16.gmra.mxu0 %v2126
  %v2230 = vpop.f32.mrf.mxu0
  %v2231 = vadd.f32 %v2147, %v2230
  %v2232 = vpop.f32.mrf.mxu0
  %v2233 = vpop.f32.mrf.mxu0
  %v2234 = vadd.f32 %v2147, %v2233
  %v2235 = vpop.f32.mrf.mxu0
  %2236 = vdwg.mxu0
  %v2237 = vadd.f32 %v1956, %v2231
  %v2238 = vadd.f32 %v1957, %v2234
  %v2239 = vpack.c.bf16 %v2238, %v2237
  %v2240 = vld [vmem:[%s14] sm:$0xf]
  %v2241 = vld [vmem:[%s14 + $0x4] sm:$0xf]
  %v2242 = vld [vmem:[%s14 + $0x8] sm:$0xf]
  %v2243 = vld [vmem:[%s14 + $0xc] sm:$0xf]
  %v2244 = vld [vmem:[%s14 + $0x10] sm:$0xf]
  %v2245 = vld [vmem:[%s14 + $0x14] sm:$0xf]
  %v2246 = vld [vmem:[%s14 + $0x18] sm:$0xf]
  %v2247 = vld [vmem:[%s14 + $0x1c] sm:$0xf]
  %v2248 = vld [vmem:[%s14 + $0x20] sm:$0xf]
  %v2249 = vld [vmem:[%s14 + $0x24] sm:$0xf]
  %v2250 = vld [vmem:[%s14 + $0x28] sm:$0xf]
  %v2251 = vld [vmem:[%s14 + $0x2c] sm:$0xf]
  %v2252 = vld [vmem:[%s14 + $0x30] sm:$0xf]
  %v2253 = vld [vmem:[%s14 + $0x34] sm:$0xf]
  %v2254 = vld [vmem:[%s14 + $0x38] sm:$0xf]
  %v2255 = vld [vmem:[%s14 + $0x3c] sm:$0xf]
  %v2256 = vld [vmem:[%s15] sm:$0x1]
  %v2258 = vlaneseq
  %v2259 = vshrl.u32 %v2258, 7
  %v2260 = vsub.s32 0, %v2259
  %v2261 = vrot.slane %v2256, %v2260
  %v2279 = vunpack.c.l.b16 %v2240
  %v2280 = vunpack.c.l.b16 %v2241
  %v2281 = vunpack.c.l.b16 %v2242
  %v2282 = vunpack.c.l.b16 %v2243
  %v2283 = vunpack.c.l.b16 %v2244
  %v2284 = vunpack.c.l.b16 %v2245
  %v2285 = vunpack.c.l.b16 %v2246
  %v2286 = vunpack.c.l.b16 %v2247
  %v2287 = vunpack.c.l.b16 %v2248
  %v2288 = vunpack.c.l.b16 %v2249
  %v2289 = vunpack.c.l.b16 %v2250
  %v2290 = vunpack.c.l.b16 %v2251
  %v2291 = vunpack.c.l.b16 %v2252
  %v2292 = vunpack.c.l.b16 %v2253
  %v2293 = vunpack.c.l.b16 %v2254
  %v2294 = vunpack.c.l.b16 %v2255
  %v2295 = vpack.c.b16 %v2280, %v2279
  %v2296 = vpack.c.b16 %v2282, %v2281
  %v2297 = vpack.c.b16 %v2284, %v2283
  %v2298 = vpack.c.b16 %v2286, %v2285
  %v2299 = vpack.c.b16 %v2288, %v2287
  %v2300 = vpack.c.b16 %v2290, %v2289
  %v2301 = vpack.c.b16 %v2292, %v2291
  %v2302 = vpack.c.b16 %v2294, %v2293
  %2311 = vmatprep.subr.bf16.mxu0 0
  %2312 = vmatpush1.bf16.msra.mxu0 %v2302
  %2313 = vmatprep.subr.bf16.mxu0 0
  %2314 = vmatpush1.bf16.msra.mxu0 %v2301
  %2315 = vmatprep.subr.bf16.mxu0 0
  %2316 = vmatpush1.bf16.msra.mxu0 %v2300
  %2317 = vmatprep.subr.bf16.mxu0 0
  %2318 = vmatpush1.bf16.msra.mxu0 %v2299
  %2319 = vmatprep.subr.bf16.mxu0 0
  %2320 = vmatpush1.bf16.msra.mxu0 %v2298
  %2321 = vmatprep.subr.bf16.mxu0 0
  %2322 = vmatpush1.bf16.msra.mxu0 %v2297
  %2323 = vmatprep.subr.bf16.mxu0 0
  %2324 = vmatpush1.bf16.msra.mxu0 %v2296
  %2325 = vmatprep.subr.bf16.mxu0 0
  %2326 = vmatpush1.bf16.msra.mxu0 %v2295
  %2327 = vmatprep.subr.bf16.mxu0 0
  %2328 = vmatpush2.bf16.msra.mxu0 0
  %2329 = vmatprep.subr.bf16.mxu0 0
  %2330 = vmatpush2.bf16.msra.mxu0 0
  %2331 = vmatprep.subr.bf16.mxu0 0
  %2332 = vmatpush2.bf16.msra.mxu0 0
  %2333 = vmatprep.subr.bf16.mxu0 0
  %2334 = vmatpush2.bf16.msra.mxu0 0
  %2335 = vmatprep.subr.bf16.mxu0 0
  %2336 = vmatpush2.bf16.msra.mxu0 0
  %2337 = vmatprep.subr.bf16.mxu0 0
  %2338 = vmatpush2.bf16.msra.mxu0 0
  %2339 = vmatprep.subr.bf16.mxu0 0
  %2340 = vmatpush2.bf16.msra.mxu0 0
  %2341 = vmatprep.subr.bf16.mxu0 0
  %2342 = vmatpush2.bf16.msra.mxu0 0
  %2343 = vmatprep.mubr.bf16.mxu0 0
  %2344 = vmatmul.mubr.bf16.gmra.mxu0 %v2239
  %v2345 = vpop.f32.mrf.mxu0
  %v2346 = vadd.f32 %v2261, %v2345
  %v2347 = vpop.f32.mrf.mxu0
  %v2348 = vpop.f32.mrf.mxu0
  %v2349 = vadd.f32 %v2261, %v2348
  %v2350 = vpop.f32.mrf.mxu0
  %2351 = vdwg.mxu0
  %2353 = vset.pattern.permute.xlu0 0
  %2354 = vperm.xlu0 %2353, %v64
  %v2355 = vpop.permute.xlu0 %2354
  %2358 = vset.pattern.permute.xlu0 0
  %2359 = vperm.xlu0 %2358, %v65
  %v2360 = vpop.permute.xlu0 %2359
  %v2362 = vmul.f32 %v2346, %v2355
  %v2363 = vmul.f32 %v2349, %v2360
  %2364 = vst [vmem:[%s16] sm:$0xff] %v2362
  %2365 = vst [vmem:[%s16 + $0x8] sm:$0xff] %v2363
  %v2366 = vld [vmem:[%s4] sm:$0xff]
  %v2367 = vld [vmem:[%s4 + $0x8] sm:$0xff]
  %v2368 = vmul.f32 %v2366, %v2355
  %v2369 = vmul.f32 %v2367, %v2360
  %2370 = vst [vmem:[%s17] sm:$0xff] %v2368
  %2371 = vst [vmem:[%s17 + $0x8] sm:$0xff] %v2369
  // Predicated region
  $region66: #{aux_gpt_forward.1} parent=0 // pred_check
    _
  $region67: #{aux_gpt_forward.1} parent=0 // pred_check_branch
    %2373 = sbr.rel (0) target = $region69
  $region68: #{aux_gpt_forward.1} parent=0 // pred_region
    _
  $region69: #{aux_gpt_forward.1} parent=0 // pred_fallthru
    _
  // Predicated region
  $region70: #{aux_gpt_forward.1} parent=0 // pred_check
    _
  $region71: #{aux_gpt_forward.1} parent=0 // pred_check_branch
    %2375 = sbr.rel (0) target = $region73
  $region72: #{aux_gpt_forward.1} parent=0 // pred_region
    _
  $region73: #{aux_gpt_forward.1} parent=0 // pred_fallthru
    _
  // Predicated region
  $region74: #{aux_gpt_forward.1} parent=0 // pred_check
    _
  $region75: #{aux_gpt_forward.1} parent=0 // pred_check_branch
    %2377 = sbr.rel (0) target = $region77
  $region76: #{aux_gpt_forward.1} parent=0 // pred_region
    _
  $region77: #{aux_gpt_forward.1} parent=0 // pred_fallthru
    _
  // Predicated region
  $region78: #{aux_gpt_forward.1} parent=0 // pred_check
    _
  $region79: #{aux_gpt_forward.1} parent=0 // pred_check_branch
    %2379 = sbr.rel (0) target = $region81
  $region80: #{aux_gpt_forward.1} parent=0 // pred_region
    _
  $region81: #{aux_gpt_forward.1} parent=0 // pred_fallthru
    _

</llo_original>
